<compile_context>
chip_gen: v7x
topology: tpu7x:2x2x1
jax: 0.10.0
libtpu: 0.0.40
codegen_flags: <defaults>
</compile_context>

<pallas_src>
import functools

import jax
import jax.numpy as jnp
from jax.experimental import pallas as pl
from jax.experimental.pallas import tpu as pltpu


# --------------------------- Pallas kernels ---------------------------------

def _linear_kernel(x_ref, w_ref, b_ref, o_ref, *, activation):
    y = jnp.dot(x_ref[...], w_ref[...], preferred_element_type=jnp.float32)
    y = y + b_ref[...]
    if activation == "relu":
        y = jnp.maximum(y, 0.0)
    o_ref[...] = y.astype(o_ref.dtype)


def pallas_linear(x, w, b, activation=None, block_m=256, block_n=512):
    """act(x @ w + b).  x:(M,K)  w:(K,N)  b:(N,)  -> (M,N).  Tiles M and N."""
    M, K = x.shape
    N = w.shape[1]
    bm = M if M <= block_m else block_m
    bn = N if N <= block_n else block_n
    if N > block_n:
        assert N % bn == 0
    return pl.pallas_call(
        functools.partial(_linear_kernel, activation=activation),
        out_shape=jax.ShapeDtypeStruct((M, N), jnp.float32),
        grid=(pl.cdiv(M, bm), pl.cdiv(N, bn)),
        in_specs=[
            pl.BlockSpec((bm, K), lambda i, j: (i, 0)),
            pl.BlockSpec((K, bn), lambda i, j: (0, j)),
            pl.BlockSpec((1, bn), lambda i, j: (0, j)),
        ],
        out_specs=pl.BlockSpec((bm, bn), lambda i, j: (i, j)),
        compiler_params=pltpu.CompilerParams(
            dimension_semantics=("parallel", "parallel")),
    )(x, w, b.reshape(1, N))


def _bp_latent_kernel(x_ref, w1_ref, b1_ref, w2_ref, b2_ref, o_ref, acc_ref):
    # Fused: relu(x @ W1 + b1) @ W2 + b2, relu.  Hidden axis tiled by grid
    # axis 1; the (bm, H) activation only ever lives in vregs/VMEM.
    k = pl.program_id(1)

    @pl.when(k == 0)
    def _():
        acc_ref[...] = jnp.zeros_like(acc_ref)

    h = jnp.dot(x_ref[...], w1_ref[...], preferred_element_type=jnp.float32)
    h = jnp.maximum(h + b1_ref[...], 0.0)
    acc_ref[...] += jnp.dot(h, w2_ref[...], preferred_element_type=jnp.float32)

    @pl.when(k == pl.num_programs(1) - 1)
    def _():
        o_ref[...] = jnp.maximum(acc_ref[...] + b2_ref[...], 0.0).astype(o_ref.dtype)


def pallas_bp_latent(x, w1, b1, w2, b2, block_m=256, block_h=512):
    """body_part_to_latent: Linear(3R,H)+ReLU -> Linear(H,R)+ReLU, fused."""
    M, K3 = x.shape
    H = w1.shape[1]
    R = w2.shape[1]
    bm = M if M <= block_m else block_m
    bh = H if H <= block_h else block_h
    assert H % bh == 0
    cost = pl.CostEstimate(
        flops=2 * M * K3 * H + 2 * M * H * R,
        transcendentals=0,
        bytes_accessed=4 * (M * K3 + K3 * H + H + H * R + R + M * R))
    return pl.pallas_call(
        _bp_latent_kernel,
        out_shape=jax.ShapeDtypeStruct((M, R), jnp.float32),
        grid=(pl.cdiv(M, bm), H // bh),
        in_specs=[
            pl.BlockSpec((bm, K3), lambda i, k: (i, 0)),
            pl.BlockSpec((K3, bh), lambda i, k: (0, k)),
            pl.BlockSpec((1, bh), lambda i, k: (0, k)),
            pl.BlockSpec((bh, R), lambda i, k: (k, 0)),
            pl.BlockSpec((1, R), lambda i, k: (0, 0)),
        ],
        out_specs=pl.BlockSpec((bm, R), lambda i, k: (i, 0)),
        scratch_shapes=[pltpu.VMEM((bm, R), jnp.float32)],
        compiler_params=pltpu.CompilerParams(
            dimension_semantics=("parallel", "arbitrary")),
        cost_estimate=cost,
    )(x, w1, b1.reshape(1, H), w2, b2.reshape(1, R))


def _attention_kernel(h_ref, pa_ref, f_ref, m_ref,
                      wq_ref, bq_ref, wa_ref, ba_ref,
                      res_ref, w_ref):
    # Per-batch block: h:(Nb,Dh)  pa:(L,A)  feats:(L,R)  mask:(1,L)
    h = h_ref[0]                                                          # (Nb,Dh)
    att_h = jnp.dot(h, wq_ref[...],
                    preferred_element_type=jnp.float32) + bq_ref[...]     # (Nb,A)
    dot = jnp.tanh(pa_ref[0][None, :, :] + att_h[:, None, :])             # (Nb,L,A)
    scores = jnp.sum(dot * wa_ref[...][None, :, :], axis=-1) + ba_ref[...]  # (Nb,L)

    # softmax -> mask -> renormalize, folded into one reciprocal:
    #   w = e*mask / (sum(e*mask) + 1e-10*sum(e))   (exactly equal to reference)
    m = jnp.max(scores, axis=-1, keepdims=True)
    e = jnp.exp(scores - m)
    se = jnp.sum(e, axis=-1, keepdims=True)
    mask = m_ref[0]                                                       # (1,L)
    em = e * mask
    denom = jnp.sum(em, axis=-1, keepdims=True) + 1e-10 * se
    w = em * pl.reciprocal(denom, approx=False)                           # (Nb,L)

    res = jnp.dot(w, f_ref[0], preferred_element_type=jnp.float32)        # (Nb,R)
    res_ref[0] = res.astype(res_ref.dtype)
    w_ref[0] = w.astype(w_ref.dtype)


def pallas_attention(h, w_h2att, b_h2att, w_alpha, b_alpha, p_att, att, mask3):
    """Attention2.forward over all Nb humans of every batch element.

    h:(B,Nb,Dh)  p_att:(B,L,A)  att:(B,L,R)  mask3:(B,1,L)
    Returns att_res:(B,Nb,R), weight:(B,Nb,L).  The shared (L,*) tensors are
    indexed by the batch coordinate only -- no Nb-way broadcast in HBM.
    """
    B, Nb, Dh = h.shape
    _, L, A = p_att.shape
    R = att.shape[-1]
    return pl.pallas_call(
        _attention_kernel,
        out_shape=(jax.ShapeDtypeStruct((B, Nb, R), jnp.float32),
                   jax.ShapeDtypeStruct((B, Nb, L), jnp.float32)),
        grid=(B,),
        in_specs=[
            pl.BlockSpec((1, Nb, Dh), lambda b: (b, 0, 0)),
            pl.BlockSpec((1, L, A), lambda b: (b, 0, 0)),
            pl.BlockSpec((1, L, R), lambda b: (b, 0, 0)),
            pl.BlockSpec((1, 1, L), lambda b: (b, 0, 0)),
            pl.BlockSpec((Dh, A), lambda b: (0, 0)),
            pl.BlockSpec((1, A), lambda b: (0, 0)),
            pl.BlockSpec((1, A), lambda b: (0, 0)),
            pl.BlockSpec((1, 1), lambda b: (0, 0)),
        ],
        out_specs=(pl.BlockSpec((1, Nb, R), lambda b: (b, 0, 0)),
                   pl.BlockSpec((1, Nb, L), lambda b: (b, 0, 0))),
        compiler_params=pltpu.CompilerParams(
            dimension_semantics=("parallel",)),
    )(h, p_att, att, mask3, w_h2att, b_h2att.reshape(1, A),
      w_alpha.reshape(1, A), b_alpha.reshape(1, 1))


def _human_agg_kernel(body_ref, part_ref, pmask_ref, out_ref):
    # body:(bm,R) part:(bm,Np,R) pmask:(bm,Np)
    part = part_ref[...]
    pmask = pmask_ref[...]
    s = body_ref[...] + jnp.sum(part * pmask[:, :, None], axis=1)
    denom = jnp.sum(pmask, axis=1, keepdims=True) + 1.0
    out_ref[...] = (s * pl.reciprocal(denom, approx=False)).astype(out_ref.dtype)


def pallas_human_agg(body, part, pmask, block_m=256):
    N, R = body.shape
    Np = part.shape[1]
    bm = N if N <= block_m else block_m
    return pl.pallas_call(
        _human_agg_kernel,
        out_shape=jax.ShapeDtypeStruct((N, R), jnp.float32),
        grid=(pl.cdiv(N, bm),),
        in_specs=[
            pl.BlockSpec((bm, R), lambda i: (i, 0)),
            pl.BlockSpec((bm, Np, R), lambda i: (i, 0, 0)),
            pl.BlockSpec((bm, Np), lambda i: (i, 0)),
        ],
        out_specs=pl.BlockSpec((bm, R), lambda i: (i, 0)),
        compiler_params=pltpu.CompilerParams(
            dimension_semantics=("parallel",)),
    )(body, part, pmask)


# --------------------------- parameters --------------------------------------

def init_params(key, *, rnn_size, att_hid_size, att_feat_size, fc_feat_size):
    R, A, Fa, Ff = rnn_size, att_hid_size, att_feat_size, fc_feat_size

    def linear(k, fan_in, fan_out):
        kw, kb = jax.random.split(k)
        scale = 1.0 / jnp.sqrt(jnp.float32(fan_in))
        w = jax.random.uniform(kw, (fan_in, fan_out), jnp.float32, -scale, scale)
        b = jax.random.uniform(kb, (fan_out,), jnp.float32, -scale, scale)
        return w, b

    keys = jax.random.split(key, 13)
    p = {}
    p["fc_embed"] = linear(keys[0], Fa, R)
    p["att_embed"] = linear(keys[1], Fa, R)
    p["body_embed"] = linear(keys[2], Ff, R)
    p["part_embed"] = linear(keys[3], Ff, R)
    p["p_body_fc"] = linear(keys[4], R, R)
    p["bp_l1"] = linear(keys[5], 3 * R, 2048)     # body_part_to_latent[0]
    p["bp_l2"] = linear(keys[6], 2048, R)         # body_part_to_latent[3]
    p["ctx2att"] = linear(keys[7], R, A)
    p["obj_att_fc"] = linear(keys[8], R, R)
    p["rough_h2att"] = linear(keys[9], R, A)      # Attention2(input_size=1)
    p["rough_alpha"] = linear(keys[10], A, 1)
    p["fine_h2att"] = linear(keys[11], 2 * R, A)  # Attention2(input_size=2)
    p["fine_alpha"] = linear(keys[12], A, 1)
    return p


# --------------------------- forward ------------------------------------------

def hcfh_forward(params, fc_feats, att_feats, body_feats, part_feats,
                 att_masks, body_masks, part_masks, *, Nb, Np):
    B, L, Fa = att_feats.shape
    Ff = body_feats.shape[-1]
    R = params["fc_embed"][0].shape[1]
    A = params["ctx2att"][0].shape[1]

    # _prepare_feature : dropout = identity (eval); att_masks is full-length
    # so clip_att / pack_padded_sequence are exact no-ops -> per-position Linear.
    # TODO(synk): dynamic max-length clipping (clip_att) has no static-shape
    # Pallas equivalent; full-length masks make it a no-op here.
    fc = pallas_linear(fc_feats, *params["fc_embed"], activation="relu")          # (B,R)
    att = pallas_linear(att_feats.reshape(B * L, Fa), *params["att_embed"],
                        activation="relu").reshape(B, L, R)

    # _prepare_body_part_feature
    body = pallas_linear(body_feats.reshape(B * Nb, Ff), *params["body_embed"],
                         activation="relu").reshape(B, Nb, R)
    part = pallas_linear(part_feats.reshape(B * Nb * Np, Ff), *params["part_embed"],
                         activation="relu").reshape(B, Nb, Np, R)

    # context concatenations (glue stays in plain JAX; small)
    p_body = pallas_linear(body.reshape(B * Nb, R), *params["p_body_fc"],
                           activation="relu").reshape(B, Nb, R)
    p_fc = jnp.broadcast_to(fc[:, None, :], (B, Nb, R))
    p_body_cat = jnp.concatenate([p_body, body, p_fc], axis=-1)                    # (B,Nb,3R)

    pp_fc = jnp.broadcast_to(fc[:, None, None, :], (B, Nb, Np, R))
    body_exp = jnp.broadcast_to(body[:, :, None, :], (B, Nb, Np, R))
    part_cat = jnp.concatenate([part, body_exp, pp_fc], axis=-1)                   # (B,Nb,Np,3R)

    # body_part_to_latent: fused 2-layer MLP over body+part rows in ONE call,
    # 2048-wide hidden never written to HBM.
    bp_in = jnp.concatenate([p_body_cat[:, :, None, :], part_cat], axis=2)         # (B,Nb,1+Np,3R)
    bp_out = pallas_bp_latent(
        bp_in.reshape(B * Nb * (1 + Np), 3 * R),
        params["bp_l1"][0], params["bp_l1"][1],
        params["bp_l2"][0], params["bp_l2"][1]).reshape(B * Nb, 1 + Np, R)
    body_lat = bp_out[:, 0, :]                                                     # (B*Nb,R)
    part_lat = bp_out[:, 1:, :]                                                    # (B*Nb,Np,R)

    pmask = part_masks.reshape(B * Nb, Np).astype(jnp.float32)
    human = pallas_human_agg(body_lat, part_lat, pmask).reshape(B, Nb, R)          # human_feats

    # attention context (shared per batch; NOT broadcast over Nb in HBM)
    p_att = pallas_linear(att.reshape(B * L, R), *params["ctx2att"]).reshape(B, L, A)
    mask3 = att_masks.astype(jnp.float32).reshape(B, 1, L)

    rough_att, rough_w = pallas_attention(
        human, params["rough_h2att"][0], params["rough_h2att"][1],
        params["rough_alpha"][0], params["rough_alpha"][1],
        p_att, att, mask3)                                                         # (B,Nb,R),(B,Nb,L)

    # detach() only affects backward; forward is identical
    tmp_rough = pallas_linear(rough_att.reshape(B * Nb, R), *params["obj_att_fc"],
                              activation="relu").reshape(B, Nb, R)
    h2 = jnp.concatenate([human, tmp_rough], axis=-1)                              # (B,Nb,2R)
    _fine_att, fine_w = pallas_attention(
        h2, params["fine_h2att"][0], params["fine_h2att"][1],
        params["fine_alpha"][0], params["fine_alpha"][1],
        p_att, att, mask3)

    fine_w = fine_w * body_masks[..., None]
    rough_w = rough_w * body_masks[..., None]
    return human, fine_w, rough_w


# --------------------------- main ---------------------------------------------

if __name__ == "__main__":
    B, L, Nb, Np = 2, 8, 3, 4
    rnn_size, att_hid_size = 32, 32
    att_feat_size, fc_feat_size = 64, 48

    key = jax.random.PRNGKey(0)
    k_in, k_par = jax.random.split(key)
    kf, ka, kb, kp, kbm, kpm = jax.random.split(k_in, 6)

    fc_feats = jax.random.normal(kf, (B, att_feat_size), jnp.float32)
    att_feats = jax.random.normal(ka, (B, L, att_feat_size), jnp.float32)
    body_feats = jax.random.normal(kb, (B, Nb, fc_feat_size), jnp.float32)
    part_feats = jax.random.normal(kp, (B, Nb * Np, fc_feat_size), jnp.float32)
    att_masks = jnp.ones((B, L), jnp.float32)  # full length -> clip/pack no-ops
    body_masks = (jax.random.uniform(kbm, (B, Nb)) > 0.3).astype(jnp.float32)
    part_masks = (jax.random.uniform(kpm, (B, Nb * Np)) > 0.3).astype(jnp.float32)

    params = init_params(k_par, rnn_size=rnn_size, att_hid_size=att_hid_size,
                         att_feat_size=att_feat_size, fc_feat_size=fc_feat_size)

    fwd = jax.jit(functools.partial(hcfh_forward, Nb=Nb, Np=Np))
    human_feats, fine_weight, rough_weight = fwd(
        params, fc_feats, att_feats, body_feats, part_feats,
        att_masks, body_masks, part_masks)
    jax.block_until_ready((human_feats, fine_weight, rough_weight))

    assert human_feats.shape == (B, Nb, rnn_size)
    assert fine_weight.shape == (B, Nb, L)
    assert rough_weight.shape == (B, Nb, L)
    print("KERNEL_OK")
</pallas_src>

<mosaic_0001>
module attributes {stable_mosaic.version = 11 : i64} {
  func.func @_linear_kernel(%arg0: i32, %arg1: i32, %arg2: memref<6x48xf32, #tpu.memory_space<vmem>>, %arg3: memref<48x32xf32, #tpu.memory_space<vmem>>, %arg4: memref<1x32xf32, #tpu.memory_space<vmem>>, %arg5: memref<6x32xf32, #tpu.memory_space<vmem>>) attributes {dimension_semantics = [#tpu.dimension_semantics<parallel>, #tpu.dimension_semantics<parallel>], iteration_bounds = array<i64: 1, 1>, scalar_prefetch = 0 : i64, scratch_operands = 0 : i64, tpu.core_type = #tpu.core_type<tc>, window_params = [{transform_indices = @transform_0, window_bounds = array<i64: 6, 48>}, {transform_indices = @transform_1, window_bounds = array<i64: 48, 32>}, {transform_indices = @transform_2, window_bounds = array<i64: 1, 32>}, {transform_indices = @transform_3, window_bounds = array<i64: 6, 32>}]} {
    %c0 = arith.constant 0 : index
    %c0_0 = arith.constant 0 : index
    %0 = vector.load %arg2[%c0, %c0_0] : memref<6x48xf32, #tpu.memory_space<vmem>>, vector<6x48xf32>
    %c0_1 = arith.constant 0 : index
    %c0_2 = arith.constant 0 : index
    %1 = vector.load %arg3[%c0_1, %c0_2] : memref<48x32xf32, #tpu.memory_space<vmem>>, vector<48x32xf32>
    %cst = arith.constant dense<0.000000e+00> : vector<6x32xf32>
    %2 = tpu.matmul %0, %1, %cst {dimension_numbers = #tpu.dot_dimension_numbers<[1], [0], [0], [1], [0, 0, 1, 1], [], []>} : vector<6x48xf32>, vector<48x32xf32>, vector<6x32xf32> -> vector<6x32xf32>
    %c0_3 = arith.constant 0 : index
    %c0_4 = arith.constant 0 : index
    %3 = vector.load %arg4[%c0_3, %c0_4] : memref<1x32xf32, #tpu.memory_space<vmem>>, vector<1x32xf32>
    %4 = vector.broadcast %3 : vector<1x32xf32> to vector<6x32xf32>
    %5 = arith.addf %2, %4 : vector<6x32xf32>
    %cst_5 = arith.constant 0.000000e+00 : f32
    %6 = vector.broadcast %cst_5 : f32 to vector<6x32xf32>
    %7 = arith.maximumf %5, %6 : vector<6x32xf32>
    %c0_6 = arith.constant 0 : index
    %c0_7 = arith.constant 0 : index
    %8 = vector.load %arg5[%c0_6, %c0_7] : memref<6x32xf32, #tpu.memory_space<vmem>>, vector<6x32xf32>
    tpu.vector_store %arg5[%c0_6, %c0_7], %7 {strides = array<i32>} : memref<6x32xf32, #tpu.memory_space<vmem>>, vector<6x32xf32>,
    return
  }
  func.func @transform_0(%arg0: i32, %arg1: i32) -> (i32, i32) {
    %c0_i32 = arith.constant 0 : i32
    %c0_i32_0 = arith.constant 0 : i32
    return %arg0, %c0_i32 : i32, i32
  }
  func.func @transform_1(%arg0: i32, %arg1: i32) -> (i32, i32) {
    %c0_i32 = arith.constant 0 : i32
    %c0_i32_0 = arith.constant 0 : i32
    return %c0_i32, %arg1 : i32, i32
  }
  func.func @transform_2(%arg0: i32, %arg1: i32) -> (i32, i32) {
    %c0_i32 = arith.constant 0 : i32
    %c0_i32_0 = arith.constant 0 : i32
    return %c0_i32, %arg1 : i32, i32
  }
  func.func @transform_3(%arg0: i32, %arg1: i32) -> (i32, i32) {
    %c0_i32 = arith.constant 0 : i32
    return %arg0, %arg1 : i32, i32
  }
}

module attributes {stable_mosaic.version = 11 : i64} {
  func.func @_linear_kernel(%arg0: i32, %arg1: i32, %arg2: memref<6x32xf32, #tpu.memory_space<vmem>>, %arg3: memref<32x32xf32, #tpu.memory_space<vmem>>, %arg4: memref<1x32xf32, #tpu.memory_space<vmem>>, %arg5: memref<6x32xf32, #tpu.memory_space<vmem>>) attributes {dimension_semantics = [#tpu.dimension_semantics<parallel>, #tpu.dimension_semantics<parallel>], iteration_bounds = array<i64: 1, 1>, scalar_prefetch = 0 : i64, scratch_operands = 0 : i64, tpu.core_type = #tpu.core_type<tc>, window_params = [{transform_indices = @transform_0, window_bounds = array<i64: 6, 32>}, {transform_indices = @transform_1, window_bounds = array<i64: 32, 32>}, {transform_indices = @transform_2, window_bounds = array<i64: 1, 32>}, {transform_indices = @transform_3, window_bounds = array<i64: 6, 32>}]} {
    %c0 = arith.constant 0 : index
    %c0_0 = arith.constant 0 : index
    %0 = vector.load %arg2[%c0, %c0_0] : memref<6x32xf32, #tpu.memory_space<vmem>>, vector<6x32xf32>
    %c0_1 = arith.constant 0 : index
    %c0_2 = arith.constant 0 : index
    %1 = vector.load %arg3[%c0_1, %c0_2] : memref<32x32xf32, #tpu.memory_space<vmem>>, vector<32x32xf32>
    %cst = arith.constant dense<0.000000e+00> : vector<6x32xf32>
    %2 = tpu.matmul %0, %1, %cst {dimension_numbers = #tpu.dot_dimension_numbers<[1], [0], [0], [1], [0, 0, 1, 1], [], []>} : vector<6x32xf32>, vector<32x32xf32>, vector<6x32xf32> -> vector<6x32xf32>
    %c0_3 = arith.constant 0 : index
    %c0_4 = arith.constant 0 : index
    %3 = vector.load %arg4[%c0_3, %c0_4] : memref<1x32xf32, #tpu.memory_space<vmem>>, vector<1x32xf32>
    %4 = vector.broadcast %3 : vector<1x32xf32> to vector<6x32xf32>
    %5 = arith.addf %2, %4 : vector<6x32xf32>
    %cst_5 = arith.constant 0.000000e+00 : f32
    %6 = vector.broadcast %cst_5 : f32 to vector<6x32xf32>
    %7 = arith.maximumf %5, %6 : vector<6x32xf32>
    %c0_6 = arith.constant 0 : index
    %c0_7 = arith.constant 0 : index
    %8 = vector.load %arg5[%c0_6, %c0_7] : memref<6x32xf32, #tpu.memory_space<vmem>>, vector<6x32xf32>
    tpu.vector_store %arg5[%c0_6, %c0_7], %7 {strides = array<i32>} : memref<6x32xf32, #tpu.memory_space<vmem>>, vector<6x32xf32>,
    return
  }
  func.func @transform_0(%arg0: i32, %arg1: i32) -> (i32, i32) {
    %c0_i32 = arith.constant 0 : i32
    %c0_i32_0 = arith.constant 0 : i32
    return %arg0, %c0_i32 : i32, i32
  }
  func.func @transform_1(%arg0: i32, %arg1: i32) -> (i32, i32) {
    %c0_i32 = arith.constant 0 : i32
    %c0_i32_0 = arith.constant 0 : i32
    return %c0_i32, %arg1 : i32, i32
  }
  func.func @transform_2(%arg0: i32, %arg1: i32) -> (i32, i32) {
    %c0_i32 = arith.constant 0 : i32
    %c0_i32_0 = arith.constant 0 : i32
    return %c0_i32, %arg1 : i32, i32
  }
  func.func @transform_3(%arg0: i32, %arg1: i32) -> (i32, i32) {
    %c0_i32 = arith.constant 0 : i32
    return %arg0, %arg1 : i32, i32
  }
}

module attributes {stable_mosaic.version = 11 : i64} {
  func.func @_linear_kernel(%arg0: i32, %arg1: i32, %arg2: memref<2x64xf32, #tpu.memory_space<vmem>>, %arg3: memref<64x32xf32, #tpu.memory_space<vmem>>, %arg4: memref<1x32xf32, #tpu.memory_space<vmem>>, %arg5: memref<2x32xf32, #tpu.memory_space<vmem>>) attributes {dimension_semantics = [#tpu.dimension_semantics<parallel>, #tpu.dimension_semantics<parallel>], iteration_bounds = array<i64: 1, 1>, scalar_prefetch = 0 : i64, scratch_operands = 0 : i64, tpu.core_type = #tpu.core_type<tc>, window_params = [{transform_indices = @transform_0, window_bounds = array<i64: 2, 64>}, {transform_indices = @transform_1, window_bounds = array<i64: 64, 32>}, {transform_indices = @transform_2, window_bounds = array<i64: 1, 32>}, {transform_indices = @transform_3, window_bounds = array<i64: 2, 32>}]} {
    %c0 = arith.constant 0 : index
    %c0_0 = arith.constant 0 : index
    %0 = vector.load %arg2[%c0, %c0_0] : memref<2x64xf32, #tpu.memory_space<vmem>>, vector<2x64xf32>
    %c0_1 = arith.constant 0 : index
    %c0_2 = arith.constant 0 : index
    %1 = vector.load %arg3[%c0_1, %c0_2] : memref<64x32xf32, #tpu.memory_space<vmem>>, vector<64x32xf32>
    %cst = arith.constant dense<0.000000e+00> : vector<2x32xf32>
    %2 = tpu.matmul %0, %1, %cst {dimension_numbers = #tpu.dot_dimension_numbers<[1], [0], [0], [1], [0, 0, 1, 1], [], []>} : vector<2x64xf32>, vector<64x32xf32>, vector<2x32xf32> -> vector<2x32xf32>
    %c0_3 = arith.constant 0 : index
    %c0_4 = arith.constant 0 : index
    %3 = vector.load %arg4[%c0_3, %c0_4] : memref<1x32xf32, #tpu.memory_space<vmem>>, vector<1x32xf32>
    %4 = vector.broadcast %3 : vector<1x32xf32> to vector<2x32xf32>
    %5 = arith.addf %2, %4 : vector<2x32xf32>
    %cst_5 = arith.constant 0.000000e+00 : f32
    %6 = vector.broadcast %cst_5 : f32 to vector<2x32xf32>
    %7 = arith.maximumf %5, %6 : vector<2x32xf32>
    %c0_6 = arith.constant 0 : index
    %c0_7 = arith.constant 0 : index
    %8 = vector.load %arg5[%c0_6, %c0_7] : memref<2x32xf32, #tpu.memory_space<vmem>>, vector<2x32xf32>
    tpu.vector_store %arg5[%c0_6, %c0_7], %7 {strides = array<i32>} : memref<2x32xf32, #tpu.memory_space<vmem>>, vector<2x32xf32>,
    return
  }
  func.func @transform_0(%arg0: i32, %arg1: i32) -> (i32, i32) {
    %c0_i32 = arith.constant 0 : i32
    %c0_i32_0 = arith.constant 0 : i32
    return %arg0, %c0_i32 : i32, i32
  }
  func.func @transform_1(%arg0: i32, %arg1: i32) -> (i32, i32) {
    %c0_i32 = arith.constant 0 : i32
    %c0_i32_0 = arith.constant 0 : i32
    return %c0_i32, %arg1 : i32, i32
  }
  func.func @transform_2(%arg0: i32, %arg1: i32) -> (i32, i32) {
    %c0_i32 = arith.constant 0 : i32
    %c0_i32_0 = arith.constant 0 : i32
    return %c0_i32, %arg1 : i32, i32
  }
  func.func @transform_3(%arg0: i32, %arg1: i32) -> (i32, i32) {
    %c0_i32 = arith.constant 0 : i32
    return %arg0, %arg1 : i32, i32
  }
}

module attributes {stable_mosaic.version = 11 : i64} {
  func.func @_linear_kernel(%arg0: i32, %arg1: i32, %arg2: memref<24x48xf32, #tpu.memory_space<vmem>>, %arg3: memref<48x32xf32, #tpu.memory_space<vmem>>, %arg4: memref<1x32xf32, #tpu.memory_space<vmem>>, %arg5: memref<24x32xf32, #tpu.memory_space<vmem>>) attributes {dimension_semantics = [#tpu.dimension_semantics<parallel>, #tpu.dimension_semantics<parallel>], iteration_bounds = array<i64: 1, 1>, scalar_prefetch = 0 : i64, scratch_operands = 0 : i64, tpu.core_type = #tpu.core_type<tc>, window_params = [{transform_indices = @transform_0, window_bounds = array<i64: 24, 48>}, {transform_indices = @transform_1, window_bounds = array<i64: 48, 32>}, {transform_indices = @transform_2, window_bounds = array<i64: 1, 32>}, {transform_indices = @transform_3, window_bounds = array<i64: 24, 32>}]} {
    %c0 = arith.constant 0 : index
    %c0_0 = arith.constant 0 : index
    %0 = vector.load %arg2[%c0, %c0_0] : memref<24x48xf32, #tpu.memory_space<vmem>>, vector<24x48xf32>
    %c0_1 = arith.constant 0 : index
    %c0_2 = arith.constant 0 : index
    %1 = vector.load %arg3[%c0_1, %c0_2] : memref<48x32xf32, #tpu.memory_space<vmem>>, vector<48x32xf32>
    %cst = arith.constant dense<0.000000e+00> : vector<24x32xf32>
    %2 = tpu.matmul %0, %1, %cst {dimension_numbers = #tpu.dot_dimension_numbers<[1], [0], [0], [1], [0, 0, 1, 1], [], []>} : vector<24x48xf32>, vector<48x32xf32>, vector<24x32xf32> -> vector<24x32xf32>
    %c0_3 = arith.constant 0 : index
    %c0_4 = arith.constant 0 : index
    %3 = vector.load %arg4[%c0_3, %c0_4] : memref<1x32xf32, #tpu.memory_space<vmem>>, vector<1x32xf32>
    %4 = vector.broadcast %3 : vector<1x32xf32> to vector<24x32xf32>
    %5 = arith.addf %2, %4 : vector<24x32xf32>
    %cst_5 = arith.constant 0.000000e+00 : f32
    %6 = vector.broadcast %cst_5 : f32 to vector<24x32xf32>
    %7 = arith.maximumf %5, %6 : vector<24x32xf32>
    %c0_6 = arith.constant 0 : index
    %c0_7 = arith.constant 0 : index
    %8 = vector.load %arg5[%c0_6, %c0_7] : memref<24x32xf32, #tpu.memory_space<vmem>>, vector<24x32xf32>
    tpu.vector_store %arg5[%c0_6, %c0_7], %7 {strides = array<i32>} : memref<24x32xf32, #tpu.memory_space<vmem>>, vector<24x32xf32>,
    return
  }
  func.func @transform_0(%arg0: i32, %arg1: i32) -> (i32, i32) {
    %c0_i32 = arith.constant 0 : i32
    %c0_i32_0 = arith.constant 0 : i32
    return %arg0, %c0_i32 : i32, i32
  }
  func.func @transform_1(%arg0: i32, %arg1: i32) -> (i32, i32) {
    %c0_i32 = arith.constant 0 : i32
    %c0_i32_0 = arith.constant 0 : i32
    return %c0_i32, %arg1 : i32, i32
  }
  func.func @transform_2(%arg0: i32, %arg1: i32) -> (i32, i32) {
    %c0_i32 = arith.constant 0 : i32
    %c0_i32_0 = arith.constant 0 : i32
    return %c0_i32, %arg1 : i32, i32
  }
  func.func @transform_3(%arg0: i32, %arg1: i32) -> (i32, i32) {
    %c0_i32 = arith.constant 0 : i32
    return %arg0, %arg1 : i32, i32
  }
}

module attributes {stable_mosaic.version = 11 : i64} {
  func.func @_bp_latent_kernel(%arg0: i32, %arg1: i32, %arg2: memref<30x96xf32, #tpu.memory_space<vmem>>, %arg3: memref<96x512xf32, #tpu.memory_space<vmem>>, %arg4: memref<1x512xf32, #tpu.memory_space<vmem>>, %arg5: memref<512x32xf32, #tpu.memory_space<vmem>>, %arg6: memref<1x32xf32, #tpu.memory_space<vmem>>, %arg7: memref<30x32xf32, #tpu.memory_space<vmem>>, %arg8: memref<30x32xf32, #tpu.memory_space<vmem>>) attributes {dimension_semantics = [#tpu.dimension_semantics<parallel>, #tpu.dimension_semantics<arbitrary>], iteration_bounds = array<i64: 1, 4>, scalar_prefetch = 0 : i64, scratch_operands = 1 : i64, tpu.core_type = #tpu.core_type<tc>, window_params = [{transform_indices = @transform_0, window_bounds = array<i64: 30, 96>}, {transform_indices = @transform_1, window_bounds = array<i64: 96, 512>}, {transform_indices = @transform_2, window_bounds = array<i64: 1, 512>}, {transform_indices = @transform_3, window_bounds = array<i64: 512, 32>}, {pipeline_mode = #tpu.pipeline_mode<synchronous>, transform_indices = @transform_4, window_bounds = array<i64: 1, 32>}, {transform_indices = @transform_5, window_bounds = array<i64: 30, 32>}]} {
    %c0_i32 = arith.constant 0 : i32
    %0 = arith.cmpi eq, %arg1, %c0_i32 : i32
    %1 = arith.extui %0 : i1 to i32
    %c0_i32_0 = arith.constant 0 : i32
    %2 = arith.cmpi ne, %1, %c0_i32_0 : i32
    scf.if %2 {
      %cst_15 = arith.constant 0.000000e+00 : f32
      %19 = vector.broadcast %cst_15 : f32 to vector<30x32xf32>
      %c0_16 = arith.constant 0 : index
      %c0_17 = arith.constant 0 : index
      %20 = vector.load %arg8[%c0_16, %c0_17] : memref<30x32xf32, #tpu.memory_space<vmem>>, vector<30x32xf32>
      tpu.vector_store %arg8[%c0_16, %c0_17], %19 {strides = array<i32>} : memref<30x32xf32, #tpu.memory_space<vmem>>, vector<30x32xf32>,
    } else {
    }
    %c0 = arith.constant 0 : index
    %c0_1 = arith.constant 0 : index
    %3 = vector.load %arg2[%c0, %c0_1] : memref<30x96xf32, #tpu.memory_space<vmem>>, vector<30x96xf32>
    %c0_2 = arith.constant 0 : index
    %c0_3 = arith.constant 0 : index
    %4 = vector.load %arg3[%c0_2, %c0_3] : memref<96x512xf32, #tpu.memory_space<vmem>>, vector<96x512xf32>
    %cst = arith.constant dense<0.000000e+00> : vector<30x512xf32>
    %5 = tpu.matmul %3, %4, %cst {dimension_numbers = #tpu.dot_dimension_numbers<[1], [0], [0], [1], [0, 0, 1, 1], [], []>} : vector<30x96xf32>, vector<96x512xf32>, vector<30x512xf32> -> vector<30x512xf32>
    %c0_4 = arith.constant 0 : index
    %c0_5 = arith.constant 0 : index
    %6 = vector.load %arg4[%c0_4, %c0_5] : memref<1x512xf32, #tpu.memory_space<vmem>>, vector<1x512xf32>
    %7 = vector.broadcast %6 : vector<1x512xf32> to vector<30x512xf32>
    %8 = arith.addf %5, %7 : vector<30x512xf32>
    %cst_6 = arith.constant 0.000000e+00 : f32
    %9 = vector.broadcast %cst_6 : f32 to vector<30x512xf32>
    %10 = arith.maximumf %8, %9 : vector<30x512xf32>
    %c0_7 = arith.constant 0 : index
    %c0_8 = arith.constant 0 : index
    %11 = vector.load %arg8[%c0_7, %c0_8] : memref<30x32xf32, #tpu.memory_space<vmem>>, vector<30x32xf32>
    %c0_9 = arith.constant 0 : index
    %c0_10 = arith.constant 0 : index
    %12 = vector.load %arg5[%c0_9, %c0_10] : memref<512x32xf32, #tpu.memory_space<vmem>>, vector<512x32xf32>
    %cst_11 = arith.constant dense<0.000000e+00> : vector<30x32xf32>
    %13 = tpu.matmul %10, %12, %cst_11 {dimension_numbers = #tpu.dot_dimension_numbers<[1], [0], [0], [1], [0, 0, 1, 1], [], []>} : vector<30x512xf32>, vector<512x32xf32>, vector<30x32xf32> -> vector<30x32xf32>
    %14 = arith.addf %11, %13 : vector<30x32xf32>
    %c0_12 = arith.constant 0 : index
    %c0_13 = arith.constant 0 : index
    %15 = vector.load %arg8[%c0_12, %c0_13] : memref<30x32xf32, #tpu.memory_space<vmem>>, vector<30x32xf32>
    tpu.vector_store %arg8[%c0_12, %c0_13], %14 {strides = array<i32>} : memref<30x32xf32, #tpu.memory_space<vmem>>, vector<30x32xf32>,
    %c3_i32 = arith.constant 3 : i32
    %16 = arith.cmpi eq, %arg1, %c3_i32 : i32
    %17 = arith.extui %16 : i1 to i32
    %c0_i32_14 = arith.constant 0 : i32
    %18 = arith.cmpi ne, %17, %c0_i32_14 : i32
    scf.if %18 {
      %c0_15 = arith.constant 0 : index
      %c0_16 = arith.constant 0 : index
      %19 = vector.load %arg8[%c0_15, %c0_16] : memref<30x32xf32, #tpu.memory_space<vmem>>, vector<30x32xf32>
      %c0_17 = arith.constant 0 : index
      %c0_18 = arith.constant 0 : index
      %20 = vector.load %arg6[%c0_17, %c0_18] : memref<1x32xf32, #tpu.memory_space<vmem>>, vector<1x32xf32>
      %21 = vector.broadcast %20 : vector<1x32xf32> to vector<30x32xf32>
      %22 = arith.addf %19, %21 : vector<30x32xf32>
      %cst_19 = arith.constant 0.000000e+00 : f32
      %23 = vector.broadcast %cst_19 : f32 to vector<30x32xf32>
      %24 = arith.maximumf %22, %23 : vector<30x32xf32>
      %c0_20 = arith.constant 0 : index
      %c0_21 = arith.constant 0 : index
      %25 = vector.load %arg7[%c0_20, %c0_21] : memref<30x32xf32, #tpu.memory_space<vmem>>, vector<30x32xf32>
      tpu.vector_store %arg7[%c0_20, %c0_21], %24 {strides = array<i32>} : memref<30x32xf32, #tpu.memory_space<vmem>>, vector<30x32xf32>,
    } else {
    }
    return
  }
  func.func @transform_0(%arg0: i32, %arg1: i32) -> (i32, i32) {
    %c0_i32 = arith.constant 0 : i32
    %c0_i32_0 = arith.constant 0 : i32
    return %arg0, %c0_i32 : i32, i32
  }
  func.func @transform_1(%arg0: i32, %arg1: i32) -> (i32, i32) {
    %c0_i32 = arith.constant 0 : i32
    %c0_i32_0 = arith.constant 0 : i32
    return %c0_i32, %arg1 : i32, i32
  }
  func.func @transform_2(%arg0: i32, %arg1: i32) -> (i32, i32) {
    %c0_i32 = arith.constant 0 : i32
    %c0_i32_0 = arith.constant 0 : i32
    return %c0_i32, %arg1 : i32, i32
  }
  func.func @transform_3(%arg0: i32, %arg1: i32) -> (i32, i32) {
    %c0_i32 = arith.constant 0 : i32
    %c0_i32_0 = arith.constant 0 : i32
    return %arg1, %c0_i32 : i32, i32
  }
  func.func @transform_4(%arg0: i32, %arg1: i32) -> (i32, i32) {
    %c0_i32 = arith.constant 0 : i32
    %c0_i32_0 = arith.constant 0 : i32
    %c0_i32_1 = arith.constant 0 : i32
    return %c0_i32, %c0_i32_0 : i32, i32
  }
  func.func @transform_5(%arg0: i32, %arg1: i32) -> (i32, i32) {
    %c0_i32 = arith.constant 0 : i32
    %c0_i32_0 = arith.constant 0 : i32
    return %arg0, %c0_i32 : i32, i32
  }
}

module attributes {stable_mosaic.version = 11 : i64} {
  func.func @_human_agg_kernel(%arg0: i32, %arg1: memref<6x32xf32, #tpu.memory_space<vmem>>, %arg2: memref<6x4x32xf32, #tpu.memory_space<vmem>>, %arg3: memref<6x4xf32, #tpu.memory_space<vmem>>, %arg4: memref<6x32xf32, #tpu.memory_space<vmem>>) attributes {dimension_semantics = [#tpu.dimension_semantics<parallel>], iteration_bounds = array<i64: 1>, scalar_prefetch = 0 : i64, scratch_operands = 0 : i64, tpu.core_type = #tpu.core_type<tc>, window_params = [{transform_indices = @transform_0, window_bounds = array<i64: 6, 32>}, {transform_indices = @transform_1, window_bounds = array<i64: 6, 4, 32>}, {transform_indices = @transform_2, window_bounds = array<i64: 6, 4>}, {transform_indices = @transform_3, window_bounds = array<i64: 6, 32>}]} {
    %c0 = arith.constant 0 : index
    %c0_0 = arith.constant 0 : index
    %c0_1 = arith.constant 0 : index
    %0 = vector.load %arg2[%c0, %c0_0, %c0_1] : memref<6x4x32xf32, #tpu.memory_space<vmem>>, vector<6x4x32xf32>
    %c0_2 = arith.constant 0 : index
    %c0_3 = arith.constant 0 : index
    %1 = vector.load %arg3[%c0_2, %c0_3] : memref<6x4xf32, #tpu.memory_space<vmem>>, vector<6x4xf32>
    %c0_4 = arith.constant 0 : index
    %c0_5 = arith.constant 0 : index
    %2 = vector.load %arg1[%c0_4, %c0_5] : memref<6x32xf32, #tpu.memory_space<vmem>>, vector<6x32xf32>
    %3 = vector.shape_cast %1 : vector<6x4xf32> to vector<6x4x1xf32>
    %4 = vector.broadcast %3 : vector<6x4x1xf32> to vector<6x4x32xf32>
    %5 = arith.mulf %0, %4 : vector<6x4x32xf32>
    %cst = arith.constant dense<0.000000e+00> : vector<6x32xf32>
    %6 = vector.multi_reduction <add>, %5, %cst [1] : vector<6x4x32xf32> to vector<6x32xf32>
    %7 = arith.addf %2, %6 : vector<6x32xf32>
    %cst_6 = arith.constant dense<0.000000e+00> : vector<6xf32>
    %8 = vector.multi_reduction <add>, %1, %cst_6 [1] : vector<6x4xf32> to vector<6xf32>
    %9 = vector.shape_cast %8 : vector<6xf32> to vector<6x1xf32>
    %cst_7 = arith.constant 1.000000e+00 : f32
    %10 = vector.broadcast %cst_7 : f32 to vector<6x1xf32>
    %11 = arith.addf %9, %10 : vector<6x1xf32>
    %12 = tpu.reciprocal %11 : vector<6x1xf32> -> vector<6x1xf32>
    %13 = vector.broadcast %12 : vector<6x1xf32> to vector<6x32xf32>
    %14 = arith.mulf %7, %13 : vector<6x32xf32>
    %c0_8 = arith.constant 0 : index
    %c0_9 = arith.constant 0 : index
    %15 = vector.load %arg4[%c0_8, %c0_9] : memref<6x32xf32, #tpu.memory_space<vmem>>, vector<6x32xf32>
    tpu.vector_store %arg4[%c0_8, %c0_9], %14 {strides = array<i32>} : memref<6x32xf32, #tpu.memory_space<vmem>>, vector<6x32xf32>,
    return
  }
  func.func @transform_0(%arg0: i32) -> (i32, i32) {
    %c0_i32 = arith.constant 0 : i32
    %c0_i32_0 = arith.constant 0 : i32
    return %arg0, %c0_i32 : i32, i32
  }
  func.func @transform_1(%arg0: i32) -> (i32, i32, i32) {
    %c0_i32 = arith.constant 0 : i32
    %c0_i32_0 = arith.constant 0 : i32
    %c0_i32_1 = arith.constant 0 : i32
    return %arg0, %c0_i32, %c0_i32_0 : i32, i32, i32
  }
  func.func @transform_2(%arg0: i32) -> (i32, i32) {
    %c0_i32 = arith.constant 0 : i32
    %c0_i32_0 = arith.constant 0 : i32
    return %arg0, %c0_i32 : i32, i32
  }
  func.func @transform_3(%arg0: i32) -> (i32, i32) {
    %c0_i32 = arith.constant 0 : i32
    %c0_i32_0 = arith.constant 0 : i32
    return %arg0, %c0_i32 : i32, i32
  }
}

module attributes {stable_mosaic.version = 11 : i64} {
  func.func @_linear_kernel(%arg0: i32, %arg1: i32, %arg2: memref<16x32xf32, #tpu.memory_space<vmem>>, %arg3: memref<32x32xf32, #tpu.memory_space<vmem>>, %arg4: memref<1x32xf32, #tpu.memory_space<vmem>>, %arg5: memref<16x32xf32, #tpu.memory_space<vmem>>) attributes {dimension_semantics = [#tpu.dimension_semantics<parallel>, #tpu.dimension_semantics<parallel>], iteration_bounds = array<i64: 1, 1>, scalar_prefetch = 0 : i64, scratch_operands = 0 : i64, tpu.core_type = #tpu.core_type<tc>, window_params = [{transform_indices = @transform_0, window_bounds = array<i64: 16, 32>}, {transform_indices = @transform_1, window_bounds = array<i64: 32, 32>}, {transform_indices = @transform_2, window_bounds = array<i64: 1, 32>}, {transform_indices = @transform_3, window_bounds = array<i64: 16, 32>}]} {
    %c0 = arith.constant 0 : index
    %c0_0 = arith.constant 0 : index
    %0 = vector.load %arg2[%c0, %c0_0] : memref<16x32xf32, #tpu.memory_space<vmem>>, vector<16x32xf32>
    %c0_1 = arith.constant 0 : index
    %c0_2 = arith.constant 0 : index
    %1 = vector.load %arg3[%c0_1, %c0_2] : memref<32x32xf32, #tpu.memory_space<vmem>>, vector<32x32xf32>
    %cst = arith.constant dense<0.000000e+00> : vector<16x32xf32>
    %2 = tpu.matmul %0, %1, %cst {dimension_numbers = #tpu.dot_dimension_numbers<[1], [0], [0], [1], [0, 0, 1, 1], [], []>} : vector<16x32xf32>, vector<32x32xf32>, vector<16x32xf32> -> vector<16x32xf32>
    %c0_3 = arith.constant 0 : index
    %c0_4 = arith.constant 0 : index
    %3 = vector.load %arg4[%c0_3, %c0_4] : memref<1x32xf32, #tpu.memory_space<vmem>>, vector<1x32xf32>
    %4 = vector.broadcast %3 : vector<1x32xf32> to vector<16x32xf32>
    %5 = arith.addf %2, %4 : vector<16x32xf32>
    %c0_5 = arith.constant 0 : index
    %c0_6 = arith.constant 0 : index
    %6 = vector.load %arg5[%c0_5, %c0_6] : memref<16x32xf32, #tpu.memory_space<vmem>>, vector<16x32xf32>
    tpu.vector_store %arg5[%c0_5, %c0_6], %5 {strides = array<i32>} : memref<16x32xf32, #tpu.memory_space<vmem>>, vector<16x32xf32>,
    return
  }
  func.func @transform_0(%arg0: i32, %arg1: i32) -> (i32, i32) {
    %c0_i32 = arith.constant 0 : i32
    %c0_i32_0 = arith.constant 0 : i32
    return %arg0, %c0_i32 : i32, i32
  }
  func.func @transform_1(%arg0: i32, %arg1: i32) -> (i32, i32) {
    %c0_i32 = arith.constant 0 : i32
    %c0_i32_0 = arith.constant 0 : i32
    return %c0_i32, %arg1 : i32, i32
  }
  func.func @transform_2(%arg0: i32, %arg1: i32) -> (i32, i32) {
    %c0_i32 = arith.constant 0 : i32
    %c0_i32_0 = arith.constant 0 : i32
    return %c0_i32, %arg1 : i32, i32
  }
  func.func @transform_3(%arg0: i32, %arg1: i32) -> (i32, i32) {
    %c0_i32 = arith.constant 0 : i32
    return %arg0, %arg1 : i32, i32
  }
}

module attributes {stable_mosaic.version = 11 : i64} {
  func.func @_linear_kernel(%arg0: i32, %arg1: i32, %arg2: memref<16x64xf32, #tpu.memory_space<vmem>>, %arg3: memref<64x32xf32, #tpu.memory_space<vmem>>, %arg4: memref<1x32xf32, #tpu.memory_space<vmem>>, %arg5: memref<16x32xf32, #tpu.memory_space<vmem>>) attributes {dimension_semantics = [#tpu.dimension_semantics<parallel>, #tpu.dimension_semantics<parallel>], iteration_bounds = array<i64: 1, 1>, scalar_prefetch = 0 : i64, scratch_operands = 0 : i64, tpu.core_type = #tpu.core_type<tc>, window_params = [{transform_indices = @transform_0, window_bounds = array<i64: 16, 64>}, {transform_indices = @transform_1, window_bounds = array<i64: 64, 32>}, {transform_indices = @transform_2, window_bounds = array<i64: 1, 32>}, {transform_indices = @transform_3, window_bounds = array<i64: 16, 32>}]} {
    %c0 = arith.constant 0 : index
    %c0_0 = arith.constant 0 : index
    %0 = vector.load %arg2[%c0, %c0_0] : memref<16x64xf32, #tpu.memory_space<vmem>>, vector<16x64xf32>
    %c0_1 = arith.constant 0 : index
    %c0_2 = arith.constant 0 : index
    %1 = vector.load %arg3[%c0_1, %c0_2] : memref<64x32xf32, #tpu.memory_space<vmem>>, vector<64x32xf32>
    %cst = arith.constant dense<0.000000e+00> : vector<16x32xf32>
    %2 = tpu.matmul %0, %1, %cst {dimension_numbers = #tpu.dot_dimension_numbers<[1], [0], [0], [1], [0, 0, 1, 1], [], []>} : vector<16x64xf32>, vector<64x32xf32>, vector<16x32xf32> -> vector<16x32xf32>
    %c0_3 = arith.constant 0 : index
    %c0_4 = arith.constant 0 : index
    %3 = vector.load %arg4[%c0_3, %c0_4] : memref<1x32xf32, #tpu.memory_space<vmem>>, vector<1x32xf32>
    %4 = vector.broadcast %3 : vector<1x32xf32> to vector<16x32xf32>
    %5 = arith.addf %2, %4 : vector<16x32xf32>
    %cst_5 = arith.constant 0.000000e+00 : f32
    %6 = vector.broadcast %cst_5 : f32 to vector<16x32xf32>
    %7 = arith.maximumf %5, %6 : vector<16x32xf32>
    %c0_6 = arith.constant 0 : index
    %c0_7 = arith.constant 0 : index
    %8 = vector.load %arg5[%c0_6, %c0_7] : memref<16x32xf32, #tpu.memory_space<vmem>>, vector<16x32xf32>
    tpu.vector_store %arg5[%c0_6, %c0_7], %7 {strides = array<i32>} : memref<16x32xf32, #tpu.memory_space<vmem>>, vector<16x32xf32>,
    return
  }
  func.func @transform_0(%arg0: i32, %arg1: i32) -> (i32, i32) {
    %c0_i32 = arith.constant 0 : i32
    %c0_i32_0 = arith.constant 0 : i32
    return %arg0, %c0_i32 : i32, i32
  }
  func.func @transform_1(%arg0: i32, %arg1: i32) -> (i32, i32) {
    %c0_i32 = arith.constant 0 : i32
    %c0_i32_0 = arith.constant 0 : i32
    return %c0_i32, %arg1 : i32, i32
  }
  func.func @transform_2(%arg0: i32, %arg1: i32) -> (i32, i32) {
    %c0_i32 = arith.constant 0 : i32
    %c0_i32_0 = arith.constant 0 : i32
    return %c0_i32, %arg1 : i32, i32
  }
  func.func @transform_3(%arg0: i32, %arg1: i32) -> (i32, i32) {
    %c0_i32 = arith.constant 0 : i32
    return %arg0, %arg1 : i32, i32
  }
}

module attributes {stable_mosaic.version = 11 : i64} {
  func.func @_attention_kernel(%arg0: i32, %arg1: memref<1x3x32xf32, #tpu.memory_space<vmem>>, %arg2: memref<1x8x32xf32, #tpu.memory_space<vmem>>, %arg3: memref<1x8x32xf32, #tpu.memory_space<vmem>>, %arg4: memref<1x1x8xf32, #tpu.memory_space<vmem>>, %arg5: memref<32x32xf32, #tpu.memory_space<vmem>>, %arg6: memref<1x32xf32, #tpu.memory_space<vmem>>, %arg7: memref<1x32xf32, #tpu.memory_space<vmem>>, %arg8: memref<1x1xf32, #tpu.memory_space<vmem>>, %arg9: memref<1x3x32xf32, #tpu.memory_space<vmem>>, %arg10: memref<1x3x8xf32, #tpu.memory_space<vmem>>) attributes {dimension_semantics = [#tpu.dimension_semantics<parallel>], iteration_bounds = array<i64: 2>, scalar_prefetch = 0 : i64, scratch_operands = 0 : i64, tpu.core_type = #tpu.core_type<tc>, window_params = [{transform_indices = @transform_0, window_bounds = array<i64: 1, 3, 32>}, {transform_indices = @transform_1, window_bounds = array<i64: 1, 8, 32>}, {transform_indices = @transform_2, window_bounds = array<i64: 1, 8, 32>}, {transform_indices = @transform_3, window_bounds = array<i64: 1, 1, 8>}, {pipeline_mode = #tpu.pipeline_mode<synchronous>, transform_indices = @transform_4, window_bounds = array<i64: 32, 32>}, {pipeline_mode = #tpu.pipeline_mode<synchronous>, transform_indices = @transform_5, window_bounds = array<i64: 1, 32>}, {pipeline_mode = #tpu.pipeline_mode<synchronous>, transform_indices = @transform_6, window_bounds = array<i64: 1, 32>}, {pipeline_mode = #tpu.pipeline_mode<synchronous>, transform_indices = @transform_7, window_bounds = array<i64: 1, 1>}, {transform_indices = @transform_8, window_bounds = array<i64: 1, 3, 32>}, {transform_indices = @transform_9, window_bounds = array<i64: 1, 3, 8>}]} {
    %c0 = arith.constant 0 : index
    %c0_0 = arith.constant 0 : index
    %c0_1 = arith.constant 0 : index
    %0 = vector.load %arg1[%c0, %c0_0, %c0_1] : memref<1x3x32xf32, #tpu.memory_space<vmem>>, vector<1x3x32xf32>
    %1 = vector.shape_cast %0 : vector<1x3x32xf32> to vector<3x32xf32>
    %c0_2 = arith.constant 0 : index
    %c0_3 = arith.constant 0 : index
    %2 = vector.load %arg5[%c0_2, %c0_3] : memref<32x32xf32, #tpu.memory_space<vmem>>, vector<32x32xf32>
    %cst = arith.constant dense<0.000000e+00> : vector<3x32xf32>
    %3 = tpu.matmul %1, %2, %cst {dimension_numbers = #tpu.dot_dimension_numbers<[1], [0], [0], [1], [0, 0, 1, 1], [], []>} : vector<3x32xf32>, vector<32x32xf32>, vector<3x32xf32> -> vector<3x32xf32>
    %c0_4 = arith.constant 0 : index
    %c0_5 = arith.constant 0 : index
    %4 = vector.load %arg6[%c0_4, %c0_5] : memref<1x32xf32, #tpu.memory_space<vmem>>, vector<1x32xf32>
    %5 = vector.broadcast %4 : vector<1x32xf32> to vector<3x32xf32>
    %6 = arith.addf %3, %5 : vector<3x32xf32>
    %c0_6 = arith.constant 0 : index
    %c0_7 = arith.constant 0 : index
    %c0_8 = arith.constant 0 : index
    %7 = vector.load %arg2[%c0_6, %c0_7, %c0_8] : memref<1x8x32xf32, #tpu.memory_space<vmem>>, vector<1x8x32xf32>
    %8 = vector.shape_cast %7 : vector<1x8x32xf32> to vector<8x32xf32>
    %9 = vector.shape_cast %8 : vector<8x32xf32> to vector<1x8x32xf32>
    %10 = vector.shape_cast %6 : vector<3x32xf32> to vector<3x1x32xf32>
    %11 = vector.broadcast %9 : vector<1x8x32xf32> to vector<3x8x32xf32>
    %12 = vector.broadcast %10 : vector<3x1x32xf32> to vector<3x8x32xf32>
    %13 = arith.addf %11, %12 : vector<3x8x32xf32>
    %14 = math.tanh %13 : vector<3x8x32xf32>
    %c0_9 = arith.constant 0 : index
    %c0_10 = arith.constant 0 : index
    %15 = vector.load %arg7[%c0_9, %c0_10] : memref<1x32xf32, #tpu.memory_space<vmem>>, vector<1x32xf32>
    %16 = vector.shape_cast %15 : vector<1x32xf32> to vector<1x1x32xf32>
    %17 = vector.broadcast %16 : vector<1x1x32xf32> to vector<3x8x32xf32>
    %18 = arith.mulf %14, %17 : vector<3x8x32xf32>
    %cst_11 = arith.constant dense<0.000000e+00> : vector<3x8xf32>
    %19 = vector.multi_reduction <add>, %18, %cst_11 [2] : vector<3x8x32xf32> to vector<3x8xf32>
    %c0_12 = arith.constant 0 : index
    %c0_13 = arith.constant 0 : index
    %20 = vector.load %arg8[%c0_12, %c0_13] : memref<1x1xf32, #tpu.memory_space<vmem>>, vector<1x1xf32>
    %21 = vector.broadcast %20 : vector<1x1xf32> to vector<3x8xf32>
    %22 = arith.addf %19, %21 : vector<3x8xf32>
    %cst_14 = arith.constant dense<0xFF800000> : vector<3xf32>
    %23 = vector.multi_reduction <maximumf>, %22, %cst_14 [1] : vector<3x8xf32> to vector<3xf32>
    %24 = vector.shape_cast %23 : vector<3xf32> to vector<3x1xf32>
    %25 = vector.broadcast %24 : vector<3x1xf32> to vector<3x8xf32>
    %26 = arith.subf %22, %25 : vector<3x8xf32>
    %27 = math.exp %26 : vector<3x8xf32>
    %cst_15 = arith.constant dense<0.000000e+00> : vector<3xf32>
    %28 = vector.multi_reduction <add>, %27, %cst_15 [1] : vector<3x8xf32> to vector<3xf32>
    %29 = vector.shape_cast %28 : vector<3xf32> to vector<3x1xf32>
    %c0_16 = arith.constant 0 : index
    %c0_17 = arith.constant 0 : index
    %c0_18 = arith.constant 0 : index
    %30 = vector.load %arg4[%c0_16, %c0_17, %c0_18] : memref<1x1x8xf32, #tpu.memory_space<vmem>>, vector<1x1x8xf32>
    %31 = vector.shape_cast %30 : vector<1x1x8xf32> to vector<1x8xf32>
    %32 = vector.broadcast %31 : vector<1x8xf32> to vector<3x8xf32>
    %33 = arith.mulf %27, %32 : vector<3x8xf32>
    %cst_19 = arith.constant dense<0.000000e+00> : vector<3xf32>
    %34 = vector.multi_reduction <add>, %33, %cst_19 [1] : vector<3x8xf32> to vector<3xf32>
    %35 = vector.shape_cast %34 : vector<3xf32> to vector<3x1xf32>
    %cst_20 = arith.constant 1.000000e-10 : f32
    %36 = vector.broadcast %cst_20 : f32 to vector<3x1xf32>
    %37 = arith.mulf %36, %29 : vector<3x1xf32>
    %38 = arith.addf %35, %37 : vector<3x1xf32>
    %39 = tpu.reciprocal %38 : vector<3x1xf32> -> vector<3x1xf32>
    %40 = vector.broadcast %39 : vector<3x1xf32> to vector<3x8xf32>
    %41 = arith.mulf %33, %40 : vector<3x8xf32>
    %c0_21 = arith.constant 0 : index
    %c0_22 = arith.constant 0 : index
    %c0_23 = arith.constant 0 : index
    %42 = vector.load %arg3[%c0_21, %c0_22, %c0_23] : memref<1x8x32xf32, #tpu.memory_space<vmem>>, vector<1x8x32xf32>
    %43 = vector.shape_cast %42 : vector<1x8x32xf32> to vector<8x32xf32>
    %cst_24 = arith.constant dense<0.000000e+00> : vector<3x32xf32>
    %44 = tpu.matmul %41, %43, %cst_24 {dimension_numbers = #tpu.dot_dimension_numbers<[1], [0], [0], [1], [0, 0, 1, 1], [], []>} : vector<3x8xf32>, vector<8x32xf32>, vector<3x32xf32> -> vector<3x32xf32>
    %c0_25 = arith.constant 0 : index
    %c0_26 = arith.constant 0 : index
    %c0_27 = arith.constant 0 : index
    %45 = vector.load %arg9[%c0_25, %c0_26, %c0_27] : memref<1x3x32xf32, #tpu.memory_space<vmem>>, vector<1x3x32xf32>
    %46 = vector.shape_cast %45 : vector<1x3x32xf32> to vector<3x32xf32>
    %47 = vector.shape_cast %44 : vector<3x32xf32> to vector<1x3x32xf32>
    tpu.vector_store %arg9[%c0_25, %c0_26, %c0_27], %47 {strides = array<i32>} : memref<1x3x32xf32, #tpu.memory_space<vmem>>, vector<1x3x32xf32>,
    %c0_28 = arith.constant 0 : index
    %c0_29 = arith.constant 0 : index
    %c0_30 = arith.constant 0 : index
    %48 = vector.load %arg10[%c0_28, %c0_29, %c0_30] : memref<1x3x8xf32, #tpu.memory_space<vmem>>, vector<1x3x8xf32>
    %49 = vector.shape_cast %48 : vector<1x3x8xf32> to vector<3x8xf32>
    %50 = vector.shape_cast %41 : vector<3x8xf32> to vector<1x3x8xf32>
    tpu.vector_store %arg10[%c0_28, %c0_29, %c0_30], %50 {strides = array<i32>} : memref<1x3x8xf32, #tpu.memory_space<vmem>>, vector<1x3x8xf32>,
    return
  }
  func.func @transform_0(%arg0: i32) -> (i32, i32, i32) {
    %c0_i32 = arith.constant 0 : i32
    %c0_i32_0 = arith.constant 0 : i32
    %c0_i32_1 = arith.constant 0 : i32
    return %arg0, %c0_i32, %c0_i32_0 : i32, i32, i32
  }
  func.func @transform_1(%arg0: i32) -> (i32, i32, i32) {
    %c0_i32 = arith.constant 0 : i32
    %c0_i32_0 = arith.constant 0 : i32
    %c0_i32_1 = arith.constant 0 : i32
    return %arg0, %c0_i32, %c0_i32_0 : i32, i32, i32
  }
  func.func @transform_2(%arg0: i32) -> (i32, i32, i32) {
    %c0_i32 = arith.constant 0 : i32
    %c0_i32_0 = arith.constant 0 : i32
    %c0_i32_1 = arith.constant 0 : i32
    return %arg0, %c0_i32, %c0_i32_0 : i32, i32, i32
  }
  func.func @transform_3(%arg0: i32) -> (i32, i32, i32) {
    %c0_i32 = arith.constant 0 : i32
    %c0_i32_0 = arith.constant 0 : i32
    %c0_i32_1 = arith.constant 0 : i32
    return %arg0, %c0_i32, %c0_i32_0 : i32, i32, i32
  }
  func.func @transform_4(%arg0: i32) -> (i32, i32) {
    %c0_i32 = arith.constant 0 : i32
    %c0_i32_0 = arith.constant 0 : i32
    %c0_i32_1 = arith.constant 0 : i32
    return %c0_i32, %c0_i32_0 : i32, i32
  }
  func.func @transform_5(%arg0: i32) -> (i32, i32) {
    %c0_i32 = arith.constant 0 : i32
    %c0_i32_0 = arith.constant 0 : i32
    %c0_i32_1 = arith.constant 0 : i32
    return %c0_i32, %c0_i32_0 : i32, i32
  }
  func.func @transform_6(%arg0: i32) -> (i32, i32) {
    %c0_i32 = arith.constant 0 : i32
    %c0_i32_0 = arith.constant 0 : i32
    %c0_i32_1 = arith.constant 0 : i32
    return %c0_i32, %c0_i32_0 : i32, i32
  }
  func.func @transform_7(%arg0: i32) -> (i32, i32) {
    %c0_i32 = arith.constant 0 : i32
    %c0_i32_0 = arith.constant 0 : i32
    %c0_i32_1 = arith.constant 0 : i32
    return %c0_i32, %c0_i32_0 : i32, i32
  }
  func.func @transform_8(%arg0: i32) -> (i32, i32, i32) {
    %c0_i32 = arith.constant 0 : i32
    %c0_i32_0 = arith.constant 0 : i32
    %c0_i32_1 = arith.constant 0 : i32
    return %arg0, %c0_i32, %c0_i32_0 : i32, i32, i32
  }
  func.func @transform_9(%arg0: i32) -> (i32, i32, i32) {
    %c0_i32 = arith.constant 0 : i32
    %c0_i32_0 = arith.constant 0 : i32
    %c0_i32_1 = arith.constant 0 : i32
    return %arg0, %c0_i32, %c0_i32_0 : i32, i32, i32
  }
}

module attributes {stable_mosaic.version = 11 : i64} {
  func.func @_attention_kernel(%arg0: i32, %arg1: memref<1x3x64xf32, #tpu.memory_space<vmem>>, %arg2: memref<1x8x32xf32, #tpu.memory_space<vmem>>, %arg3: memref<1x8x32xf32, #tpu.memory_space<vmem>>, %arg4: memref<1x1x8xf32, #tpu.memory_space<vmem>>, %arg5: memref<64x32xf32, #tpu.memory_space<vmem>>, %arg6: memref<1x32xf32, #tpu.memory_space<vmem>>, %arg7: memref<1x32xf32, #tpu.memory_space<vmem>>, %arg8: memref<1x1xf32, #tpu.memory_space<vmem>>, %arg9: memref<1x3x32xf32, #tpu.memory_space<vmem>>, %arg10: memref<1x3x8xf32, #tpu.memory_space<vmem>>) attributes {dimension_semantics = [#tpu.dimension_semantics<parallel>], iteration_bounds = array<i64: 2>, scalar_prefetch = 0 : i64, scratch_operands = 0 : i64, tpu.core_type = #tpu.core_type<tc>, window_params = [{transform_indices = @transform_0, window_bounds = array<i64: 1, 3, 64>}, {transform_indices = @transform_1, window_bounds = array<i64: 1, 8, 32>}, {transform_indices = @transform_2, window_bounds = array<i64: 1, 8, 32>}, {transform_indices = @transform_3, window_bounds = array<i64: 1, 1, 8>}, {pipeline_mode = #tpu.pipeline_mode<synchronous>, transform_indices = @transform_4, window_bounds = array<i64: 64, 32>}, {pipeline_mode = #tpu.pipeline_mode<synchronous>, transform_indices = @transform_5, window_bounds = array<i64: 1, 32>}, {pipeline_mode = #tpu.pipeline_mode<synchronous>, transform_indices = @transform_6, window_bounds = array<i64: 1, 32>}, {pipeline_mode = #tpu.pipeline_mode<synchronous>, transform_indices = @transform_7, window_bounds = array<i64: 1, 1>}, {transform_indices = @transform_8, window_bounds = array<i64: 1, 3, 32>}, {transform_indices = @transform_9, window_bounds = array<i64: 1, 3, 8>}]} {
    %c0 = arith.constant 0 : index
    %c0_0 = arith.constant 0 : index
    %c0_1 = arith.constant 0 : index
    %0 = vector.load %arg1[%c0, %c0_0, %c0_1] : memref<1x3x64xf32, #tpu.memory_space<vmem>>, vector<1x3x64xf32>
    %1 = vector.shape_cast %0 : vector<1x3x64xf32> to vector<3x64xf32>
    %c0_2 = arith.constant 0 : index
    %c0_3 = arith.constant 0 : index
    %2 = vector.load %arg5[%c0_2, %c0_3] : memref<64x32xf32, #tpu.memory_space<vmem>>, vector<64x32xf32>
    %cst = arith.constant dense<0.000000e+00> : vector<3x32xf32>
    %3 = tpu.matmul %1, %2, %cst {dimension_numbers = #tpu.dot_dimension_numbers<[1], [0], [0], [1], [0, 0, 1, 1], [], []>} : vector<3x64xf32>, vector<64x32xf32>, vector<3x32xf32> -> vector<3x32xf32>
    %c0_4 = arith.constant 0 : index
    %c0_5 = arith.constant 0 : index
    %4 = vector.load %arg6[%c0_4, %c0_5] : memref<1x32xf32, #tpu.memory_space<vmem>>, vector<1x32xf32>
    %5 = vector.broadcast %4 : vector<1x32xf32> to vector<3x32xf32>
    %6 = arith.addf %3, %5 : vector<3x32xf32>
    %c0_6 = arith.constant 0 : index
    %c0_7 = arith.constant 0 : index
    %c0_8 = arith.constant 0 : index
    %7 = vector.load %arg2[%c0_6, %c0_7, %c0_8] : memref<1x8x32xf32, #tpu.memory_space<vmem>>, vector<1x8x32xf32>
    %8 = vector.shape_cast %7 : vector<1x8x32xf32> to vector<8x32xf32>
    %9 = vector.shape_cast %8 : vector<8x32xf32> to vector<1x8x32xf32>
    %10 = vector.shape_cast %6 : vector<3x32xf32> to vector<3x1x32xf32>
    %11 = vector.broadcast %9 : vector<1x8x32xf32> to vector<3x8x32xf32>
    %12 = vector.broadcast %10 : vector<3x1x32xf32> to vector<3x8x32xf32>
    %13 = arith.addf %11, %12 : vector<3x8x32xf32>
    %14 = math.tanh %13 : vector<3x8x32xf32>
    %c0_9 = arith.constant 0 : index
    %c0_10 = arith.constant 0 : index
    %15 = vector.load %arg7[%c0_9, %c0_10] : memref<1x32xf32, #tpu.memory_space<vmem>>, vector<1x32xf32>
    %16 = vector.shape_cast %15 : vector<1x32xf32> to vector<1x1x32xf32>
    %17 = vector.broadcast %16 : vector<1x1x32xf32> to vector<3x8x32xf32>
    %18 = arith.mulf %14, %17 : vector<3x8x32xf32>
    %cst_11 = arith.constant dense<0.000000e+00> : vector<3x8xf32>
    %19 = vector.multi_reduction <add>, %18, %cst_11 [2] : vector<3x8x32xf32> to vector<3x8xf32>
    %c0_12 = arith.constant 0 : index
    %c0_13 = arith.constant 0 : index
    %20 = vector.load %arg8[%c0_12, %c0_13] : memref<1x1xf32, #tpu.memory_space<vmem>>, vector<1x1xf32>
    %21 = vector.broadcast %20 : vector<1x1xf32> to vector<3x8xf32>
    %22 = arith.addf %19, %21 : vector<3x8xf32>
    %cst_14 = arith.constant dense<0xFF800000> : vector<3xf32>
    %23 = vector.multi_reduction <maximumf>, %22, %cst_14 [1] : vector<3x8xf32> to vector<3xf32>
    %24 = vector.shape_cast %23 : vector<3xf32> to vector<3x1xf32>
    %25 = vector.broadcast %24 : vector<3x1xf32> to vector<3x8xf32>
    %26 = arith.subf %22, %25 : vector<3x8xf32>
    %27 = math.exp %26 : vector<3x8xf32>
    %cst_15 = arith.constant dense<0.000000e+00> : vector<3xf32>
    %28 = vector.multi_reduction <add>, %27, %cst_15 [1] : vector<3x8xf32> to vector<3xf32>
    %29 = vector.shape_cast %28 : vector<3xf32> to vector<3x1xf32>
    %c0_16 = arith.constant 0 : index
    %c0_17 = arith.constant 0 : index
    %c0_18 = arith.constant 0 : index
    %30 = vector.load %arg4[%c0_16, %c0_17, %c0_18] : memref<1x1x8xf32, #tpu.memory_space<vmem>>, vector<1x1x8xf32>
    %31 = vector.shape_cast %30 : vector<1x1x8xf32> to vector<1x8xf32>
    %32 = vector.broadcast %31 : vector<1x8xf32> to vector<3x8xf32>
    %33 = arith.mulf %27, %32 : vector<3x8xf32>
    %cst_19 = arith.constant dense<0.000000e+00> : vector<3xf32>
    %34 = vector.multi_reduction <add>, %33, %cst_19 [1] : vector<3x8xf32> to vector<3xf32>
    %35 = vector.shape_cast %34 : vector<3xf32> to vector<3x1xf32>
    %cst_20 = arith.constant 1.000000e-10 : f32
    %36 = vector.broadcast %cst_20 : f32 to vector<3x1xf32>
    %37 = arith.mulf %36, %29 : vector<3x1xf32>
    %38 = arith.addf %35, %37 : vector<3x1xf32>
    %39 = tpu.reciprocal %38 : vector<3x1xf32> -> vector<3x1xf32>
    %40 = vector.broadcast %39 : vector<3x1xf32> to vector<3x8xf32>
    %41 = arith.mulf %33, %40 : vector<3x8xf32>
    %c0_21 = arith.constant 0 : index
    %c0_22 = arith.constant 0 : index
    %c0_23 = arith.constant 0 : index
    %42 = vector.load %arg3[%c0_21, %c0_22, %c0_23] : memref<1x8x32xf32, #tpu.memory_space<vmem>>, vector<1x8x32xf32>
    %43 = vector.shape_cast %42 : vector<1x8x32xf32> to vector<8x32xf32>
    %cst_24 = arith.constant dense<0.000000e+00> : vector<3x32xf32>
    %44 = tpu.matmul %41, %43, %cst_24 {dimension_numbers = #tpu.dot_dimension_numbers<[1], [0], [0], [1], [0, 0, 1, 1], [], []>} : vector<3x8xf32>, vector<8x32xf32>, vector<3x32xf32> -> vector<3x32xf32>
    %c0_25 = arith.constant 0 : index
    %c0_26 = arith.constant 0 : index
    %c0_27 = arith.constant 0 : index
    %45 = vector.load %arg9[%c0_25, %c0_26, %c0_27] : memref<1x3x32xf32, #tpu.memory_space<vmem>>, vector<1x3x32xf32>
    %46 = vector.shape_cast %45 : vector<1x3x32xf32> to vector<3x32xf32>
    %47 = vector.shape_cast %44 : vector<3x32xf32> to vector<1x3x32xf32>
    tpu.vector_store %arg9[%c0_25, %c0_26, %c0_27], %47 {strides = array<i32>} : memref<1x3x32xf32, #tpu.memory_space<vmem>>, vector<1x3x32xf32>,
    %c0_28 = arith.constant 0 : index
    %c0_29 = arith.constant 0 : index
    %c0_30 = arith.constant 0 : index
    %48 = vector.load %arg10[%c0_28, %c0_29, %c0_30] : memref<1x3x8xf32, #tpu.memory_space<vmem>>, vector<1x3x8xf32>
    %49 = vector.shape_cast %48 : vector<1x3x8xf32> to vector<3x8xf32>
    %50 = vector.shape_cast %41 : vector<3x8xf32> to vector<1x3x8xf32>
    tpu.vector_store %arg10[%c0_28, %c0_29, %c0_30], %50 {strides = array<i32>} : memref<1x3x8xf32, #tpu.memory_space<vmem>>, vector<1x3x8xf32>,
    return
  }
  func.func @transform_0(%arg0: i32) -> (i32, i32, i32) {
    %c0_i32 = arith.constant 0 : i32
    %c0_i32_0 = arith.constant 0 : i32
    %c0_i32_1 = arith.constant 0 : i32
    return %arg0, %c0_i32, %c0_i32_0 : i32, i32, i32
  }
  func.func @transform_1(%arg0: i32) -> (i32, i32, i32) {
    %c0_i32 = arith.constant 0 : i32
    %c0_i32_0 = arith.constant 0 : i32
    %c0_i32_1 = arith.constant 0 : i32
    return %arg0, %c0_i32, %c0_i32_0 : i32, i32, i32
  }
  func.func @transform_2(%arg0: i32) -> (i32, i32, i32) {
    %c0_i32 = arith.constant 0 : i32
    %c0_i32_0 = arith.constant 0 : i32
    %c0_i32_1 = arith.constant 0 : i32
    return %arg0, %c0_i32, %c0_i32_0 : i32, i32, i32
  }
  func.func @transform_3(%arg0: i32) -> (i32, i32, i32) {
    %c0_i32 = arith.constant 0 : i32
    %c0_i32_0 = arith.constant 0 : i32
    %c0_i32_1 = arith.constant 0 : i32
    return %arg0, %c0_i32, %c0_i32_0 : i32, i32, i32
  }
  func.func @transform_4(%arg0: i32) -> (i32, i32) {
    %c0_i32 = arith.constant 0 : i32
    %c0_i32_0 = arith.constant 0 : i32
    %c0_i32_1 = arith.constant 0 : i32
    return %c0_i32, %c0_i32_0 : i32, i32
  }
  func.func @transform_5(%arg0: i32) -> (i32, i32) {
    %c0_i32 = arith.constant 0 : i32
    %c0_i32_0 = arith.constant 0 : i32
    %c0_i32_1 = arith.constant 0 : i32
    return %c0_i32, %c0_i32_0 : i32, i32
  }
  func.func @transform_6(%arg0: i32) -> (i32, i32) {
    %c0_i32 = arith.constant 0 : i32
    %c0_i32_0 = arith.constant 0 : i32
    %c0_i32_1 = arith.constant 0 : i32
    return %c0_i32, %c0_i32_0 : i32, i32
  }
  func.func @transform_7(%arg0: i32) -> (i32, i32) {
    %c0_i32 = arith.constant 0 : i32
    %c0_i32_0 = arith.constant 0 : i32
    %c0_i32_1 = arith.constant 0 : i32
    return %c0_i32, %c0_i32_0 : i32, i32
  }
  func.func @transform_8(%arg0: i32) -> (i32, i32, i32) {
    %c0_i32 = arith.constant 0 : i32
    %c0_i32_0 = arith.constant 0 : i32
    %c0_i32_1 = arith.constant 0 : i32
    return %arg0, %c0_i32, %c0_i32_0 : i32, i32, i32
  }
  func.func @transform_9(%arg0: i32) -> (i32, i32, i32) {
    %c0_i32 = arith.constant 0 : i32
    %c0_i32_0 = arith.constant 0 : i32
    %c0_i32_1 = arith.constant 0 : i32
    return %arg0, %c0_i32, %c0_i32_0 : i32, i32, i32
  }
}

</mosaic_0001>

<llo_original>
// kernel: hcfh_forward.15
$region0: #{hcfh_forward.15}
  #allocation0 [shape = 'u32[]', space=smem, size = 0x4, offset = 0x4, fixed_abs, tag = 'smem constant byte address 0x4 - core index']
  #allocation1 [shape = 'u32[144,128]{1,0:T(1,128)}', space=vmem, size = 0x12000, scoped, tag = 'internal scratch']
  %s0 = inlined_call_operand.vmem [shape: f32[6,32], index: 0, kind: input, shape index: {}]
  %s1 = inlined_call_operand.vmem [shape: f32[32,32], index: 1, kind: input, shape index: {}]
  %s2 = inlined_call_operand.vmem [shape: f32[1,32], index: 2, kind: input, shape index: {}]
  %s3 = inlined_call_operand.vmem [shape: f32[6,32], index: 3, kind: output, shape index: {}]
  %s4 = sld [smem:[#allocation0]]
  $region22: #{hcfh_forward.15} parent=0
    _
  %s6 = ssub.s32 1, %s4
  %s7 = scalar_select 0, %s6, %s4
  // Predicated region
  $region2: #{hcfh_forward.15} parent=0 // pred_check
    _
  $region3: #{hcfh_forward.15} parent=0 // pred_check_branch
    %9 = sbr.rel (0) target = $region5
  $region4: #{hcfh_forward.15} parent=0 // pred_region
    _
  $region5: #{hcfh_forward.15} parent=0 // pred_fallthru
    _
  // Predicated region
  $region6: #{hcfh_forward.15} parent=0 // pred_check
    _
  $region7: #{hcfh_forward.15} parent=0 // pred_check_branch
    %11 = sbr.rel (0) target = $region9
  $region8: #{hcfh_forward.15} parent=0 // pred_region
    _
  $region9: #{hcfh_forward.15} parent=0 // pred_fallthru
    _
  // Predicated region
  $region10: #{hcfh_forward.15} parent=0 // pred_check
    _
  $region11: #{hcfh_forward.15} parent=0 // pred_check_branch
    %13 = sbr.rel (0) target = $region13
  $region12: #{hcfh_forward.15} parent=0 // pred_region
    _
  $region13: #{hcfh_forward.15} parent=0 // pred_fallthru
    _
  %v14 = vld [vmem:[%s0] sm:$0x3f]
  %v15 = vld [vmem:[%s1] sm:$0xff]
  %v16 = vld [vmem:[%s1 + $0x8] sm:$0xff]
  %v17 = vld [vmem:[%s1 + $0x10] sm:$0xff]
  %v18 = vld [vmem:[%s1 + $0x18] sm:$0xff]
  %v19 = vld [vmem:[%s2] sm:$0x1]
  %v21 = vlaneseq
  %v22 = vshrl.u32 %v21, 7
  %v23 = vsub.s32 0, %v22
  %v24 = vrot.slane %v19, %v23
  %vm26 = vcmask 261120
  %v28 = vsel %vm26, %v14, 0
  %30 = vmatprep.subr.mxu0 0.0
  %31 = vmatpush1.msra.mxu0 %v15
  %32 = vmatprep.subr.mxu0 0.0
  %33 = vmatpush1.msra.mxu0 %v16
  %34 = vmatprep.subr.mxu0 0.0
  %35 = vmatpush1.msra.mxu0 %v17
  %36 = vmatprep.subr.mxu0 0.0
  %37 = vmatpush1.msra.mxu0 %v18
  %38 = vmatprep.subr.mxu0 0.0
  %39 = vmatpush1.msra.mxu0 0.0
  %40 = vmatprep.subr.mxu0 0.0
  %41 = vmatpush1.msra.mxu0 0.0
  %42 = vmatprep.subr.mxu0 0.0
  %43 = vmatpush1.msra.mxu0 0.0
  %44 = vmatprep.subr.mxu0 0.0
  %45 = vmatpush1.msra.mxu0 0.0
  %46 = vmatprep.subr.mxu0 0.0
  %47 = vmatpush1.msra.mxu0 0.0
  %48 = vmatprep.subr.mxu0 0.0
  %49 = vmatpush1.msra.mxu0 0.0
  %50 = vmatprep.subr.mxu0 0.0
  %51 = vmatpush1.msra.mxu0 0.0
  %52 = vmatprep.subr.mxu0 0.0
  %53 = vmatpush1.msra.mxu0 0.0
  %54 = vmatprep.subr.mxu0 0.0
  %55 = vmatpush1.msra.mxu0 0.0
  %56 = vmatprep.subr.mxu0 0.0
  %57 = vmatpush1.msra.mxu0 0.0
  %58 = vmatprep.subr.mxu0 0.0
  %59 = vmatpush1.msra.mxu0 0.0
  %60 = vmatprep.subr.mxu0 0.0
  %61 = vmatpush1.msra.mxu0 0.0
  %62 = vmatprep.subr.mxu0 0.0
  %63 = vmatpush1.msra.mxu0 0.0
  %64 = vmatprep.subr.mxu0 0.0
  %65 = vmatpush1.msra.mxu0 0.0
  %66 = vmatprep.subr.mxu0 0.0
  %67 = vmatpush1.msra.mxu0 0.0
  %68 = vmatprep.subr.mxu0 0.0
  %69 = vmatpush1.msra.mxu0 0.0
  %70 = vmatprep.subr.mxu0 0.0
  %71 = vmatpush1.msra.mxu0 0.0
  %72 = vmatprep.subr.mxu0 0.0
  %73 = vmatpush1.msra.mxu0 0.0
  %74 = vmatprep.subr.mxu0 0.0
  %75 = vmatpush1.msra.mxu0 0.0
  %76 = vmatprep.subr.mxu0 0.0
  %77 = vmatpush1.msra.mxu0 0.0
  %78 = vmatprep.subr.mxu0 0.0
  %79 = vmatpush1.msra.mxu0 0.0
  %80 = vmatprep.subr.mxu0 0.0
  %81 = vmatpush1.msra.mxu0 0.0
  %82 = vmatprep.subr.mxu0 0.0
  %83 = vmatpush1.msra.mxu0 0.0
  %84 = vmatprep.subr.mxu0 0.0
  %85 = vmatpush1.msra.mxu0 0.0
  %86 = vmatprep.subr.mxu0 0.0
  %87 = vmatpush1.msra.mxu0 0.0
  %88 = vmatprep.subr.mxu0 0.0
  %89 = vmatpush1.msra.mxu0 0.0
  %90 = vmatprep.subr.mxu0 0.0
  %91 = vmatpush1.msra.mxu0 0.0
  %92 = vmatprep.subr.mxu0 0.0
  %93 = vmatpush1.msra.mxu0 0.0
  %94 = vmatprep.mubr.f32.mxu0 0.0
  %95 = vmatmul.mubr.f32.gmra.mrb[0].mxu0 %v28
  %v96 = vpop.f32.mrb[0].mxu0
  %v97 = vadd.f32 %v24, %v96
  %v98 = vpop.f32.mrb[0].mxu0
  %99 = vdwg.mxu0
  %v100 = vmax.f32 %v97, 0.0
  %vm101 = vcmask 259072
  %102 = vst.msk [vmem:[%s3] sm:$0x3f] %vm101, %v100
  // Predicated region
  $region14: #{hcfh_forward.15} parent=0 // pred_check
    _
  $region15: #{hcfh_forward.15} parent=0 // pred_check_branch
    %104 = sbr.rel (0) target = $region17
  $region16: #{hcfh_forward.15} parent=0 // pred_region
    _
  $region17: #{hcfh_forward.15} parent=0 // pred_fallthru
    _
  // Predicated region
  $region18: #{hcfh_forward.15} parent=0 // pred_check
    _
  $region19: #{hcfh_forward.15} parent=0 // pred_check_branch
    %106 = sbr.rel (0) target = $region21
  $region20: #{hcfh_forward.15} parent=0 // pred_region
    _
  $region21: #{hcfh_forward.15} parent=0 // pred_fallthru
    _

// kernel: hcfh_forward.13
$region0: #{hcfh_forward.13}
  #allocation0 [shape = 'u32[]', space=smem, size = 0x4, offset = 0x4, fixed_abs, tag = 'smem constant byte address 0x4 - core index']
  #allocation1 [shape = 'u32[144,128]{1,0:T(1,128)}', space=vmem, size = 0x12000, scoped, tag = 'internal scratch']
  %s0 = inlined_call_operand.vmem [shape: f32[6,48], index: 0, kind: input, shape index: {}]
  %s1 = inlined_call_operand.vmem [shape: f32[48,32], index: 1, kind: input, shape index: {}]
  %s2 = inlined_call_operand.vmem [shape: f32[1,32], index: 2, kind: input, shape index: {}]
  %s3 = inlined_call_operand.vmem [shape: f32[6,32], index: 3, kind: output, shape index: {}]
  %s4 = sld [smem:[#allocation0]]
  $region22: #{hcfh_forward.13} parent=0
    _
  %s6 = ssub.s32 1, %s4
  %s7 = scalar_select 0, %s6, %s4
  // Predicated region
  $region2: #{hcfh_forward.13} parent=0 // pred_check
    _
  $region3: #{hcfh_forward.13} parent=0 // pred_check_branch
    %9 = sbr.rel (0) target = $region5
  $region4: #{hcfh_forward.13} parent=0 // pred_region
    _
  $region5: #{hcfh_forward.13} parent=0 // pred_fallthru
    _
  // Predicated region
  $region6: #{hcfh_forward.13} parent=0 // pred_check
    _
  $region7: #{hcfh_forward.13} parent=0 // pred_check_branch
    %11 = sbr.rel (0) target = $region9
  $region8: #{hcfh_forward.13} parent=0 // pred_region
    _
  $region9: #{hcfh_forward.13} parent=0 // pred_fallthru
    _
  // Predicated region
  $region10: #{hcfh_forward.13} parent=0 // pred_check
    _
  $region11: #{hcfh_forward.13} parent=0 // pred_check_branch
    %13 = sbr.rel (0) target = $region13
  $region12: #{hcfh_forward.13} parent=0 // pred_region
    _
  $region13: #{hcfh_forward.13} parent=0 // pred_fallthru
    _
  %v14 = vld [vmem:[%s0] sm:$0x3f]
  %v15 = vld [vmem:[%s1] sm:$0xff]
  %v16 = vld [vmem:[%s1 + $0x8] sm:$0xff]
  %v17 = vld [vmem:[%s1 + $0x10] sm:$0xff]
  %v18 = vld [vmem:[%s1 + $0x18] sm:$0xff]
  %v19 = vld [vmem:[%s1 + $0x20] sm:$0xff]
  %v20 = vld [vmem:[%s1 + $0x28] sm:$0xff]
  %v21 = vld [vmem:[%s2] sm:$0x1]
  %v23 = vlaneseq
  %v24 = vshrl.u32 %v23, 7
  %v25 = vsub.s32 0, %v24
  %v26 = vrot.slane %v21, %v25
  %vm28 = vcmask 392192
  %v30 = vsel %vm28, %v14, 0
  %32 = vmatprep.subr.mxu0 0.0
  %33 = vmatpush1.msra.mxu0 %v15
  %34 = vmatprep.subr.mxu0 0.0
  %35 = vmatpush1.msra.mxu0 %v16
  %36 = vmatprep.subr.mxu0 0.0
  %37 = vmatpush1.msra.mxu0 %v17
  %38 = vmatprep.subr.mxu0 0.0
  %39 = vmatpush1.msra.mxu0 %v18
  %40 = vmatprep.subr.mxu0 0.0
  %41 = vmatpush1.msra.mxu0 %v19
  %42 = vmatprep.subr.mxu0 0.0
  %43 = vmatpush1.msra.mxu0 %v20
  %44 = vmatprep.subr.mxu0 0.0
  %45 = vmatpush1.msra.mxu0 0.0
  %46 = vmatprep.subr.mxu0 0.0
  %47 = vmatpush1.msra.mxu0 0.0
  %48 = vmatprep.subr.mxu0 0.0
  %49 = vmatpush1.msra.mxu0 0.0
  %50 = vmatprep.subr.mxu0 0.0
  %51 = vmatpush1.msra.mxu0 0.0
  %52 = vmatprep.subr.mxu0 0.0
  %53 = vmatpush1.msra.mxu0 0.0
  %54 = vmatprep.subr.mxu0 0.0
  %55 = vmatpush1.msra.mxu0 0.0
  %56 = vmatprep.subr.mxu0 0.0
  %57 = vmatpush1.msra.mxu0 0.0
  %58 = vmatprep.subr.mxu0 0.0
  %59 = vmatpush1.msra.mxu0 0.0
  %60 = vmatprep.subr.mxu0 0.0
  %61 = vmatpush1.msra.mxu0 0.0
  %62 = vmatprep.subr.mxu0 0.0
  %63 = vmatpush1.msra.mxu0 0.0
  %64 = vmatprep.subr.mxu0 0.0
  %65 = vmatpush1.msra.mxu0 0.0
  %66 = vmatprep.subr.mxu0 0.0
  %67 = vmatpush1.msra.mxu0 0.0
  %68 = vmatprep.subr.mxu0 0.0
  %69 = vmatpush1.msra.mxu0 0.0
  %70 = vmatprep.subr.mxu0 0.0
  %71 = vmatpush1.msra.mxu0 0.0
  %72 = vmatprep.subr.mxu0 0.0
  %73 = vmatpush1.msra.mxu0 0.0
  %74 = vmatprep.subr.mxu0 0.0
  %75 = vmatpush1.msra.mxu0 0.0
  %76 = vmatprep.subr.mxu0 0.0
  %77 = vmatpush1.msra.mxu0 0.0
  %78 = vmatprep.subr.mxu0 0.0
  %79 = vmatpush1.msra.mxu0 0.0
  %80 = vmatprep.subr.mxu0 0.0
  %81 = vmatpush1.msra.mxu0 0.0
  %82 = vmatprep.subr.mxu0 0.0
  %83 = vmatpush1.msra.mxu0 0.0
  %84 = vmatprep.subr.mxu0 0.0
  %85 = vmatpush1.msra.mxu0 0.0
  %86 = vmatprep.subr.mxu0 0.0
  %87 = vmatpush1.msra.mxu0 0.0
  %88 = vmatprep.subr.mxu0 0.0
  %89 = vmatpush1.msra.mxu0 0.0
  %90 = vmatprep.subr.mxu0 0.0
  %91 = vmatpush1.msra.mxu0 0.0
  %92 = vmatprep.subr.mxu0 0.0
  %93 = vmatpush1.msra.mxu0 0.0
  %94 = vmatprep.subr.mxu0 0.0
  %95 = vmatpush1.msra.mxu0 0.0
  %96 = vmatprep.mubr.f32.mxu0 0.0
  %97 = vmatmul.mubr.f32.gmra.mrb[0].mxu0 %v30
  %v98 = vpop.f32.mrb[0].mxu0
  %v99 = vadd.f32 %v26, %v98
  %v100 = vpop.f32.mrb[0].mxu0
  %101 = vdwg.mxu0
  %v102 = vmax.f32 %v99, 0.0
  %vm103 = vcmask 259072
  %104 = vst.msk [vmem:[%s3] sm:$0x3f] %vm103, %v102
  // Predicated region
  $region14: #{hcfh_forward.13} parent=0 // pred_check
    _
  $region15: #{hcfh_forward.13} parent=0 // pred_check_branch
    %106 = sbr.rel (0) target = $region17
  $region16: #{hcfh_forward.13} parent=0 // pred_region
    _
  $region17: #{hcfh_forward.13} parent=0 // pred_fallthru
    _
  // Predicated region
  $region18: #{hcfh_forward.13} parent=0 // pred_check
    _
  $region19: #{hcfh_forward.13} parent=0 // pred_check_branch
    %108 = sbr.rel (0) target = $region21
  $region20: #{hcfh_forward.13} parent=0 // pred_region
    _
  $region21: #{hcfh_forward.13} parent=0 // pred_fallthru
    _

// kernel: hcfh_forward.11
$region0: #{hcfh_forward.11}
  #allocation0 [shape = 'u32[]', space=smem, size = 0x4, offset = 0x4, fixed_abs, tag = 'smem constant byte address 0x4 - core index']
  #allocation1 [shape = 'u32[144,128]{1,0:T(1,128)}', space=vmem, size = 0x12000, scoped, tag = 'internal scratch']
  %s0 = inlined_call_operand.vmem [shape: f32[2,64], index: 0, kind: input, shape index: {}]
  %s1 = inlined_call_operand.vmem [shape: f32[64,32], index: 1, kind: input, shape index: {}]
  %s2 = inlined_call_operand.vmem [shape: f32[1,32], index: 2, kind: input, shape index: {}]
  %s3 = inlined_call_operand.vmem [shape: f32[2,32], index: 3, kind: output, shape index: {}]
  %s4 = sld [smem:[#allocation0]]
  $region22: #{hcfh_forward.11} parent=0
    _
  %s6 = ssub.s32 1, %s4
  %s7 = scalar_select 0, %s6, %s4
  // Predicated region
  $region2: #{hcfh_forward.11} parent=0 // pred_check
    _
  $region3: #{hcfh_forward.11} parent=0 // pred_check_branch
    %9 = sbr.rel (0) target = $region5
  $region4: #{hcfh_forward.11} parent=0 // pred_region
    _
  $region5: #{hcfh_forward.11} parent=0 // pred_fallthru
    _
  // Predicated region
  $region6: #{hcfh_forward.11} parent=0 // pred_check
    _
  $region7: #{hcfh_forward.11} parent=0 // pred_check_branch
    %11 = sbr.rel (0) target = $region9
  $region8: #{hcfh_forward.11} parent=0 // pred_region
    _
  $region9: #{hcfh_forward.11} parent=0 // pred_fallthru
    _
  // Predicated region
  $region10: #{hcfh_forward.11} parent=0 // pred_check
    _
  $region11: #{hcfh_forward.11} parent=0 // pred_check_branch
    %13 = sbr.rel (0) target = $region13
  $region12: #{hcfh_forward.11} parent=0 // pred_region
    _
  $region13: #{hcfh_forward.11} parent=0 // pred_fallthru
    _
  %v14 = vld [vmem:[%s0] sm:$0x3]
  %v15 = vld [vmem:[%s1] sm:$0xff]
  %v16 = vld [vmem:[%s1 + $0x8] sm:$0xff]
  %v17 = vld [vmem:[%s1 + $0x10] sm:$0xff]
  %v18 = vld [vmem:[%s1 + $0x18] sm:$0xff]
  %v19 = vld [vmem:[%s1 + $0x20] sm:$0xff]
  %v20 = vld [vmem:[%s1 + $0x28] sm:$0xff]
  %v21 = vld [vmem:[%s1 + $0x30] sm:$0xff]
  %v22 = vld [vmem:[%s1 + $0x38] sm:$0xff]
  %v23 = vld [vmem:[%s2] sm:$0x1]
  %v25 = vlaneseq
  %v26 = vshrl.u32 %v25, 7
  %v27 = vsub.s32 0, %v26
  %v28 = vrot.slane %v23, %v27
  %vm30 = vcmask 523264
  %v32 = vsel %vm30, %v14, 0
  %34 = vmatprep.subr.mxu0 0.0
  %35 = vmatpush1.msra.mxu0 %v15
  %36 = vmatprep.subr.mxu0 0.0
  %37 = vmatpush1.msra.mxu0 %v16
  %38 = vmatprep.subr.mxu0 0.0
  %39 = vmatpush1.msra.mxu0 %v17
  %40 = vmatprep.subr.mxu0 0.0
  %41 = vmatpush1.msra.mxu0 %v18
  %42 = vmatprep.subr.mxu0 0.0
  %43 = vmatpush1.msra.mxu0 %v19
  %44 = vmatprep.subr.mxu0 0.0
  %45 = vmatpush1.msra.mxu0 %v20
  %46 = vmatprep.subr.mxu0 0.0
  %47 = vmatpush1.msra.mxu0 %v21
  %48 = vmatprep.subr.mxu0 0.0
  %49 = vmatpush1.msra.mxu0 %v22
  %50 = vmatprep.subr.mxu0 0.0
  %51 = vmatpush1.msra.mxu0 0.0
  %52 = vmatprep.subr.mxu0 0.0
  %53 = vmatpush1.msra.mxu0 0.0
  %54 = vmatprep.subr.mxu0 0.0
  %55 = vmatpush1.msra.mxu0 0.0
  %56 = vmatprep.subr.mxu0 0.0
  %57 = vmatpush1.msra.mxu0 0.0
  %58 = vmatprep.subr.mxu0 0.0
  %59 = vmatpush1.msra.mxu0 0.0
  %60 = vmatprep.subr.mxu0 0.0
  %61 = vmatpush1.msra.mxu0 0.0
  %62 = vmatprep.subr.mxu0 0.0
  %63 = vmatpush1.msra.mxu0 0.0
  %64 = vmatprep.subr.mxu0 0.0
  %65 = vmatpush1.msra.mxu0 0.0
  %66 = vmatprep.subr.mxu0 0.0
  %67 = vmatpush1.msra.mxu0 0.0
  %68 = vmatprep.subr.mxu0 0.0
  %69 = vmatpush1.msra.mxu0 0.0
  %70 = vmatprep.subr.mxu0 0.0
  %71 = vmatpush1.msra.mxu0 0.0
  %72 = vmatprep.subr.mxu0 0.0
  %73 = vmatpush1.msra.mxu0 0.0
  %74 = vmatprep.subr.mxu0 0.0
  %75 = vmatpush1.msra.mxu0 0.0
  %76 = vmatprep.subr.mxu0 0.0
  %77 = vmatpush1.msra.mxu0 0.0
  %78 = vmatprep.subr.mxu0 0.0
  %79 = vmatpush1.msra.mxu0 0.0
  %80 = vmatprep.subr.mxu0 0.0
  %81 = vmatpush1.msra.mxu0 0.0
  %82 = vmatprep.subr.mxu0 0.0
  %83 = vmatpush1.msra.mxu0 0.0
  %84 = vmatprep.subr.mxu0 0.0
  %85 = vmatpush1.msra.mxu0 0.0
  %86 = vmatprep.subr.mxu0 0.0
  %87 = vmatpush1.msra.mxu0 0.0
  %88 = vmatprep.subr.mxu0 0.0
  %89 = vmatpush1.msra.mxu0 0.0
  %90 = vmatprep.subr.mxu0 0.0
  %91 = vmatpush1.msra.mxu0 0.0
  %92 = vmatprep.subr.mxu0 0.0
  %93 = vmatpush1.msra.mxu0 0.0
  %94 = vmatprep.subr.mxu0 0.0
  %95 = vmatpush1.msra.mxu0 0.0
  %96 = vmatprep.subr.mxu0 0.0
  %97 = vmatpush1.msra.mxu0 0.0
  %98 = vmatprep.mubr.f32.mxu0 0.0
  %99 = vmatmul.mubr.f32.gmra.mrb[0].mxu0 %v32
  %v100 = vpop.f32.mrb[0].mxu0
  %v101 = vadd.f32 %v28, %v100
  %v102 = vpop.f32.mrb[0].mxu0
  %103 = vdwg.mxu0
  %v104 = vmax.f32 %v101, 0.0
  %vm105 = vcmask 254976
  %106 = vst.msk [vmem:[%s3] sm:$0x3] %vm105, %v104
  // Predicated region
  $region14: #{hcfh_forward.11} parent=0 // pred_check
    _
  $region15: #{hcfh_forward.11} parent=0 // pred_check_branch
    %108 = sbr.rel (0) target = $region17
  $region16: #{hcfh_forward.11} parent=0 // pred_region
    _
  $region17: #{hcfh_forward.11} parent=0 // pred_fallthru
    _
  // Predicated region
  $region18: #{hcfh_forward.11} parent=0 // pred_check
    _
  $region19: #{hcfh_forward.11} parent=0 // pred_check_branch
    %110 = sbr.rel (0) target = $region21
  $region20: #{hcfh_forward.11} parent=0 // pred_region
    _
  $region21: #{hcfh_forward.11} parent=0 // pred_fallthru
    _

// kernel: hcfh_forward.14
$region0: #{hcfh_forward.14}
  #allocation0 [shape = 'u32[]', space=smem, size = 0x4, offset = 0x4, fixed_abs, tag = 'smem constant byte address 0x4 - core index']
  #allocation1 [shape = 'u32[144,128]{1,0:T(1,128)}', space=vmem, size = 0x12000, scoped, tag = 'internal scratch']
  %s0 = inlined_call_operand.vmem [shape: f32[24,48], index: 0, kind: input, shape index: {}]
  %s1 = inlined_call_operand.vmem [shape: f32[48,32], index: 1, kind: input, shape index: {}]
  %s2 = inlined_call_operand.vmem [shape: f32[1,32], index: 2, kind: input, shape index: {}]
  %s3 = inlined_call_operand.vmem [shape: f32[24,32], index: 3, kind: output, shape index: {}]
  %s4 = sld [smem:[#allocation0]]
  $region22: #{hcfh_forward.14} parent=0
    _
  %s6 = ssub.s32 1, %s4
  %s7 = scalar_select 0, %s6, %s4
  // Predicated region
  $region2: #{hcfh_forward.14} parent=0 // pred_check
    _
  $region3: #{hcfh_forward.14} parent=0 // pred_check_branch
    %9 = sbr.rel (0) target = $region5
  $region4: #{hcfh_forward.14} parent=0 // pred_region
    _
  $region5: #{hcfh_forward.14} parent=0 // pred_fallthru
    _
  // Predicated region
  $region6: #{hcfh_forward.14} parent=0 // pred_check
    _
  $region7: #{hcfh_forward.14} parent=0 // pred_check_branch
    %11 = sbr.rel (0) target = $region9
  $region8: #{hcfh_forward.14} parent=0 // pred_region
    _
  $region9: #{hcfh_forward.14} parent=0 // pred_fallthru
    _
  // Predicated region
  $region10: #{hcfh_forward.14} parent=0 // pred_check
    _
  $region11: #{hcfh_forward.14} parent=0 // pred_check_branch
    %13 = sbr.rel (0) target = $region13
  $region12: #{hcfh_forward.14} parent=0 // pred_region
    _
  $region13: #{hcfh_forward.14} parent=0 // pred_fallthru
    _
  %v14 = vld [vmem:[%s0] sm:$0xff]
  %v15 = vld [vmem:[%s0 + $0x8] sm:$0xff]
  %v16 = vld [vmem:[%s0 + $0x10] sm:$0xff]
  %v17 = vld [vmem:[%s1] sm:$0xff]
  %v18 = vld [vmem:[%s1 + $0x8] sm:$0xff]
  %v19 = vld [vmem:[%s1 + $0x10] sm:$0xff]
  %v20 = vld [vmem:[%s1 + $0x18] sm:$0xff]
  %v21 = vld [vmem:[%s1 + $0x20] sm:$0xff]
  %v22 = vld [vmem:[%s1 + $0x28] sm:$0xff]
  %v23 = vld [vmem:[%s2] sm:$0x1]
  %v25 = vlaneseq
  %v26 = vshrl.u32 %v25, 7
  %v27 = vsub.s32 0, %v26
  %v28 = vrot.slane %v23, %v27
  %vm30 = vcmask 392192
  %v32 = vsel %vm30, %v14, 0
  %v35 = vsel %vm30, %v15, 0
  %v38 = vsel %vm30, %v16, 0
  %40 = vmatprep.subr.mxu0 0.0
  %41 = vmatpush1.msra.mxu0 %v17
  %42 = vmatprep.subr.mxu0 0.0
  %43 = vmatpush1.msra.mxu0 %v18
  %44 = vmatprep.subr.mxu0 0.0
  %45 = vmatpush1.msra.mxu0 %v19
  %46 = vmatprep.subr.mxu0 0.0
  %47 = vmatpush1.msra.mxu0 %v20
  %48 = vmatprep.subr.mxu0 0.0
  %49 = vmatpush1.msra.mxu0 %v21
  %50 = vmatprep.subr.mxu0 0.0
  %51 = vmatpush1.msra.mxu0 %v22
  %52 = vmatprep.subr.mxu0 0.0
  %53 = vmatpush1.msra.mxu0 0.0
  %54 = vmatprep.subr.mxu0 0.0
  %55 = vmatpush1.msra.mxu0 0.0
  %56 = vmatprep.subr.mxu0 0.0
  %57 = vmatpush1.msra.mxu0 0.0
  %58 = vmatprep.subr.mxu0 0.0
  %59 = vmatpush1.msra.mxu0 0.0
  %60 = vmatprep.subr.mxu0 0.0
  %61 = vmatpush1.msra.mxu0 0.0
  %62 = vmatprep.subr.mxu0 0.0
  %63 = vmatpush1.msra.mxu0 0.0
  %64 = vmatprep.subr.mxu0 0.0
  %65 = vmatpush1.msra.mxu0 0.0
  %66 = vmatprep.subr.mxu0 0.0
  %67 = vmatpush1.msra.mxu0 0.0
  %68 = vmatprep.subr.mxu0 0.0
  %69 = vmatpush1.msra.mxu0 0.0
  %70 = vmatprep.subr.mxu0 0.0
  %71 = vmatpush1.msra.mxu0 0.0
  %72 = vmatprep.subr.mxu0 0.0
  %73 = vmatpush1.msra.mxu0 0.0
  %74 = vmatprep.subr.mxu0 0.0
  %75 = vmatpush1.msra.mxu0 0.0
  %76 = vmatprep.subr.mxu0 0.0
  %77 = vmatpush1.msra.mxu0 0.0
  %78 = vmatprep.subr.mxu0 0.0
  %79 = vmatpush1.msra.mxu0 0.0
  %80 = vmatprep.subr.mxu0 0.0
  %81 = vmatpush1.msra.mxu0 0.0
  %82 = vmatprep.subr.mxu0 0.0
  %83 = vmatpush1.msra.mxu0 0.0
  %84 = vmatprep.subr.mxu0 0.0
  %85 = vmatpush1.msra.mxu0 0.0
  %86 = vmatprep.subr.mxu0 0.0
  %87 = vmatpush1.msra.mxu0 0.0
  %88 = vmatprep.subr.mxu0 0.0
  %89 = vmatpush1.msra.mxu0 0.0
  %90 = vmatprep.subr.mxu0 0.0
  %91 = vmatpush1.msra.mxu0 0.0
  %92 = vmatprep.subr.mxu0 0.0
  %93 = vmatpush1.msra.mxu0 0.0
  %94 = vmatprep.subr.mxu0 0.0
  %95 = vmatpush1.msra.mxu0 0.0
  %96 = vmatprep.subr.mxu0 0.0
  %97 = vmatpush1.msra.mxu0 0.0
  %98 = vmatprep.subr.mxu0 0.0
  %99 = vmatpush1.msra.mxu0 0.0
  %100 = vmatprep.subr.mxu0 0.0
  %101 = vmatpush1.msra.mxu0 0.0
  %102 = vmatprep.subr.mxu0 0.0
  %103 = vmatpush1.msra.mxu0 0.0
  %104 = vmatprep.mubr.f32.mxu0 0.0
  %105 = vmatmul.mubr.f32.gmra.mrb[0].mxu0 %v32
  %v106 = vpop.f32.mrb[0].mxu0
  %v107 = vadd.f32 %v28, %v106
  %v108 = vpop.f32.mrb[0].mxu0
  %109 = vmatprep.mubr.f32.mxu0 0.0
  %110 = vmatmul.mubr.f32.gmra.mrb[0].mxu0 %v35
  %v111 = vpop.f32.mrb[0].mxu0
  %v112 = vadd.f32 %v28, %v111
  %v113 = vpop.f32.mrb[0].mxu0
  %114 = vmatprep.mubr.f32.mxu0 0.0
  %115 = vmatmul.mubr.f32.gmra.mrb[0].mxu0 %v38
  %v116 = vpop.f32.mrb[0].mxu0
  %v117 = vadd.f32 %v28, %v116
  %v118 = vpop.f32.mrb[0].mxu0
  %119 = vdwg.mxu0
  %v120 = vmax.f32 %v107, 0.0
  %v121 = vmax.f32 %v112, 0.0
  %v122 = vmax.f32 %v117, 0.0
  %vm123 = vcmask 261120
  %124 = vst.msk [vmem:[%s3] sm:$0xff] %vm123, %v120
  %125 = vst.msk [vmem:[%s3 + $0x8] sm:$0xff] %vm123, %v121
  %126 = vst.msk [vmem:[%s3 + $0x10] sm:$0xff] %vm123, %v122
  // Predicated region
  $region14: #{hcfh_forward.14} parent=0 // pred_check
    _
  $region15: #{hcfh_forward.14} parent=0 // pred_check_branch
    %128 = sbr.rel (0) target = $region17
  $region16: #{hcfh_forward.14} parent=0 // pred_region
    _
  $region17: #{hcfh_forward.14} parent=0 // pred_fallthru
    _
  // Predicated region
  $region18: #{hcfh_forward.14} parent=0 // pred_check
    _
  $region19: #{hcfh_forward.14} parent=0 // pred_check_branch
    %130 = sbr.rel (0) target = $region21
  $region20: #{hcfh_forward.14} parent=0 // pred_region
    _
  $region21: #{hcfh_forward.14} parent=0 // pred_fallthru
    _

// kernel: hcfh_forward.16
$region0: #{hcfh_forward.16}
  #allocation0 [shape = 'u32[]', space=smem, size = 0x4, offset = 0x4, fixed_abs, tag = 'smem constant byte address 0x4 - core index']
  #allocation1 [shape = 'u32[144,128]{1,0:T(1,128)}', space=vmem, size = 0x12000, scoped, tag = 'internal scratch']
  #allocation2 [shape = 'f32[30,32]{1,0:T(8,128)}', space=vmem, size = 0x4000, scoped, tag = 'scratch operand']
  %s0 = inlined_call_operand.vmem [shape: f32[30,96], index: 0, kind: input, shape index: {}]
  %s1 = inlined_call_operand.vmem [shape: f32[96,2048], index: 1, kind: input, shape index: {}]
  %s2 = inlined_call_operand.vmem [shape: f32[1,2048], index: 2, kind: input, shape index: {}]
  %s3 = inlined_call_operand.vmem [shape: f32[2048,32], index: 3, kind: input, shape index: {}]
  %s4 = inlined_call_operand.vmem [shape: f32[1,32], index: 4, kind: input, shape index: {}]
  %s5 = inlined_call_operand.vmem [shape: f32[30,32], index: 5, kind: output, shape index: {}]
  %s6 = sld [smem:[#allocation0]]
  $region84: #{hcfh_forward.16} parent=0
    _
  %s8 = ssub.s32 1, %s6
  %s9 = scalar_select 0, %s8, %s6
  $region1: #{hcfh_forward.16} parent=0
    #allocation3 [shape = 'u8[393216]{0}', space=vmem, size = 0x60000, scoped, tag = 'input window, operand 1']
    loop: start=0, step=1, limit=6
    $region2: #{hcfh_forward.16} parent=1 // loop_pre_header
      _
    $region3: #{hcfh_forward.16} parent=1 // loop_header
      %s11 = sphi 0, %s15
      %p12 = scmp.ge.s32.totalorder %s11, 6
      %s18 = sphi 0, %s30
      %s19 = sphi 0, %s26
      %s20 = sphi 0, %s18
      %s21 = sphi 0, %s19
      %s22 = sphi 0, %s20
      %s23 = sphi 0, %s21
      %s33 = sphi 0, %s35
      %s36 = sphi 0, %s33
      %s37 = sphi 0, %s36
      %s53 = sphi 0, %s37
      %s59 = sphi 0, %s61
      %s62 = sphi 0, %s59
      %s63 = sphi 0, %s62
      %s79 = sphi 0, %s63
      %s85 = sphi 0, %s87
      %s88 = sphi 0, %s85
      %s89 = sphi 0, %s88
      %s105 = sphi 0, %s89
      %s111 = sphi 0, %s113
      %s114 = sphi 0, %s111
      %s115 = sphi 0, %s114
      %s131 = sphi 0, %s115
      %s135 = sphi 0, %s135
      %s137 = sphi 0, %s135
      %s138 = sphi 0, %s137
      %s152 = sphi 0, %s138
      %s158 = sphi 0, %s160
      %s161 = sphi 0, %s158
      %s162 = sphi 0, %s161
      %s178 = sphi 0, %s162
    $region4: #{hcfh_forward.16} parent=1 // loop_header_branch
      %14 = sbr.rel (%p12) target = $region8
    $region5: #{hcfh_forward.16} parent=1 // loop_body
      %s16 = ssub.s32 %s11, 1
      %s17 = ssub.s32 %s11, 2
      %s24 = sadd.s32 1, %s19
      %p25 = scmp.ge.s32.totalorder %s24, 4
      %s26 = scalar_select %p25, 0, %s24
      %s27 = sadd.s32 1, %s18
      %s28 = scalar_select %p25, %s27, %s18
      %p29 = scmp.ge.s32.totalorder %s28, 1
      %s30 = scalar_select %p29, 0, %s28
      %s31 = ssub.s32 %s18, %s30
      %p32 = scmp.eq.s32.totalorder %s31, 0
      %s34 = sadd.s32 %s33, 1
      %s35 = scalar_select %p32, %s33, %s34
      %p38 = pneg %p32
      %p39 = scmp.eq.s32.totalorder %s11, 3
      %p40 = por %p38, %p39
      %p41 = scmp.ne.s32.totalorder %s33, %s36
      %p42 = scmp.eq.s32.totalorder %s11, 0
      %p43 = por %p41, %p42
      %p44 = scmp.ne.s32.totalorder %s33, %s36
      %p45 = scmp.eq.s32.totalorder %s16, 3
      %p46 = por %p44, %p45
      %p47 = scmp.ne.s32.totalorder %s36, %s37
      %p48 = scmp.eq.s32.totalorder %s16, 0
      %p49 = por %p47, %p48
      %p50 = scmp.ne.s32.totalorder %s36, %s37
      %p51 = scmp.eq.s32.totalorder %s17, 3
      %p52 = por %p50, %p51
      %p54 = scmp.ne.s32.totalorder %s37, %s53
      %p55 = scmp.eq.s32.totalorder %s17, 0
      %p56 = por %p54, %p55
      %s57 = ssub.s32 %s19, %s26
      %p58 = scmp.eq.s32.totalorder %s57, 0
      %s60 = sadd.s32 %s59, 1
      %s61 = scalar_select %p58, %s59, %s60
      %p64 = pneg %p58
      %p65 = scmp.eq.s32.totalorder %s11, 3
      %p66 = por %p64, %p65
      %p67 = scmp.ne.s32.totalorder %s59, %s62
      %p68 = scmp.eq.s32.totalorder %s11, 0
      %p69 = por %p67, %p68
      %p70 = scmp.ne.s32.totalorder %s59, %s62
      %p71 = scmp.eq.s32.totalorder %s16, 3
      %p72 = por %p70, %p71
      %p73 = scmp.ne.s32.totalorder %s62, %s63
      %p74 = scmp.eq.s32.totalorder %s16, 0
      %p75 = por %p73, %p74
      %p76 = scmp.ne.s32.totalorder %s62, %s63
      %p77 = scmp.eq.s32.totalorder %s17, 3
      %p78 = por %p76, %p77
      %p80 = scmp.ne.s32.totalorder %s63, %s79
      %p81 = scmp.eq.s32.totalorder %s17, 0
      %p82 = por %p80, %p81
      %s83 = ssub.s32 %s19, %s26
      %p84 = scmp.eq.s32.totalorder %s83, 0
      %s86 = sadd.s32 %s85, 1
      %s87 = scalar_select %p84, %s85, %s86
      %p90 = pneg %p84
      %p91 = scmp.eq.s32.totalorder %s11, 3
      %p92 = por %p90, %p91
      %p93 = scmp.ne.s32.totalorder %s85, %s88
      %p94 = scmp.eq.s32.totalorder %s11, 0
      %p95 = por %p93, %p94
      %p96 = scmp.ne.s32.totalorder %s85, %s88
      %p97 = scmp.eq.s32.totalorder %s16, 3
      %p98 = por %p96, %p97
      %p99 = scmp.ne.s32.totalorder %s88, %s89
      %p100 = scmp.eq.s32.totalorder %s16, 0
      %p101 = por %p99, %p100
      %p102 = scmp.ne.s32.totalorder %s88, %s89
      %p103 = scmp.eq.s32.totalorder %s17, 3
      %p104 = por %p102, %p103
      %p106 = scmp.ne.s32.totalorder %s89, %s105
      %p107 = scmp.eq.s32.totalorder %s17, 0
      %p108 = por %p106, %p107
      %s109 = ssub.s32 %s19, %s26
      %p110 = scmp.eq.s32.totalorder %s109, 0
      %s112 = sadd.s32 %s111, 1
      %s113 = scalar_select %p110, %s111, %s112
      %p116 = pneg %p110
      %p117 = scmp.eq.s32.totalorder %s11, 3
      %p118 = por %p116, %p117
      %p119 = scmp.ne.s32.totalorder %s111, %s114
      %p120 = scmp.eq.s32.totalorder %s11, 0
      %p121 = por %p119, %p120
      %p122 = scmp.ne.s32.totalorder %s111, %s114
      %p123 = scmp.eq.s32.totalorder %s16, 3
      %p124 = por %p122, %p123
      %p125 = scmp.ne.s32.totalorder %s114, %s115
      %p126 = scmp.eq.s32.totalorder %s16, 0
      %p127 = por %p125, %p126
      %p128 = scmp.ne.s32.totalorder %s114, %s115
      %p129 = scmp.eq.s32.totalorder %s17, 3
      %p130 = por %p128, %p129
      %p132 = scmp.ne.s32.totalorder %s115, %s131
      %p133 = scmp.eq.s32.totalorder %s17, 0
      %p134 = por %p132, %p133
      %s136 = sadd.s32 %s135, 1
      %p139 = scmp.eq.s32.totalorder %s11, 3
      %p140 = scmp.ne.s32.totalorder %s135, %s137
      %p141 = scmp.eq.s32.totalorder %s11, 0
      %p142 = por %p140, %p141
      %p143 = scmp.ne.s32.totalorder %s135, %s137
      %p144 = scmp.eq.s32.totalorder %s16, 3
      %p145 = por %p143, %p144
      %p146 = scmp.ne.s32.totalorder %s137, %s138
      %p147 = scmp.eq.s32.totalorder %s16, 0
      %p148 = por %p146, %p147
      %p149 = scmp.ne.s32.totalorder %s137, %s138
      %p150 = scmp.eq.s32.totalorder %s17, 3
      %p151 = por %p149, %p150
      %p153 = scmp.ne.s32.totalorder %s138, %s152
      %p154 = scmp.eq.s32.totalorder %s17, 0
      %p155 = por %p153, %p154
      %s156 = ssub.s32 %s18, %s30
      %p157 = scmp.eq.s32.totalorder %s156, 0
      %s159 = sadd.s32 %s158, 1
      %s160 = scalar_select %p157, %s158, %s159
      %p163 = pneg %p157
      %p164 = scmp.eq.s32.totalorder %s11, 3
      %p165 = por %p163, %p164
      %p166 = scmp.ne.s32.totalorder %s158, %s161
      %p167 = scmp.eq.s32.totalorder %s11, 0
      %p168 = por %p166, %p167
      %p169 = scmp.ne.s32.totalorder %s158, %s161
      %p170 = scmp.eq.s32.totalorder %s16, 3
      %p171 = por %p169, %p170
      %p172 = scmp.ne.s32.totalorder %s161, %s162
      %p173 = scmp.eq.s32.totalorder %s16, 0
      %p174 = por %p172, %p173
      %p175 = scmp.ne.s32.totalorder %s161, %s162
      %p176 = scmp.eq.s32.totalorder %s17, 3
      %p177 = por %p175, %p176
      %p179 = scmp.ne.s32.totalorder %s162, %s178
      %p180 = scmp.eq.s32.totalorder %s17, 0
      %p181 = por %p179, %p180
      %p182 = scmp.le.s32.totalorder 1, %s11
      %p183 = scmp.lt.s32.totalorder %s11, 5
      %p184 = pnand %p182, %p183
      %p185 = pneg %p184
      // Predicated region
      $region9: #{hcfh_forward.16} parent=5 // pred_check
        _
      $region10: #{hcfh_forward.16} parent=5 // pred_check_branch
        %187 = sbr.rel (%p184) target = $region12
      $region11: #{hcfh_forward.16} parent=5 // pred_region
        %s188 = ssub.s32 %s11, 1
        // Predicated region
        $region13: #{hcfh_forward.16} parent=11 // pred_check
          %p189 = pneg %p49
        $region14: #{hcfh_forward.16} parent=11 // pred_check_branch
          %191 = sbr.rel (%p189) target = $region16
        $region15: #{hcfh_forward.16} parent=11 // pred_region
          %s192 = smul.u32 4, %s20
          %p193 = scmp.lt.s32.totalorder %s192, 3
          %s194 = scalar_select %p193, %s192, 3
          %s195 = smul.addr %s194, 8
          %s196 = scalar_lea.vmem %s0, %s195
          %s197 = smul.u32 4, %s20
        $region16: #{hcfh_forward.16} parent=11 // pred_fallthru
          _
        // Predicated region
        $region17: #{hcfh_forward.16} parent=11 // pred_check
          %p198 = pneg %p148
        $region18: #{hcfh_forward.16} parent=11 // pred_check_branch
          %200 = sbr.rel (%p198) target = $region20
        $region19: #{hcfh_forward.16} parent=11 // pred_region
          _
        $region20: #{hcfh_forward.16} parent=11 // pred_fallthru
          _
      $region12: #{hcfh_forward.16} parent=5 // pred_fallthru
        _
      %p201 = scmp.lt.s32.totalorder %s11, 4
      // Predicated region
      $region21: #{hcfh_forward.16} parent=5 // pred_check
        %p202 = pneg %p201
      $region22: #{hcfh_forward.16} parent=5 // pred_check_branch
        %204 = sbr.rel (%p202) target = $region24
      $region23: #{hcfh_forward.16} parent=5 // pred_region
        // Predicated region
        $region25: #{hcfh_forward.16} parent=23 // pred_check
          %p205 = pneg %p69
        $region26: #{hcfh_forward.16} parent=23 // pred_check_branch
          %207 = sbr.rel (%p205) target = $region28
        $region27: #{hcfh_forward.16} parent=23 // pred_region
          %s208 = sand.u32 %s59, 1
          %s209 = sand.u32 %s59, 1
          %s210 = smul.addr %s209, 384
          %s211 = scalar_lea.vmem [#allocation3], %s210
          %s212 = smul.u32 4, %s19
          %s213 = smul.addr %s212, 8
          %s214 = scalar_lea.vmem %s1, %s213
          // Predicated region
          $region29: #{hcfh_forward.16} parent=27 // pred_check
            _
          $region30: #{hcfh_forward.16} parent=27 // pred_check_branch
            %216 = sbr.rel (0) target = $region32
          $region31: #{hcfh_forward.16} parent=27 // pred_region
            // Predicated region
            $region33: #{hcfh_forward.16} parent=31 // pred_check
              _
            $region34: #{hcfh_forward.16} parent=31 // pred_check_branch
              %218 = sbr.rel (0) target = $region36
            $region35: #{hcfh_forward.16} parent=31 // pred_region
              loop: start=0, step=1, limit=1
              $region37: #{hcfh_forward.16} parent=35 // loop_pre_header
                _
              $region38: #{hcfh_forward.16} parent=35 // loop_header
                %s220 = sphi 0, %s224
                %p221 = scmp.ge.s32.totalorder %s220, 1
                %s225 = sphi %s214, %s214
                %s226 = sphi %s211, %s211
              $region39: #{hcfh_forward.16} parent=35 // loop_header_branch
                %223 = sbr.rel (%p221) target = $region43
              $region40: #{hcfh_forward.16} parent=35 // loop_body
                %v227 = vld [vmem:[%s225] sm:$0xff]
                %228 = vst [vmem:[%s226] sm:$0xff] %v227
                %v229 = vld [vmem:[%s225 + $0x8] sm:$0xff]
                %230 = vst [vmem:[%s226 + $0x8] sm:$0xff] %v229
                %v231 = vld [vmem:[%s225 + $0x10] sm:$0xff]
                %232 = vst [vmem:[%s226 + $0x10] sm:$0xff] %v231
                %v233 = vld [vmem:[%s225 + $0x18] sm:$0xff]
                %234 = vst [vmem:[%s226 + $0x18] sm:$0xff] %v233
                %v235 = vld [vmem:[%s225 + $0x80] sm:$0xff]
                %236 = vst [vmem:[%s226 + $0x20] sm:$0xff] %v235
                %v237 = vld [vmem:[%s225 + $0x88] sm:$0xff]
                %238 = vst [vmem:[%s226 + $0x28] sm:$0xff] %v237
                %v239 = vld [vmem:[%s225 + $0x90] sm:$0xff]
                %240 = vst [vmem:[%s226 + $0x30] sm:$0xff] %v239
                %v241 = vld [vmem:[%s225 + $0x98] sm:$0xff]
                %242 = vst [vmem:[%s226 + $0x38] sm:$0xff] %v241
                %v243 = vld [vmem:[%s225 + $0x100] sm:$0xff]
                %244 = vst [vmem:[%s226 + $0x40] sm:$0xff] %v243
                %v245 = vld [vmem:[%s225 + $0x108] sm:$0xff]
                %246 = vst [vmem:[%s226 + $0x48] sm:$0xff] %v245
                %v247 = vld [vmem:[%s225 + $0x110] sm:$0xff]
                %248 = vst [vmem:[%s226 + $0x50] sm:$0xff] %v247
                %v249 = vld [vmem:[%s225 + $0x118] sm:$0xff]
                %250 = vst [vmem:[%s226 + $0x58] sm:$0xff] %v249
                %v251 = vld [vmem:[%s225 + $0x180] sm:$0xff]
                %252 = vst [vmem:[%s226 + $0x60] sm:$0xff] %v251
                %v253 = vld [vmem:[%s225 + $0x188] sm:$0xff]
                %254 = vst [vmem:[%s226 + $0x68] sm:$0xff] %v253
                %v255 = vld [vmem:[%s225 + $0x190] sm:$0xff]
                %256 = vst [vmem:[%s226 + $0x70] sm:$0xff] %v255
                %v257 = vld [vmem:[%s225 + $0x198] sm:$0xff]
                %258 = vst [vmem:[%s226 + $0x78] sm:$0xff] %v257
                %v259 = vld [vmem:[%s225 + $0x200] sm:$0xff]
                %260 = vst [vmem:[%s226 + $0x80] sm:$0xff] %v259
                %v261 = vld [vmem:[%s225 + $0x208] sm:$0xff]
                %262 = vst [vmem:[%s226 + $0x88] sm:$0xff] %v261
                %v263 = vld [vmem:[%s225 + $0x210] sm:$0xff]
                %264 = vst [vmem:[%s226 + $0x90] sm:$0xff] %v263
                %v265 = vld [vmem:[%s225 + $0x218] sm:$0xff]
                %266 = vst [vmem:[%s226 + $0x98] sm:$0xff] %v265
                %v267 = vld [vmem:[%s225 + $0x280] sm:$0xff]
                %268 = vst [vmem:[%s226 + $0xa0] sm:$0xff] %v267
                %v269 = vld [vmem:[%s225 + $0x288] sm:$0xff]
                %270 = vst [vmem:[%s226 + $0xa8] sm:$0xff] %v269
                %v271 = vld [vmem:[%s225 + $0x290] sm:$0xff]
                %272 = vst [vmem:[%s226 + $0xb0] sm:$0xff] %v271
                %v273 = vld [vmem:[%s225 + $0x298] sm:$0xff]
                %274 = vst [vmem:[%s226 + $0xb8] sm:$0xff] %v273
                %v275 = vld [vmem:[%s225 + $0x300] sm:$0xff]
                %276 = vst [vmem:[%s226 + $0xc0] sm:$0xff] %v275
                %v277 = vld [vmem:[%s225 + $0x308] sm:$0xff]
                %278 = vst [vmem:[%s226 + $0xc8] sm:$0xff] %v277
                %v279 = vld [vmem:[%s225 + $0x310] sm:$0xff]
                %280 = vst [vmem:[%s226 + $0xd0] sm:$0xff] %v279
                %v281 = vld [vmem:[%s225 + $0x318] sm:$0xff]
                %282 = vst [vmem:[%s226 + $0xd8] sm:$0xff] %v281
                %v283 = vld [vmem:[%s225 + $0x380] sm:$0xff]
                %284 = vst [vmem:[%s226 + $0xe0] sm:$0xff] %v283
                %v285 = vld [vmem:[%s225 + $0x388] sm:$0xff]
                %286 = vst [vmem:[%s226 + $0xe8] sm:$0xff] %v285
                %v287 = vld [vmem:[%s225 + $0x390] sm:$0xff]
                %288 = vst [vmem:[%s226 + $0xf0] sm:$0xff] %v287
                %v289 = vld [vmem:[%s225 + $0x398] sm:$0xff]
                %290 = vst [vmem:[%s226 + $0xf8] sm:$0xff] %v289
                %v291 = vld [vmem:[%s225 + $0x400] sm:$0xff]
                %292 = vst [vmem:[%s226 + $0x100] sm:$0xff] %v291
                %v293 = vld [vmem:[%s225 + $0x408] sm:$0xff]
                %294 = vst [vmem:[%s226 + $0x108] sm:$0xff] %v293
                %v295 = vld [vmem:[%s225 + $0x410] sm:$0xff]
                %296 = vst [vmem:[%s226 + $0x110] sm:$0xff] %v295
                %v297 = vld [vmem:[%s225 + $0x418] sm:$0xff]
                %298 = vst [vmem:[%s226 + $0x118] sm:$0xff] %v297
                %v299 = vld [vmem:[%s225 + $0x480] sm:$0xff]
                %300 = vst [vmem:[%s226 + $0x120] sm:$0xff] %v299
                %v301 = vld [vmem:[%s225 + $0x488] sm:$0xff]
                %302 = vst [vmem:[%s226 + $0x128] sm:$0xff] %v301
                %v303 = vld [vmem:[%s225 + $0x490] sm:$0xff]
                %304 = vst [vmem:[%s226 + $0x130] sm:$0xff] %v303
                %v305 = vld [vmem:[%s225 + $0x498] sm:$0xff]
                %306 = vst [vmem:[%s226 + $0x138] sm:$0xff] %v305
                %v307 = vld [vmem:[%s225 + $0x500] sm:$0xff]
                %308 = vst [vmem:[%s226 + $0x140] sm:$0xff] %v307
                %v309 = vld [vmem:[%s225 + $0x508] sm:$0xff]
                %310 = vst [vmem:[%s226 + $0x148] sm:$0xff] %v309
                %v311 = vld [vmem:[%s225 + $0x510] sm:$0xff]
                %312 = vst [vmem:[%s226 + $0x150] sm:$0xff] %v311
                %v313 = vld [vmem:[%s225 + $0x518] sm:$0xff]
                %314 = vst [vmem:[%s226 + $0x158] sm:$0xff] %v313
                %v315 = vld [vmem:[%s225 + $0x580] sm:$0xff]
                %316 = vst [vmem:[%s226 + $0x160] sm:$0xff] %v315
                %v317 = vld [vmem:[%s225 + $0x588] sm:$0xff]
                %318 = vst [vmem:[%s226 + $0x168] sm:$0xff] %v317
                %v319 = vld [vmem:[%s225 + $0x590] sm:$0xff]
                %320 = vst [vmem:[%s226 + $0x170] sm:$0xff] %v319
                %v321 = vld [vmem:[%s225 + $0x598] sm:$0xff]
                %322 = vst [vmem:[%s226 + $0x178] sm:$0xff] %v321
              $region41: #{hcfh_forward.16} parent=35 // loop_footer
                %s224 = sadd.s32 1, %s220
              $region42: #{hcfh_forward.16} parent=35 // loop_footer_branch
                %219 = sbr.rel target = $region38
              $region43: #{hcfh_forward.16} parent=35 // loop_exit
                _
            $region36: #{hcfh_forward.16} parent=31 // pred_fallthru
              _
            // Predicated region
            $region44: #{hcfh_forward.16} parent=31 // pred_check
              _
            $region45: #{hcfh_forward.16} parent=31 // pred_check_branch
              %324 = sbr.rel target = $region47
            $region46: #{hcfh_forward.16} parent=31 // pred_region
              _
            $region47: #{hcfh_forward.16} parent=31 // pred_fallthru
              _
          $region32: #{hcfh_forward.16} parent=27 // pred_fallthru
            _
          %325 = vnop
        $region28: #{hcfh_forward.16} parent=23 // pred_fallthru
          _
        // Predicated region
        $region48: #{hcfh_forward.16} parent=23 // pred_check
          %p326 = pneg %p95
        $region49: #{hcfh_forward.16} parent=23 // pred_check_branch
          %328 = sbr.rel (%p326) target = $region51
        $region50: #{hcfh_forward.16} parent=23 // pred_region
          %s329 = smul.u32 4, %s19
          %p330 = scmp.lt.s32.totalorder %s329, 15
          %s331 = scalar_select %p330, %s329, 15
          %s332 = scalar_lea.vmem %s2, %s331
          %s333 = smul.u32 4, %s19
        $region51: #{hcfh_forward.16} parent=23 // pred_fallthru
          _
        // Predicated region
        $region52: #{hcfh_forward.16} parent=23 // pred_check
          %p334 = pneg %p121
        $region53: #{hcfh_forward.16} parent=23 // pred_check_branch
          %336 = sbr.rel (%p334) target = $region55
        $region54: #{hcfh_forward.16} parent=23 // pred_region
          %s337 = smul.u32 64, %s19
          %p338 = scmp.lt.s32.totalorder %s337, 255
          %s339 = scalar_select %p338, %s337, 255
          %s340 = smul.addr %s339, 8
          %s341 = scalar_lea.vmem %s3, %s340
          %s342 = smul.u32 64, %s19
        $region55: #{hcfh_forward.16} parent=23 // pred_fallthru
          _
      $region24: #{hcfh_forward.16} parent=5 // pred_fallthru
        _
      %p343 = scmp.le.s32.totalorder 1, %s11
      %p344 = scmp.lt.s32.totalorder %s11, 5
      %p345 = pnand %p343, %p344
      %p346 = pneg %p345
      // Predicated region
      $region56: #{hcfh_forward.16} parent=5 // pred_check
        _
      $region57: #{hcfh_forward.16} parent=5 // pred_check_branch
        %348 = sbr.rel (%p345) target = $region59
      $region58: #{hcfh_forward.16} parent=5 // pred_region
        %s349 = ssub.s32 %s11, 1
        %s350 = sand.u32 %s62, 1
        %s351 = sand.u32 %s62, 1
        %s352 = smul.addr %s351, 384
        %s353 = scalar_lea.vmem [#allocation3], %s352
        // Predicated region
        $region60: #{hcfh_forward.16} parent=58 // pred_check
          %p354 = pneg %p75
        $region61: #{hcfh_forward.16} parent=58 // pred_check_branch
          %356 = sbr.rel (%p354) target = $region63
        $region62: #{hcfh_forward.16} parent=58 // pred_region
          _
        $region63: #{hcfh_forward.16} parent=58 // pred_fallthru
          _
        %s357 = smul.u32 4, %s20
        %p358 = scmp.lt.s32.totalorder %s357, 3
        %s359 = scalar_select %p358, %s357, 3
        %s360 = smul.addr %s359, 8
        %s361 = scalar_lea.vmem %s0, %s360
        %p362 = pneg %p49
        %p363 = pneg %p46
        %s364 = sand.u32 %s62, 1
        %s365 = sand.u32 %s62, 1
        %s366 = smul.addr %s365, 384
        %s367 = scalar_lea.vmem [#allocation3], %s366
        %p368 = pneg %p75
        %p369 = pneg %p72
        %s370 = smul.u32 4, %s21
        %p371 = scmp.lt.s32.totalorder %s370, 15
        %s372 = scalar_select %p371, %s370, 15
        %s373 = scalar_lea.vmem %s2, %s372
        %p374 = pneg %p101
        %p375 = pneg %p98
        %s376 = smul.u32 64, %s21
        %p377 = scmp.lt.s32.totalorder %s376, 255
        %s378 = scalar_select %p377, %s376, 255
        %s379 = smul.addr %s378, 8
        %s380 = scalar_lea.vmem %s3, %s379
        %p381 = pneg %p127
        %p382 = pneg %p124
        %p383 = pneg %p148
        %p384 = pneg %p145
        %p385 = pneg %p174
        %p386 = pneg %p171
        %s387 = smul.u32 4, %s20
        %p388 = scmp.lt.s32.totalorder %s387, 3
        %s389 = scalar_select %p388, %s387, 3
        %s390 = smul.addr %s389, 8
        %s391 = scalar_lea.vmem %s5, %s390
        %s392 = smul.u32 4, %s20
        %p393 = scmp.lt.s32.totalorder %s392, 3
        %s394 = scalar_select %p393, %s392, 3
        %s395 = smul.addr %s394, 8
        %s396 = scalar_lea.vmem %s0, %s395
        %s397 = smul.u32 4, %s20
        %s398 = smul.u32 4, %s21
        %s399 = smul.u32 4, %s21
        %p400 = scmp.lt.s32.totalorder %s399, 15
        %s401 = scalar_select %p400, %s399, 15
        %s402 = scalar_lea.vmem %s2, %s401
        %s403 = smul.u32 4, %s21
        %s404 = smul.u32 64, %s21
        %p405 = scmp.lt.s32.totalorder %s404, 255
        %s406 = scalar_select %p405, %s404, 255
        %s407 = smul.addr %s406, 8
        %s408 = scalar_lea.vmem %s3, %s407
        %s409 = smul.u32 64, %s21
        %s410 = smul.u32 4, %s20
        %p411 = scmp.lt.s32.totalorder %s410, 3
        %s412 = scalar_select %p411, %s410, 3
        %s413 = smul.addr %s412, 8
        %s414 = scalar_lea.vmem %s5, %s413
        %s415 = smul.u32 4, %s20
        %p416 = scmp.eq.s32.totalorder %s21, 0
        // Predicated region
        $region64: #{hcfh_forward.16} parent=58 // pred_check
          %p417 = pneg %p416
        $region65: #{hcfh_forward.16} parent=58 // pred_check_branch
          %419 = sbr.rel (%p417) target = $region67
        $region66: #{hcfh_forward.16} parent=58 // pred_region
          %vm420 = vcmask 261120
          %421 = vst.msk [vmem:[#allocation2] sm:$0xff] %vm420, 0.0
          %422 = vst.msk [vmem:[#allocation2 + $0x8] sm:$0xff] %vm420, 0.0
          %423 = vst.msk [vmem:[#allocation2 + $0x10] sm:$0xff] %vm420, 0.0
          %vm424 = vcmask 259072
          %425 = vst.msk [vmem:[#allocation2 + $0x18] sm:$0x3f] %vm424, 0.0
        $region67: #{hcfh_forward.16} parent=58 // pred_fallthru
          _
        %v426 = vld [vmem:[%s396] sm:$0xff]
        %v427 = vld [vmem:[%s396 + $0x8] sm:$0xff]
        %v428 = vld [vmem:[%s396 + $0x10] sm:$0xff]
        %v429 = vld [vmem:[%s396 + $0x18] sm:$0x3f]
        %v430 = vld [vmem:[%s353] sm:$0xff]
        %v431 = vld [vmem:[%s353 + $0x8] sm:$0xff]
        %v432 = vld [vmem:[%s353 + $0x10] sm:$0xff]
        %v433 = vld [vmem:[%s353 + $0x18] sm:$0xff]
        %v434 = vld [vmem:[%s353 + $0x20] sm:$0xff]
        %v435 = vld [vmem:[%s353 + $0x28] sm:$0xff]
        %v436 = vld [vmem:[%s353 + $0x30] sm:$0xff]
        %v437 = vld [vmem:[%s353 + $0x38] sm:$0xff]
        %v438 = vld [vmem:[%s353 + $0x40] sm:$0xff]
        %v439 = vld [vmem:[%s353 + $0x48] sm:$0xff]
        %v440 = vld [vmem:[%s353 + $0x50] sm:$0xff]
        %v441 = vld [vmem:[%s353 + $0x58] sm:$0xff]
        %v442 = vld [vmem:[%s353 + $0x60] sm:$0xff]
        %v443 = vld [vmem:[%s353 + $0x68] sm:$0xff]
        %v444 = vld [vmem:[%s353 + $0x70] sm:$0xff]
        %v445 = vld [vmem:[%s353 + $0x78] sm:$0xff]
        %v446 = vld [vmem:[%s353 + $0x80] sm:$0xff]
        %v447 = vld [vmem:[%s353 + $0x88] sm:$0xff]
        %v448 = vld [vmem:[%s353 + $0x90] sm:$0xff]
        %v449 = vld [vmem:[%s353 + $0x98] sm:$0xff]
        %v450 = vld [vmem:[%s353 + $0xa0] sm:$0xff]
        %v451 = vld [vmem:[%s353 + $0xa8] sm:$0xff]
        %v452 = vld [vmem:[%s353 + $0xb0] sm:$0xff]
        %v453 = vld [vmem:[%s353 + $0xb8] sm:$0xff]
        %v454 = vld [vmem:[%s353 + $0xc0] sm:$0xff]
        %v455 = vld [vmem:[%s353 + $0xc8] sm:$0xff]
        %v456 = vld [vmem:[%s353 + $0xd0] sm:$0xff]
        %v457 = vld [vmem:[%s353 + $0xd8] sm:$0xff]
        %v458 = vld [vmem:[%s353 + $0xe0] sm:$0xff]
        %v459 = vld [vmem:[%s353 + $0xe8] sm:$0xff]
        %v460 = vld [vmem:[%s353 + $0xf0] sm:$0xff]
        %v461 = vld [vmem:[%s353 + $0xf8] sm:$0xff]
        %v462 = vld [vmem:[%s353 + $0x100] sm:$0xff]
        %v463 = vld [vmem:[%s353 + $0x108] sm:$0xff]
        %v464 = vld [vmem:[%s353 + $0x110] sm:$0xff]
        %v465 = vld [vmem:[%s353 + $0x118] sm:$0xff]
        %v466 = vld [vmem:[%s353 + $0x120] sm:$0xff]
        %v467 = vld [vmem:[%s353 + $0x128] sm:$0xff]
        %v468 = vld [vmem:[%s353 + $0x130] sm:$0xff]
        %v469 = vld [vmem:[%s353 + $0x138] sm:$0xff]
        %v470 = vld [vmem:[%s353 + $0x140] sm:$0xff]
        %v471 = vld [vmem:[%s353 + $0x148] sm:$0xff]
        %v472 = vld [vmem:[%s353 + $0x150] sm:$0xff]
        %v473 = vld [vmem:[%s353 + $0x158] sm:$0xff]
        %v474 = vld [vmem:[%s353 + $0x160] sm:$0xff]
        %v475 = vld [vmem:[%s353 + $0x168] sm:$0xff]
        %v476 = vld [vmem:[%s353 + $0x170] sm:$0xff]
        %v477 = vld [vmem:[%s353 + $0x178] sm:$0xff]
        %v478 = vld [vmem:[%s402] sm:$0xf]
        %v480 = vlaneseq
        %v481 = vshrl.u32 %v480, 7
        %v482 = vsub.s32 0, %v481
        %v483 = vrot.slane %v478, %v482
        %v484 = vlaneseq
        %v485 = vshrl.u32 %v484, 7
        %v486 = vsub.s32 1, %v485
        %v487 = vrot.slane %v478, %v486
        %v488 = vlaneseq
        %v489 = vshrl.u32 %v488, 7
        %v490 = vsub.s32 2, %v489
        %v491 = vrot.slane %v478, %v490
        %v492 = vlaneseq
        %v493 = vshrl.u32 %v492, 7
        %v494 = vsub.s32 3, %v493
        %v495 = vrot.slane %v478, %v494
        %vm500 = vcmask 785408
        %v502 = vsel %vm500, %v426, 0
        %v505 = vsel %vm500, %v427, 0
        %v508 = vsel %vm500, %v428, 0
        %v511 = vsel %vm500, %v429, 0
        %513 = vmatprep.subr.mxu0 %v431
        %514 = vmatpush1.msra.mxu0 %v430
        %515 = vmatprep.subr.mxu0 %v435
        %516 = vmatpush1.msra.mxu0 %v434
        %517 = vmatprep.subr.mxu0 %v439
        %518 = vmatpush1.msra.mxu0 %v438
        %519 = vmatprep.subr.mxu0 %v443
        %520 = vmatpush1.msra.mxu0 %v442
        %521 = vmatprep.subr.mxu0 %v447
        %522 = vmatpush1.msra.mxu0 %v446
        %523 = vmatprep.subr.mxu0 %v451
        %524 = vmatpush1.msra.mxu0 %v450
        %525 = vmatprep.subr.mxu0 %v455
        %526 = vmatpush1.msra.mxu0 %v454
        %527 = vmatprep.subr.mxu0 %v459
        %528 = vmatpush1.msra.mxu0 %v458
        %529 = vmatprep.subr.mxu0 %v463
        %530 = vmatpush1.msra.mxu0 %v462
        %531 = vmatprep.subr.mxu0 %v467
        %532 = vmatpush1.msra.mxu0 %v466
        %533 = vmatprep.subr.mxu0 %v471
        %534 = vmatpush1.msra.mxu0 %v470
        %535 = vmatprep.subr.mxu0 %v475
        %536 = vmatpush1.msra.mxu0 %v474
        %537 = vmatprep.subr.mxu0 0.0
        %538 = vmatpush1.msra.mxu0 0.0
        %539 = vmatprep.subr.mxu0 0.0
        %540 = vmatpush1.msra.mxu0 0.0
        %541 = vmatprep.subr.mxu0 0.0
        %542 = vmatpush1.msra.mxu0 0.0
        %543 = vmatprep.subr.mxu0 0.0
        %544 = vmatpush1.msra.mxu0 0.0
        %545 = vmatprep.subr.mxu0 0.0
        %546 = vmatpush1.msra.mxu0 0.0
        %547 = vmatprep.subr.mxu0 0.0
        %548 = vmatpush1.msra.mxu0 0.0
        %549 = vmatprep.subr.mxu0 0.0
        %550 = vmatpush1.msra.mxu0 0.0
        %551 = vmatprep.subr.mxu0 0.0
        %552 = vmatpush1.msra.mxu0 0.0
        %553 = vmatprep.subr.mxu0 0.0
        %554 = vmatpush1.msra.mxu0 0.0
        %555 = vmatprep.subr.mxu0 0.0
        %556 = vmatpush1.msra.mxu0 0.0
        %557 = vmatprep.subr.mxu0 0.0
        %558 = vmatpush1.msra.mxu0 0.0
        %559 = vmatprep.subr.mxu0 0.0
        %560 = vmatpush1.msra.mxu0 0.0
        %561 = vmatprep.subr.mxu0 0.0
        %562 = vmatpush1.msra.mxu0 0.0
        %563 = vmatprep.subr.mxu0 0.0
        %564 = vmatpush1.msra.mxu0 0.0
        %565 = vmatprep.subr.mxu0 0.0
        %566 = vmatpush1.msra.mxu0 0.0
        %567 = vmatprep.subr.mxu0 0.0
        %568 = vmatpush1.msra.mxu0 0.0
        %569 = vmatprep.subr.mxu0 0.0
        %570 = vmatpush1.msra.mxu0 0.0
        %571 = vmatprep.subr.mxu0 0.0
        %572 = vmatpush1.msra.mxu0 0.0
        %573 = vmatprep.subr.mxu0 0.0
        %574 = vmatpush1.msra.mxu0 0.0
        %575 = vmatprep.subr.mxu0 0.0
        %576 = vmatpush1.msra.mxu0 0.0
        %577 = vmatprep.mubr.f32.mxu0 0.0
        %578 = vmatmul.mubr.f32.gmra.mrb[0].mxu0 %v502
        %v579 = vpop.f32.mrb[0].mxu0
        %v580 = vadd.f32 %v483, %v579
        %v581 = vpop.f32.mrb[0].mxu0
        %v582 = vadd.f32 %v487, %v581
        %583 = vmatprep.mubr.f32.mxu0 0.0
        %584 = vmatmul.mubr.f32.gmra.mrb[0].mxu0 %v505
        %v585 = vpop.f32.mrb[0].mxu0
        %v586 = vadd.f32 %v483, %v585
        %v587 = vpop.f32.mrb[0].mxu0
        %v588 = vadd.f32 %v487, %v587
        %589 = vmatprep.mubr.f32.mxu0 0.0
        %590 = vmatmul.mubr.f32.gmra.mrb[0].mxu0 %v508
        %v591 = vpop.f32.mrb[0].mxu0
        %v592 = vadd.f32 %v483, %v591
        %v593 = vpop.f32.mrb[0].mxu0
        %v594 = vadd.f32 %v487, %v593
        %595 = vmatprep.mubr.f32.mxu0 0.0
        %596 = vmatmul.mubr.f32.gmra.mrb[0].mxu0 %v511
        %v597 = vpop.f32.mrb[0].mxu0
        %v598 = vadd.f32 %v483, %v597
        %v599 = vpop.f32.mrb[0].mxu0
        %v600 = vadd.f32 %v487, %v599
        %601 = vdwg.mxu0
        %602 = vmatprep.subr.mxu0 %v433
        %603 = vmatpush1.msra.mxu0 %v432
        %604 = vmatprep.subr.mxu0 %v437
        %605 = vmatpush1.msra.mxu0 %v436
        %606 = vmatprep.subr.mxu0 %v441
        %607 = vmatpush1.msra.mxu0 %v440
        %608 = vmatprep.subr.mxu0 %v445
        %609 = vmatpush1.msra.mxu0 %v444
        %610 = vmatprep.subr.mxu0 %v449
        %611 = vmatpush1.msra.mxu0 %v448
        %612 = vmatprep.subr.mxu0 %v453
        %613 = vmatpush1.msra.mxu0 %v452
        %614 = vmatprep.subr.mxu0 %v457
        %615 = vmatpush1.msra.mxu0 %v456
        %616 = vmatprep.subr.mxu0 %v461
        %617 = vmatpush1.msra.mxu0 %v460
        %618 = vmatprep.subr.mxu0 %v465
        %619 = vmatpush1.msra.mxu0 %v464
        %620 = vmatprep.subr.mxu0 %v469
        %621 = vmatpush1.msra.mxu0 %v468
        %622 = vmatprep.subr.mxu0 %v473
        %623 = vmatpush1.msra.mxu0 %v472
        %624 = vmatprep.subr.mxu0 %v477
        %625 = vmatpush1.msra.mxu0 %v476
        %626 = vmatprep.subr.mxu0 0.0
        %627 = vmatpush1.msra.mxu0 0.0
        %628 = vmatprep.subr.mxu0 0.0
        %629 = vmatpush1.msra.mxu0 0.0
        %630 = vmatprep.subr.mxu0 0.0
        %631 = vmatpush1.msra.mxu0 0.0
        %632 = vmatprep.subr.mxu0 0.0
        %633 = vmatpush1.msra.mxu0 0.0
        %634 = vmatprep.subr.mxu0 0.0
        %635 = vmatpush1.msra.mxu0 0.0
        %636 = vmatprep.subr.mxu0 0.0
        %637 = vmatpush1.msra.mxu0 0.0
        %638 = vmatprep.subr.mxu0 0.0
        %639 = vmatpush1.msra.mxu0 0.0
        %640 = vmatprep.subr.mxu0 0.0
        %641 = vmatpush1.msra.mxu0 0.0
        %642 = vmatprep.subr.mxu0 0.0
        %643 = vmatpush1.msra.mxu0 0.0
        %644 = vmatprep.subr.mxu0 0.0
        %645 = vmatpush1.msra.mxu0 0.0
        %646 = vmatprep.subr.mxu0 0.0
        %647 = vmatpush1.msra.mxu0 0.0
        %648 = vmatprep.subr.mxu0 0.0
        %649 = vmatpush1.msra.mxu0 0.0
        %650 = vmatprep.subr.mxu0 0.0
        %651 = vmatpush1.msra.mxu0 0.0
        %652 = vmatprep.subr.mxu0 0.0
        %653 = vmatpush1.msra.mxu0 0.0
        %654 = vmatprep.subr.mxu0 0.0
        %655 = vmatpush1.msra.mxu0 0.0
        %656 = vmatprep.subr.mxu0 0.0
        %657 = vmatpush1.msra.mxu0 0.0
        %658 = vmatprep.subr.mxu0 0.0
        %659 = vmatpush1.msra.mxu0 0.0
        %660 = vmatprep.subr.mxu0 0.0
        %661 = vmatpush1.msra.mxu0 0.0
        %662 = vmatprep.subr.mxu0 0.0
        %663 = vmatpush1.msra.mxu0 0.0
        %664 = vmatprep.subr.mxu0 0.0
        %665 = vmatpush1.msra.mxu0 0.0
        %666 = vmatprep.mubr.f32.mxu0 0.0
        %667 = vmatmul.mubr.f32.gmra.mrb[0].mxu0 %v502
        %v668 = vpop.f32.mrb[0].mxu0
        %v669 = vadd.f32 %v491, %v668
        %v670 = vpop.f32.mrb[0].mxu0
        %v671 = vadd.f32 %v495, %v670
        %672 = vmatprep.mubr.f32.mxu0 0.0
        %673 = vmatmul.mubr.f32.gmra.mrb[0].mxu0 %v505
        %v674 = vpop.f32.mrb[0].mxu0
        %v675 = vadd.f32 %v491, %v674
        %v676 = vpop.f32.mrb[0].mxu0
        %v677 = vadd.f32 %v495, %v676
        %678 = vmatprep.mubr.f32.mxu0 0.0
        %679 = vmatmul.mubr.f32.gmra.mrb[0].mxu0 %v508
        %v680 = vpop.f32.mrb[0].mxu0
        %v681 = vadd.f32 %v491, %v680
        %v682 = vpop.f32.mrb[0].mxu0
        %v683 = vadd.f32 %v495, %v682
        %684 = vmatprep.mubr.f32.mxu0 0.0
        %685 = vmatmul.mubr.f32.gmra.mrb[0].mxu0 %v511
        %v686 = vpop.f32.mrb[0].mxu0
        %v687 = vadd.f32 %v491, %v686
        %v688 = vpop.f32.mrb[0].mxu0
        %v689 = vadd.f32 %v495, %v688
        %690 = vdwg.mxu0
        %v691 = vmax.f32 %v580, 0.0
        %v692 = vmax.f32 %v582, 0.0
        %v693 = vmax.f32 %v669, 0.0
        %v694 = vmax.f32 %v671, 0.0
        %v695 = vmax.f32 %v586, 0.0
        %v696 = vmax.f32 %v588, 0.0
        %v697 = vmax.f32 %v675, 0.0
        %v698 = vmax.f32 %v677, 0.0
        %v699 = vmax.f32 %v592, 0.0
        %v700 = vmax.f32 %v594, 0.0
        %v701 = vmax.f32 %v681, 0.0
        %v702 = vmax.f32 %v683, 0.0
        %v703 = vmax.f32 %v598, 0.0
        %v704 = vmax.f32 %v600, 0.0
        %v705 = vmax.f32 %v687, 0.0
        %v706 = vmax.f32 %v689, 0.0
        %v707 = vld [vmem:[#allocation2] sm:$0xff]
        %v708 = vld [vmem:[#allocation2 + $0x8] sm:$0xff]
        %v709 = vld [vmem:[#allocation2 + $0x10] sm:$0xff]
        %v710 = vld [vmem:[#allocation2 + $0x18] sm:$0x3f]
        %v711 = vld [vmem:[%s408] sm:$0xff]
        %v712 = vld [vmem:[%s408 + $0x8] sm:$0xff]
        %v713 = vld [vmem:[%s408 + $0x10] sm:$0xff]
        %v714 = vld [vmem:[%s408 + $0x18] sm:$0xff]
        %v715 = vld [vmem:[%s408 + $0x20] sm:$0xff]
        %v716 = vld [vmem:[%s408 + $0x28] sm:$0xff]
        %v717 = vld [vmem:[%s408 + $0x30] sm:$0xff]
        %v718 = vld [vmem:[%s408 + $0x38] sm:$0xff]
        %v719 = vld [vmem:[%s408 + $0x40] sm:$0xff]
        %v720 = vld [vmem:[%s408 + $0x48] sm:$0xff]
        %v721 = vld [vmem:[%s408 + $0x50] sm:$0xff]
        %v722 = vld [vmem:[%s408 + $0x58] sm:$0xff]
        %v723 = vld [vmem:[%s408 + $0x60] sm:$0xff]
        %v724 = vld [vmem:[%s408 + $0x68] sm:$0xff]
        %v725 = vld [vmem:[%s408 + $0x70] sm:$0xff]
        %v726 = vld [vmem:[%s408 + $0x78] sm:$0xff]
        %v727 = vld [vmem:[%s408 + $0x80] sm:$0xff]
        %v728 = vld [vmem:[%s408 + $0x88] sm:$0xff]
        %v729 = vld [vmem:[%s408 + $0x90] sm:$0xff]
        %v730 = vld [vmem:[%s408 + $0x98] sm:$0xff]
        %v731 = vld [vmem:[%s408 + $0xa0] sm:$0xff]
        %v732 = vld [vmem:[%s408 + $0xa8] sm:$0xff]
        %v733 = vld [vmem:[%s408 + $0xb0] sm:$0xff]
        %v734 = vld [vmem:[%s408 + $0xb8] sm:$0xff]
        %v735 = vld [vmem:[%s408 + $0xc0] sm:$0xff]
        %v736 = vld [vmem:[%s408 + $0xc8] sm:$0xff]
        %v737 = vld [vmem:[%s408 + $0xd0] sm:$0xff]
        %v738 = vld [vmem:[%s408 + $0xd8] sm:$0xff]
        %v739 = vld [vmem:[%s408 + $0xe0] sm:$0xff]
        %v740 = vld [vmem:[%s408 + $0xe8] sm:$0xff]
        %v741 = vld [vmem:[%s408 + $0xf0] sm:$0xff]
        %v742 = vld [vmem:[%s408 + $0xf8] sm:$0xff]
        %v743 = vld [vmem:[%s408 + $0x100] sm:$0xff]
        %v744 = vld [vmem:[%s408 + $0x108] sm:$0xff]
        %v745 = vld [vmem:[%s408 + $0x110] sm:$0xff]
        %v746 = vld [vmem:[%s408 + $0x118] sm:$0xff]
        %v747 = vld [vmem:[%s408 + $0x120] sm:$0xff]
        %v748 = vld [vmem:[%s408 + $0x128] sm:$0xff]
        %v749 = vld [vmem:[%s408 + $0x130] sm:$0xff]
        %v750 = vld [vmem:[%s408 + $0x138] sm:$0xff]
        %v751 = vld [vmem:[%s408 + $0x140] sm:$0xff]
        %v752 = vld [vmem:[%s408 + $0x148] sm:$0xff]
        %v753 = vld [vmem:[%s408 + $0x150] sm:$0xff]
        %v754 = vld [vmem:[%s408 + $0x158] sm:$0xff]
        %v755 = vld [vmem:[%s408 + $0x160] sm:$0xff]
        %v756 = vld [vmem:[%s408 + $0x168] sm:$0xff]
        %v757 = vld [vmem:[%s408 + $0x170] sm:$0xff]
        %v758 = vld [vmem:[%s408 + $0x178] sm:$0xff]
        %v759 = vld [vmem:[%s408 + $0x180] sm:$0xff]
        %v760 = vld [vmem:[%s408 + $0x188] sm:$0xff]
        %v761 = vld [vmem:[%s408 + $0x190] sm:$0xff]
        %v762 = vld [vmem:[%s408 + $0x198] sm:$0xff]
        %v763 = vld [vmem:[%s408 + $0x1a0] sm:$0xff]
        %v764 = vld [vmem:[%s408 + $0x1a8] sm:$0xff]
        %v765 = vld [vmem:[%s408 + $0x1b0] sm:$0xff]
        %v766 = vld [vmem:[%s408 + $0x1b8] sm:$0xff]
        %v767 = vld [vmem:[%s408 + $0x1c0] sm:$0xff]
        %v768 = vld [vmem:[%s408 + $0x1c8] sm:$0xff]
        %v769 = vld [vmem:[%s408 + $0x1d0] sm:$0xff]
        %v770 = vld [vmem:[%s408 + $0x1d8] sm:$0xff]
        %v771 = vld [vmem:[%s408 + $0x1e0] sm:$0xff]
        %v772 = vld [vmem:[%s408 + $0x1e8] sm:$0xff]
        %v773 = vld [vmem:[%s408 + $0x1f0] sm:$0xff]
        %v774 = vld [vmem:[%s408 + $0x1f8] sm:$0xff]
        %775 = vmatprep.subr.mxu0 0.0
        %776 = vmatpush1.msra.mxu0 %v711
        %777 = vmatprep.subr.mxu0 0.0
        %778 = vmatpush1.msra.mxu0 %v712
        %779 = vmatprep.subr.mxu0 0.0
        %780 = vmatpush1.msra.mxu0 %v713
        %781 = vmatprep.subr.mxu0 0.0
        %782 = vmatpush1.msra.mxu0 %v714
        %783 = vmatprep.subr.mxu0 0.0
        %784 = vmatpush1.msra.mxu0 %v715
        %785 = vmatprep.subr.mxu0 0.0
        %786 = vmatpush1.msra.mxu0 %v716
        %787 = vmatprep.subr.mxu0 0.0
        %788 = vmatpush1.msra.mxu0 %v717
        %789 = vmatprep.subr.mxu0 0.0
        %790 = vmatpush1.msra.mxu0 %v718
        %791 = vmatprep.subr.mxu0 0.0
        %792 = vmatpush1.msra.mxu0 %v719
        %793 = vmatprep.subr.mxu0 0.0
        %794 = vmatpush1.msra.mxu0 %v720
        %795 = vmatprep.subr.mxu0 0.0
        %796 = vmatpush1.msra.mxu0 %v721
        %797 = vmatprep.subr.mxu0 0.0
        %798 = vmatpush1.msra.mxu0 %v722
        %799 = vmatprep.subr.mxu0 0.0
        %800 = vmatpush1.msra.mxu0 %v723
        %801 = vmatprep.subr.mxu0 0.0
        %802 = vmatpush1.msra.mxu0 %v724
        %803 = vmatprep.subr.mxu0 0.0
        %804 = vmatpush1.msra.mxu0 %v725
        %805 = vmatprep.subr.mxu0 0.0
        %806 = vmatpush1.msra.mxu0 %v726
        %807 = vmatprep.subr.mxu0 0.0
        %808 = vmatpush1.msra.mxu0 %v727
        %809 = vmatprep.subr.mxu0 0.0
        %810 = vmatpush1.msra.mxu0 %v728
        %811 = vmatprep.subr.mxu0 0.0
        %812 = vmatpush1.msra.mxu0 %v729
        %813 = vmatprep.subr.mxu0 0.0
        %814 = vmatpush1.msra.mxu0 %v730
        %815 = vmatprep.subr.mxu0 0.0
        %816 = vmatpush1.msra.mxu0 %v731
        %817 = vmatprep.subr.mxu0 0.0
        %818 = vmatpush1.msra.mxu0 %v732
        %819 = vmatprep.subr.mxu0 0.0
        %820 = vmatpush1.msra.mxu0 %v733
        %821 = vmatprep.subr.mxu0 0.0
        %822 = vmatpush1.msra.mxu0 %v734
        %823 = vmatprep.subr.mxu0 0.0
        %824 = vmatpush1.msra.mxu0 %v735
        %825 = vmatprep.subr.mxu0 0.0
        %826 = vmatpush1.msra.mxu0 %v736
        %827 = vmatprep.subr.mxu0 0.0
        %828 = vmatpush1.msra.mxu0 %v737
        %829 = vmatprep.subr.mxu0 0.0
        %830 = vmatpush1.msra.mxu0 %v738
        %831 = vmatprep.subr.mxu0 0.0
        %832 = vmatpush1.msra.mxu0 %v739
        %833 = vmatprep.subr.mxu0 0.0
        %834 = vmatpush1.msra.mxu0 %v740
        %835 = vmatprep.subr.mxu0 0.0
        %836 = vmatpush1.msra.mxu0 %v741
        %837 = vmatprep.subr.mxu0 0.0
        %838 = vmatpush1.msra.mxu0 %v742
        %839 = vmatprep.mubr.f32.mxu0 %v692
        %840 = vmatmul.mubr.f32.gmra.mrb[0].mxu0 %v691
        %v841 = vpop.f32.mrb[0].mxu0
        %v842 = vadd.f32 0.0, %v841
        %v843 = vpop.f32.mrb[0].mxu0
        %844 = vmatprep.mubr.f32.mxu0 %v696
        %845 = vmatmul.mubr.f32.gmra.mrb[0].mxu0 %v695
        %v846 = vpop.f32.mrb[0].mxu0
        %v847 = vadd.f32 0.0, %v846
        %v848 = vpop.f32.mrb[0].mxu0
        %849 = vmatprep.mubr.f32.mxu0 %v700
        %850 = vmatmul.mubr.f32.gmra.mrb[0].mxu0 %v699
        %v851 = vpop.f32.mrb[0].mxu0
        %v852 = vadd.f32 0.0, %v851
        %v853 = vpop.f32.mrb[0].mxu0
        %854 = vmatprep.mubr.f32.mxu0 %v704
        %855 = vmatmul.mubr.f32.gmra.mrb[0].mxu0 %v703
        %v856 = vpop.f32.mrb[0].mxu0
        %v857 = vadd.f32 0.0, %v856
        %v858 = vpop.f32.mrb[0].mxu0
        %859 = vdwg.mxu0
        %860 = vmatprep.subr.mxu0 0.0
        %861 = vmatpush1.msra.mxu0 %v743
        %862 = vmatprep.subr.mxu0 0.0
        %863 = vmatpush1.msra.mxu0 %v744
        %864 = vmatprep.subr.mxu0 0.0
        %865 = vmatpush1.msra.mxu0 %v745
        %866 = vmatprep.subr.mxu0 0.0
        %867 = vmatpush1.msra.mxu0 %v746
        %868 = vmatprep.subr.mxu0 0.0
        %869 = vmatpush1.msra.mxu0 %v747
        %870 = vmatprep.subr.mxu0 0.0
        %871 = vmatpush1.msra.mxu0 %v748
        %872 = vmatprep.subr.mxu0 0.0
        %873 = vmatpush1.msra.mxu0 %v749
        %874 = vmatprep.subr.mxu0 0.0
        %875 = vmatpush1.msra.mxu0 %v750
        %876 = vmatprep.subr.mxu0 0.0
        %877 = vmatpush1.msra.mxu0 %v751
        %878 = vmatprep.subr.mxu0 0.0
        %879 = vmatpush1.msra.mxu0 %v752
        %880 = vmatprep.subr.mxu0 0.0
        %881 = vmatpush1.msra.mxu0 %v753
        %882 = vmatprep.subr.mxu0 0.0
        %883 = vmatpush1.msra.mxu0 %v754
        %884 = vmatprep.subr.mxu0 0.0
        %885 = vmatpush1.msra.mxu0 %v755
        %886 = vmatprep.subr.mxu0 0.0
        %887 = vmatpush1.msra.mxu0 %v756
        %888 = vmatprep.subr.mxu0 0.0
        %889 = vmatpush1.msra.mxu0 %v757
        %890 = vmatprep.subr.mxu0 0.0
        %891 = vmatpush1.msra.mxu0 %v758
        %892 = vmatprep.subr.mxu0 0.0
        %893 = vmatpush1.msra.mxu0 %v759
        %894 = vmatprep.subr.mxu0 0.0
        %895 = vmatpush1.msra.mxu0 %v760
        %896 = vmatprep.subr.mxu0 0.0
        %897 = vmatpush1.msra.mxu0 %v761
        %898 = vmatprep.subr.mxu0 0.0
        %899 = vmatpush1.msra.mxu0 %v762
        %900 = vmatprep.subr.mxu0 0.0
        %901 = vmatpush1.msra.mxu0 %v763
        %902 = vmatprep.subr.mxu0 0.0
        %903 = vmatpush1.msra.mxu0 %v764
        %904 = vmatprep.subr.mxu0 0.0
        %905 = vmatpush1.msra.mxu0 %v765
        %906 = vmatprep.subr.mxu0 0.0
        %907 = vmatpush1.msra.mxu0 %v766
        %908 = vmatprep.subr.mxu0 0.0
        %909 = vmatpush1.msra.mxu0 %v767
        %910 = vmatprep.subr.mxu0 0.0
        %911 = vmatpush1.msra.mxu0 %v768
        %912 = vmatprep.subr.mxu0 0.0
        %913 = vmatpush1.msra.mxu0 %v769
        %914 = vmatprep.subr.mxu0 0.0
        %915 = vmatpush1.msra.mxu0 %v770
        %916 = vmatprep.subr.mxu0 0.0
        %917 = vmatpush1.msra.mxu0 %v771
        %918 = vmatprep.subr.mxu0 0.0
        %919 = vmatpush1.msra.mxu0 %v772
        %920 = vmatprep.subr.mxu0 0.0
        %921 = vmatpush1.msra.mxu0 %v773
        %922 = vmatprep.subr.mxu0 0.0
        %923 = vmatpush1.msra.mxu0 %v774
        %924 = vmatprep.mubr.f32.mxu0 %v694
        %925 = vmatmul.mubr.f32.gmra.mrb[0].mxu0 %v693
        %v926 = vpop.f32.mrb[0].mxu0
        %v927 = vadd.f32 %v842, %v926
        %v928 = vpop.f32.mrb[0].mxu0
        %929 = vmatprep.mubr.f32.mxu0 %v698
        %930 = vmatmul.mubr.f32.gmra.mrb[0].mxu0 %v697
        %v931 = vpop.f32.mrb[0].mxu0
        %v932 = vadd.f32 %v847, %v931
        %v933 = vpop.f32.mrb[0].mxu0
        %934 = vmatprep.mubr.f32.mxu0 %v702
        %935 = vmatmul.mubr.f32.gmra.mrb[0].mxu0 %v701
        %v936 = vpop.f32.mrb[0].mxu0
        %v937 = vadd.f32 %v852, %v936
        %v938 = vpop.f32.mrb[0].mxu0
        %939 = vmatprep.mubr.f32.mxu0 %v706
        %940 = vmatmul.mubr.f32.gmra.mrb[0].mxu0 %v705
        %v941 = vpop.f32.mrb[0].mxu0
        %v942 = vadd.f32 %v857, %v941
        %v943 = vpop.f32.mrb[0].mxu0
        %944 = vdwg.mxu0
        %v945 = vadd.f32 %v707, %v927
        %v946 = vadd.f32 %v708, %v932
        %v947 = vadd.f32 %v709, %v937
        %v948 = vadd.f32 %v710, %v942
        %vm949 = vcmask 261120
        %950 = vst.msk [vmem:[#allocation2] sm:$0xff] %vm949, %v945
        %951 = vst.msk [vmem:[#allocation2 + $0x8] sm:$0xff] %vm949, %v946
        %952 = vst.msk [vmem:[#allocation2 + $0x10] sm:$0xff] %vm949, %v947
        %vm953 = vcmask 259072
        %954 = vst.msk [vmem:[#allocation2 + $0x18] sm:$0x3f] %vm953, %v948
        %p955 = scmp.eq.s32.totalorder %s21, 3
        // Predicated region
        $region68: #{hcfh_forward.16} parent=58 // pred_check
          %p956 = pneg %p955
        $region69: #{hcfh_forward.16} parent=58 // pred_check_branch
          %958 = sbr.rel (%p956) target = $region71
        $region70: #{hcfh_forward.16} parent=58 // pred_region
          %v959 = vld [vmem:[#allocation2] sm:$0xff]
          %v960 = vld [vmem:[#allocation2 + $0x8] sm:$0xff]
          %v961 = vld [vmem:[#allocation2 + $0x10] sm:$0xff]
          %v962 = vld [vmem:[#allocation2 + $0x18] sm:$0x3f]
          %v963 = vld [vmem:[%s4] sm:$0x1]
          %v965 = vlaneseq
          %v966 = vshrl.u32 %v965, 7
          %v967 = vsub.s32 0, %v966
          %v968 = vrot.slane %v963, %v967
          %v970 = vadd.f32 %v959, %v968
          %v971 = vadd.f32 %v960, %v968
          %v972 = vadd.f32 %v961, %v968
          %v973 = vadd.f32 %v962, %v968
          %v974 = vmax.f32 %v970, 0.0
          %v975 = vmax.f32 %v971, 0.0
          %v976 = vmax.f32 %v972, 0.0
          %v977 = vmax.f32 %v973, 0.0
          %978 = vst.msk [vmem:[%s414] sm:$0xff] %vm949, %v974
          %979 = vst.msk [vmem:[%s414 + $0x8] sm:$0xff] %vm949, %v975
          %980 = vst.msk [vmem:[%s414 + $0x10] sm:$0xff] %vm949, %v976
          %981 = vst.msk [vmem:[%s414 + $0x18] sm:$0x3f] %vm953, %v977
        $region71: #{hcfh_forward.16} parent=58 // pred_fallthru
          _
        %s982 = smul.u32 4, %s20
        %p983 = scmp.lt.s32.totalorder %s982, 3
        %s984 = scalar_select %p983, %s982, 3
        %s985 = smul.addr %s984, 8
        %s986 = scalar_lea.vmem %s5, %s985
        // Predicated region
        $region72: #{hcfh_forward.16} parent=58 // pred_check
          %p987 = pneg %p171
        $region73: #{hcfh_forward.16} parent=58 // pred_check_branch
          %989 = sbr.rel (%p987) target = $region75
        $region74: #{hcfh_forward.16} parent=58 // pred_region
          %s990 = smul.u32 4, %s20
        $region75: #{hcfh_forward.16} parent=58 // pred_fallthru
          _
        // Predicated region
        $region76: #{hcfh_forward.16} parent=58 // pred_check
          %p991 = pneg %p171
        $region77: #{hcfh_forward.16} parent=58 // pred_check_branch
          %993 = sbr.rel (%p991) target = $region79
        $region78: #{hcfh_forward.16} parent=58 // pred_region
          %s994 = smul.u32 4, %s20
          %p995 = scmp.lt.s32.totalorder %s994, 3
          %s996 = scalar_select %p995, %s994, 3
          %s997 = smul.addr %s996, 8
          %s998 = scalar_lea.vmem %s5, %s997
        $region79: #{hcfh_forward.16} parent=58 // pred_fallthru
          _
      $region59: #{hcfh_forward.16} parent=5 // pred_fallthru
        _
      %p999 = scmp.le.s32.totalorder 2, %s11
      // Predicated region
      $region80: #{hcfh_forward.16} parent=5 // pred_check
        %p1000 = pneg %p999
      $region81: #{hcfh_forward.16} parent=5 // pred_check_branch
        %1002 = sbr.rel (%p1000) target = $region83
      $region82: #{hcfh_forward.16} parent=5 // pred_region
        %s1003 = ssub.s32 %s11, 2
      $region83: #{hcfh_forward.16} parent=5 // pred_fallthru
        _
    $region6: #{hcfh_forward.16} parent=1 // loop_footer
      %s15 = sadd.s32 1, %s11
    $region7: #{hcfh_forward.16} parent=1 // loop_footer_branch
      %10 = sbr.rel target = $region3
    $region8: #{hcfh_forward.16} parent=1 // loop_exit
      _

// kernel: hcfh_forward.17
$region0: #{hcfh_forward.17}
  #allocation0 [shape = 'u32[]', space=smem, size = 0x4, offset = 0x4, fixed_abs, tag = 'smem constant byte address 0x4 - core index']
  #allocation1 [shape = 'u32[144,128]{1,0:T(1,128)}', space=vmem, size = 0x12000, scoped, tag = 'internal scratch']
  %s0 = inlined_call_operand.vmem [shape: f32[6,32], index: 0, kind: input, shape index: {}]
  %s1 = inlined_call_operand.vmem [shape: f32[6,4,32], index: 1, kind: input, shape index: {}]
  %s2 = inlined_call_operand.vmem [shape: f32[6,4], index: 2, kind: input, shape index: {}]
  %s3 = inlined_call_operand.vmem [shape: f32[6,32], index: 3, kind: output, shape index: {}]
  %s4 = sld [smem:[#allocation0]]
  $region22: #{hcfh_forward.17} parent=0
    _
  %s6 = ssub.s32 1, %s4
  %s7 = scalar_select 0, %s6, %s4
  // Predicated region
  $region2: #{hcfh_forward.17} parent=0 // pred_check
    _
  $region3: #{hcfh_forward.17} parent=0 // pred_check_branch
    %9 = sbr.rel (0) target = $region5
  $region4: #{hcfh_forward.17} parent=0 // pred_region
    _
  $region5: #{hcfh_forward.17} parent=0 // pred_fallthru
    _
  // Predicated region
  $region6: #{hcfh_forward.17} parent=0 // pred_check
    _
  $region7: #{hcfh_forward.17} parent=0 // pred_check_branch
    %11 = sbr.rel (0) target = $region9
  $region8: #{hcfh_forward.17} parent=0 // pred_region
    _
  $region9: #{hcfh_forward.17} parent=0 // pred_fallthru
    _
  // Predicated region
  $region10: #{hcfh_forward.17} parent=0 // pred_check
    _
  $region11: #{hcfh_forward.17} parent=0 // pred_check_branch
    %13 = sbr.rel (0) target = $region13
  $region12: #{hcfh_forward.17} parent=0 // pred_region
    _
  $region13: #{hcfh_forward.17} parent=0 // pred_fallthru
    _
  %v14 = vld [vmem:[%s1] sm:$0xf]
  %v15 = vld [vmem:[%s1 + $0x4] sm:$0xf]
  %v16 = vld [vmem:[%s1 + $0x8] sm:$0xf]
  %v17 = vld [vmem:[%s1 + $0xc] sm:$0xf]
  %v18 = vld [vmem:[%s1 + $0x10] sm:$0xf]
  %v19 = vld [vmem:[%s1 + $0x14] sm:$0xf]
  %v20 = vld [vmem:[%s2] sm:$0x3f]
  %v21 = vld [vmem:[%s0] sm:$0x3f]
  %v22 = vlaneseq
  %v23 = vshrl.u32 %v22, 7
  %v24 = vsub.s32 0, %v23
  %v25 = vrot.slane %v20, %v24
  %27 = vbcast.lane.b32.xlu0 %v25, 256
  %v28 = vpop.permute.xlu0 %27
  %v29 = vlaneseq
  %v30 = vshrl.u32 %v29, 7
  %v31 = vsub.s32 1, %v30
  %v32 = vrot.slane %v20, %v31
  %34 = vbcast.lane.b32.xlu0 %v32, 256
  %v35 = vpop.permute.xlu0 %34
  %v36 = vlaneseq
  %v37 = vshrl.u32 %v36, 7
  %v38 = vsub.s32 2, %v37
  %v39 = vrot.slane %v20, %v38
  %41 = vbcast.lane.b32.xlu0 %v39, 256
  %v42 = vpop.permute.xlu0 %41
  %v43 = vlaneseq
  %v44 = vshrl.u32 %v43, 7
  %v45 = vsub.s32 3, %v44
  %v46 = vrot.slane %v20, %v45
  %48 = vbcast.lane.b32.xlu0 %v46, 256
  %v49 = vpop.permute.xlu0 %48
  %v50 = vlaneseq
  %v51 = vshrl.u32 %v50, 7
  %v52 = vsub.s32 4, %v51
  %v53 = vrot.slane %v20, %v52
  %55 = vbcast.lane.b32.xlu0 %v53, 256
  %v56 = vpop.permute.xlu0 %55
  %v57 = vlaneseq
  %v58 = vshrl.u32 %v57, 7
  %v59 = vsub.s32 5, %v58
  %v60 = vrot.slane %v20, %v59
  %62 = vbcast.lane.b32.xlu0 %v60, 256
  %v63 = vpop.permute.xlu0 %62
  %v64 = vmul.f32 %v14, %v28
  %v65 = vmul.f32 %v15, %v35
  %v66 = vmul.f32 %v16, %v42
  %v67 = vmul.f32 %v17, %v49
  %v68 = vmul.f32 %v18, %v56
  %v69 = vmul.f32 %v19, %v63
  %vm70 = vcmask 257024
  %v71 = vsel %vm70, %v64, 0.0
  %v72 = vrot.slane %v71, 4
  %v73 = vadd.f32 %v71, %v72
  %v74 = vrot.slane %v73, 2
  %v75 = vadd.f32 %v73, %v74
  %v76 = vrot.slane %v75, 1
  %v77 = vadd.f32 %v75, %v76
  %v78 = vsel %vm70, %v65, 0.0
  %v79 = vrot.slane %v78, 4
  %v80 = vadd.f32 %v78, %v79
  %v81 = vrot.slane %v80, 2
  %v82 = vadd.f32 %v80, %v81
  %v83 = vrot.slane %v82, 1
  %v84 = vadd.f32 %v82, %v83
  %v85 = vsel %vm70, %v66, 0.0
  %v86 = vrot.slane %v85, 4
  %v87 = vadd.f32 %v85, %v86
  %v88 = vrot.slane %v87, 2
  %v89 = vadd.f32 %v87, %v88
  %v90 = vrot.slane %v89, 1
  %v91 = vadd.f32 %v89, %v90
  %v92 = vsel %vm70, %v67, 0.0
  %v93 = vrot.slane %v92, 4
  %v94 = vadd.f32 %v92, %v93
  %v95 = vrot.slane %v94, 2
  %v96 = vadd.f32 %v94, %v95
  %v97 = vrot.slane %v96, 1
  %v98 = vadd.f32 %v96, %v97
  %v99 = vsel %vm70, %v68, 0.0
  %v100 = vrot.slane %v99, 4
  %v101 = vadd.f32 %v99, %v100
  %v102 = vrot.slane %v101, 2
  %v103 = vadd.f32 %v101, %v102
  %v104 = vrot.slane %v103, 1
  %v105 = vadd.f32 %v103, %v104
  %v106 = vsel %vm70, %v69, 0.0
  %v107 = vrot.slane %v106, 4
  %v108 = vadd.f32 %v106, %v107
  %v109 = vrot.slane %v108, 2
  %v110 = vadd.f32 %v108, %v109
  %v111 = vrot.slane %v110, 1
  %v112 = vadd.f32 %v110, %v111
  %vm119 = vcmask 1041409
  %v120 = vsel %vm119, %v84, %v77
  %vm121 = vcmask 1042434
  %v122 = vsel %vm121, %v91, %v120
  %vm123 = vcmask 1043459
  %v124 = vsel %vm123, %v98, %v122
  %vm125 = vcmask 1044484
  %v126 = vsel %vm125, %v105, %v124
  %vm127 = vcmask 1045509
  %v128 = vsel %vm127, %v112, %v126
  %v130 = vadd.f32 %v21, %v128
  %vm131 = vcmask 29696
  %v132 = vsel %vm131, %v20, 0.0
  %133 = vadd.xlane.f32.xlu0 %v132
  %v134 = vpop.xlane.xlu0 %133
  %v135 = vadd.f32 %v134, 1.0
  %v136 = vrcp.pop %v135
  %v137 = vmul.f32 %v130, %v136
  %vm138 = vcmask 259072
  %139 = vst.msk [vmem:[%s3] sm:$0x3f] %vm138, %v137
  // Predicated region
  $region14: #{hcfh_forward.17} parent=0 // pred_check
    _
  $region15: #{hcfh_forward.17} parent=0 // pred_check_branch
    %141 = sbr.rel (0) target = $region17
  $region16: #{hcfh_forward.17} parent=0 // pred_region
    _
  $region17: #{hcfh_forward.17} parent=0 // pred_fallthru
    _
  // Predicated region
  $region18: #{hcfh_forward.17} parent=0 // pred_check
    _
  $region19: #{hcfh_forward.17} parent=0 // pred_check_branch
    %143 = sbr.rel (0) target = $region21
  $region20: #{hcfh_forward.17} parent=0 // pred_region
    _
  $region21: #{hcfh_forward.17} parent=0 // pred_fallthru
    _

// kernel: hcfh_forward.18
$region0: #{hcfh_forward.18}
  #allocation0 [shape = 'u32[]', space=smem, size = 0x4, offset = 0x4, fixed_abs, tag = 'smem constant byte address 0x4 - core index']
  #allocation1 [shape = 'u32[144,128]{1,0:T(1,128)}', space=vmem, size = 0x12000, scoped, tag = 'internal scratch']
  %s0 = inlined_call_operand.vmem [shape: f32[16,32], index: 0, kind: input, shape index: {}]
  %s1 = inlined_call_operand.vmem [shape: f32[32,32], index: 1, kind: input, shape index: {}]
  %s2 = inlined_call_operand.vmem [shape: f32[1,32], index: 2, kind: input, shape index: {}]
  %s3 = inlined_call_operand.vmem [shape: f32[16,32], index: 3, kind: output, shape index: {}]
  %s4 = sld [smem:[#allocation0]]
  $region22: #{hcfh_forward.18} parent=0
    _
  %s6 = ssub.s32 1, %s4
  %s7 = scalar_select 0, %s6, %s4
  // Predicated region
  $region2: #{hcfh_forward.18} parent=0 // pred_check
    _
  $region3: #{hcfh_forward.18} parent=0 // pred_check_branch
    %9 = sbr.rel (0) target = $region5
  $region4: #{hcfh_forward.18} parent=0 // pred_region
    _
  $region5: #{hcfh_forward.18} parent=0 // pred_fallthru
    _
  // Predicated region
  $region6: #{hcfh_forward.18} parent=0 // pred_check
    _
  $region7: #{hcfh_forward.18} parent=0 // pred_check_branch
    %11 = sbr.rel (0) target = $region9
  $region8: #{hcfh_forward.18} parent=0 // pred_region
    _
  $region9: #{hcfh_forward.18} parent=0 // pred_fallthru
    _
  // Predicated region
  $region10: #{hcfh_forward.18} parent=0 // pred_check
    _
  $region11: #{hcfh_forward.18} parent=0 // pred_check_branch
    %13 = sbr.rel (0) target = $region13
  $region12: #{hcfh_forward.18} parent=0 // pred_region
    _
  $region13: #{hcfh_forward.18} parent=0 // pred_fallthru
    _
  %v14 = vld [vmem:[%s0] sm:$0xff]
  %v15 = vld [vmem:[%s0 + $0x8] sm:$0xff]
  %v16 = vld [vmem:[%s1] sm:$0xff]
  %v17 = vld [vmem:[%s1 + $0x8] sm:$0xff]
  %v18 = vld [vmem:[%s1 + $0x10] sm:$0xff]
  %v19 = vld [vmem:[%s1 + $0x18] sm:$0xff]
  %v20 = vld [vmem:[%s2] sm:$0x1]
  %v22 = vlaneseq
  %v23 = vshrl.u32 %v22, 7
  %v24 = vsub.s32 0, %v23
  %v25 = vrot.slane %v20, %v24
  %vm27 = vcmask 261120
  %v29 = vsel %vm27, %v14, 0
  %v32 = vsel %vm27, %v15, 0
  %34 = vmatprep.subr.mxu0 0.0
  %35 = vmatpush1.msra.mxu0 %v16
  %36 = vmatprep.subr.mxu0 0.0
  %37 = vmatpush1.msra.mxu0 %v17
  %38 = vmatprep.subr.mxu0 0.0
  %39 = vmatpush1.msra.mxu0 %v18
  %40 = vmatprep.subr.mxu0 0.0
  %41 = vmatpush1.msra.mxu0 %v19
  %42 = vmatprep.subr.mxu0 0.0
  %43 = vmatpush1.msra.mxu0 0.0
  %44 = vmatprep.subr.mxu0 0.0
  %45 = vmatpush1.msra.mxu0 0.0
  %46 = vmatprep.subr.mxu0 0.0
  %47 = vmatpush1.msra.mxu0 0.0
  %48 = vmatprep.subr.mxu0 0.0
  %49 = vmatpush1.msra.mxu0 0.0
  %50 = vmatprep.subr.mxu0 0.0
  %51 = vmatpush1.msra.mxu0 0.0
  %52 = vmatprep.subr.mxu0 0.0
  %53 = vmatpush1.msra.mxu0 0.0
  %54 = vmatprep.subr.mxu0 0.0
  %55 = vmatpush1.msra.mxu0 0.0
  %56 = vmatprep.subr.mxu0 0.0
  %57 = vmatpush1.msra.mxu0 0.0
  %58 = vmatprep.subr.mxu0 0.0
  %59 = vmatpush1.msra.mxu0 0.0
  %60 = vmatprep.subr.mxu0 0.0
  %61 = vmatpush1.msra.mxu0 0.0
  %62 = vmatprep.subr.mxu0 0.0
  %63 = vmatpush1.msra.mxu0 0.0
  %64 = vmatprep.subr.mxu0 0.0
  %65 = vmatpush1.msra.mxu0 0.0
  %66 = vmatprep.subr.mxu0 0.0
  %67 = vmatpush1.msra.mxu0 0.0
  %68 = vmatprep.subr.mxu0 0.0
  %69 = vmatpush1.msra.mxu0 0.0
  %70 = vmatprep.subr.mxu0 0.0
  %71 = vmatpush1.msra.mxu0 0.0
  %72 = vmatprep.subr.mxu0 0.0
  %73 = vmatpush1.msra.mxu0 0.0
  %74 = vmatprep.subr.mxu0 0.0
  %75 = vmatpush1.msra.mxu0 0.0
  %76 = vmatprep.subr.mxu0 0.0
  %77 = vmatpush1.msra.mxu0 0.0
  %78 = vmatprep.subr.mxu0 0.0
  %79 = vmatpush1.msra.mxu0 0.0
  %80 = vmatprep.subr.mxu0 0.0
  %81 = vmatpush1.msra.mxu0 0.0
  %82 = vmatprep.subr.mxu0 0.0
  %83 = vmatpush1.msra.mxu0 0.0
  %84 = vmatprep.subr.mxu0 0.0
  %85 = vmatpush1.msra.mxu0 0.0
  %86 = vmatprep.subr.mxu0 0.0
  %87 = vmatpush1.msra.mxu0 0.0
  %88 = vmatprep.subr.mxu0 0.0
  %89 = vmatpush1.msra.mxu0 0.0
  %90 = vmatprep.subr.mxu0 0.0
  %91 = vmatpush1.msra.mxu0 0.0
  %92 = vmatprep.subr.mxu0 0.0
  %93 = vmatpush1.msra.mxu0 0.0
  %94 = vmatprep.subr.mxu0 0.0
  %95 = vmatpush1.msra.mxu0 0.0
  %96 = vmatprep.subr.mxu0 0.0
  %97 = vmatpush1.msra.mxu0 0.0
  %98 = vmatprep.mubr.f32.mxu0 0.0
  %99 = vmatmul.mubr.f32.gmra.mrb[0].mxu0 %v29
  %v100 = vpop.f32.mrb[0].mxu0
  %v101 = vadd.f32 %v25, %v100
  %v102 = vpop.f32.mrb[0].mxu0
  %103 = vmatprep.mubr.f32.mxu0 0.0
  %104 = vmatmul.mubr.f32.gmra.mrb[0].mxu0 %v32
  %v105 = vpop.f32.mrb[0].mxu0
  %v106 = vadd.f32 %v25, %v105
  %v107 = vpop.f32.mrb[0].mxu0
  %108 = vdwg.mxu0
  %109 = vst.msk [vmem:[%s3] sm:$0xff] %vm27, %v101
  %110 = vst.msk [vmem:[%s3 + $0x8] sm:$0xff] %vm27, %v106
  // Predicated region
  $region14: #{hcfh_forward.18} parent=0 // pred_check
    _
  $region15: #{hcfh_forward.18} parent=0 // pred_check_branch
    %112 = sbr.rel (0) target = $region17
  $region16: #{hcfh_forward.18} parent=0 // pred_region
    _
  $region17: #{hcfh_forward.18} parent=0 // pred_fallthru
    _
  // Predicated region
  $region18: #{hcfh_forward.18} parent=0 // pred_check
    _
  $region19: #{hcfh_forward.18} parent=0 // pred_check_branch
    %114 = sbr.rel (0) target = $region21
  $region20: #{hcfh_forward.18} parent=0 // pred_region
    _
  $region21: #{hcfh_forward.18} parent=0 // pred_fallthru
    _

// kernel: hcfh_forward.12
$region0: #{hcfh_forward.12}
  #allocation0 [shape = 'u32[]', space=smem, size = 0x4, offset = 0x4, fixed_abs, tag = 'smem constant byte address 0x4 - core index']
  #allocation1 [shape = 'u32[144,128]{1,0:T(1,128)}', space=vmem, size = 0x12000, scoped, tag = 'internal scratch']
  %s0 = inlined_call_operand.vmem [shape: f32[16,64], index: 0, kind: input, shape index: {}]
  %s1 = inlined_call_operand.vmem [shape: f32[64,32], index: 1, kind: input, shape index: {}]
  %s2 = inlined_call_operand.vmem [shape: f32[1,32], index: 2, kind: input, shape index: {}]
  %s3 = inlined_call_operand.vmem [shape: f32[16,32], index: 3, kind: output, shape index: {}]
  %s4 = sld [smem:[#allocation0]]
  $region22: #{hcfh_forward.12} parent=0
    _
  %s6 = ssub.s32 1, %s4
  %s7 = scalar_select 0, %s6, %s4
  // Predicated region
  $region2: #{hcfh_forward.12} parent=0 // pred_check
    _
  $region3: #{hcfh_forward.12} parent=0 // pred_check_branch
    %9 = sbr.rel (0) target = $region5
  $region4: #{hcfh_forward.12} parent=0 // pred_region
    _
  $region5: #{hcfh_forward.12} parent=0 // pred_fallthru
    _
  // Predicated region
  $region6: #{hcfh_forward.12} parent=0 // pred_check
    _
  $region7: #{hcfh_forward.12} parent=0 // pred_check_branch
    %11 = sbr.rel (0) target = $region9
  $region8: #{hcfh_forward.12} parent=0 // pred_region
    _
  $region9: #{hcfh_forward.12} parent=0 // pred_fallthru
    _
  // Predicated region
  $region10: #{hcfh_forward.12} parent=0 // pred_check
    _
  $region11: #{hcfh_forward.12} parent=0 // pred_check_branch
    %13 = sbr.rel (0) target = $region13
  $region12: #{hcfh_forward.12} parent=0 // pred_region
    _
  $region13: #{hcfh_forward.12} parent=0 // pred_fallthru
    _
  %v14 = vld [vmem:[%s0] sm:$0xff]
  %v15 = vld [vmem:[%s0 + $0x8] sm:$0xff]
  %v16 = vld [vmem:[%s1] sm:$0xff]
  %v17 = vld [vmem:[%s1 + $0x8] sm:$0xff]
  %v18 = vld [vmem:[%s1 + $0x10] sm:$0xff]
  %v19 = vld [vmem:[%s1 + $0x18] sm:$0xff]
  %v20 = vld [vmem:[%s1 + $0x20] sm:$0xff]
  %v21 = vld [vmem:[%s1 + $0x28] sm:$0xff]
  %v22 = vld [vmem:[%s1 + $0x30] sm:$0xff]
  %v23 = vld [vmem:[%s1 + $0x38] sm:$0xff]
  %v24 = vld [vmem:[%s2] sm:$0x1]
  %v26 = vlaneseq
  %v27 = vshrl.u32 %v26, 7
  %v28 = vsub.s32 0, %v27
  %v29 = vrot.slane %v24, %v28
  %vm31 = vcmask 523264
  %v33 = vsel %vm31, %v14, 0
  %v36 = vsel %vm31, %v15, 0
  %38 = vmatprep.subr.mxu0 0.0
  %39 = vmatpush1.msra.mxu0 %v16
  %40 = vmatprep.subr.mxu0 0.0
  %41 = vmatpush1.msra.mxu0 %v17
  %42 = vmatprep.subr.mxu0 0.0
  %43 = vmatpush1.msra.mxu0 %v18
  %44 = vmatprep.subr.mxu0 0.0
  %45 = vmatpush1.msra.mxu0 %v19
  %46 = vmatprep.subr.mxu0 0.0
  %47 = vmatpush1.msra.mxu0 %v20
  %48 = vmatprep.subr.mxu0 0.0
  %49 = vmatpush1.msra.mxu0 %v21
  %50 = vmatprep.subr.mxu0 0.0
  %51 = vmatpush1.msra.mxu0 %v22
  %52 = vmatprep.subr.mxu0 0.0
  %53 = vmatpush1.msra.mxu0 %v23
  %54 = vmatprep.subr.mxu0 0.0
  %55 = vmatpush1.msra.mxu0 0.0
  %56 = vmatprep.subr.mxu0 0.0
  %57 = vmatpush1.msra.mxu0 0.0
  %58 = vmatprep.subr.mxu0 0.0
  %59 = vmatpush1.msra.mxu0 0.0
  %60 = vmatprep.subr.mxu0 0.0
  %61 = vmatpush1.msra.mxu0 0.0
  %62 = vmatprep.subr.mxu0 0.0
  %63 = vmatpush1.msra.mxu0 0.0
  %64 = vmatprep.subr.mxu0 0.0
  %65 = vmatpush1.msra.mxu0 0.0
  %66 = vmatprep.subr.mxu0 0.0
  %67 = vmatpush1.msra.mxu0 0.0
  %68 = vmatprep.subr.mxu0 0.0
  %69 = vmatpush1.msra.mxu0 0.0
  %70 = vmatprep.subr.mxu0 0.0
  %71 = vmatpush1.msra.mxu0 0.0
  %72 = vmatprep.subr.mxu0 0.0
  %73 = vmatpush1.msra.mxu0 0.0
  %74 = vmatprep.subr.mxu0 0.0
  %75 = vmatpush1.msra.mxu0 0.0
  %76 = vmatprep.subr.mxu0 0.0
  %77 = vmatpush1.msra.mxu0 0.0
  %78 = vmatprep.subr.mxu0 0.0
  %79 = vmatpush1.msra.mxu0 0.0
  %80 = vmatprep.subr.mxu0 0.0
  %81 = vmatpush1.msra.mxu0 0.0
  %82 = vmatprep.subr.mxu0 0.0
  %83 = vmatpush1.msra.mxu0 0.0
  %84 = vmatprep.subr.mxu0 0.0
  %85 = vmatpush1.msra.mxu0 0.0
  %86 = vmatprep.subr.mxu0 0.0
  %87 = vmatpush1.msra.mxu0 0.0
  %88 = vmatprep.subr.mxu0 0.0
  %89 = vmatpush1.msra.mxu0 0.0
  %90 = vmatprep.subr.mxu0 0.0
  %91 = vmatpush1.msra.mxu0 0.0
  %92 = vmatprep.subr.mxu0 0.0
  %93 = vmatpush1.msra.mxu0 0.0
  %94 = vmatprep.subr.mxu0 0.0
  %95 = vmatpush1.msra.mxu0 0.0
  %96 = vmatprep.subr.mxu0 0.0
  %97 = vmatpush1.msra.mxu0 0.0
  %98 = vmatprep.subr.mxu0 0.0
  %99 = vmatpush1.msra.mxu0 0.0
  %100 = vmatprep.subr.mxu0 0.0
  %101 = vmatpush1.msra.mxu0 0.0
  %102 = vmatprep.mubr.f32.mxu0 0.0
  %103 = vmatmul.mubr.f32.gmra.mrb[0].mxu0 %v33
  %v104 = vpop.f32.mrb[0].mxu0
  %v105 = vadd.f32 %v29, %v104
  %v106 = vpop.f32.mrb[0].mxu0
  %107 = vmatprep.mubr.f32.mxu0 0.0
  %108 = vmatmul.mubr.f32.gmra.mrb[0].mxu0 %v36
  %v109 = vpop.f32.mrb[0].mxu0
  %v110 = vadd.f32 %v29, %v109
  %v111 = vpop.f32.mrb[0].mxu0
  %112 = vdwg.mxu0
  %v113 = vmax.f32 %v105, 0.0
  %v114 = vmax.f32 %v110, 0.0
  %vm115 = vcmask 261120
  %116 = vst.msk [vmem:[%s3] sm:$0xff] %vm115, %v113
  %117 = vst.msk [vmem:[%s3 + $0x8] sm:$0xff] %vm115, %v114
  // Predicated region
  $region14: #{hcfh_forward.12} parent=0 // pred_check
    _
  $region15: #{hcfh_forward.12} parent=0 // pred_check_branch
    %119 = sbr.rel (0) target = $region17
  $region16: #{hcfh_forward.12} parent=0 // pred_region
    _
  $region17: #{hcfh_forward.12} parent=0 // pred_fallthru
    _
  // Predicated region
  $region18: #{hcfh_forward.12} parent=0 // pred_check
    _
  $region19: #{hcfh_forward.12} parent=0 // pred_check_branch
    %121 = sbr.rel (0) target = $region21
  $region20: #{hcfh_forward.12} parent=0 // pred_region
    _
  $region21: #{hcfh_forward.12} parent=0 // pred_fallthru
    _

// kernel: hcfh_forward.19
$region0: #{hcfh_forward.19}
  #allocation0 [shape = 'u32[]', space=smem, size = 0x4, offset = 0x4, fixed_abs, tag = 'smem constant byte address 0x4 - core index']
  #allocation1 [shape = 'u32[144,128]{1,0:T(1,128)}', space=vmem, size = 0x12000, scoped, tag = 'internal scratch']
  #allocation2 [shape = 'f32[1,1]{1,0:T(1,128)S(1)}', space=vmem, size = 0x200, scoped, tag = 'scoped memory for hcfh_forward.19']
  %s0 = inlined_call_operand.vmem [shape: f32[2,3,32], index: 0, kind: input, shape index: {}]
  %s1 = inlined_call_operand.vmem [shape: f32[2,8,32], index: 1, kind: input, shape index: {}]
  %s2 = inlined_call_operand.vmem [shape: f32[2,8,32], index: 2, kind: input, shape index: {}]
  %s3 = inlined_call_operand.vmem [shape: f32[2,1,8], index: 3, kind: input, shape index: {}]
  %s4 = inlined_call_operand.vmem [shape: f32[32,32], index: 4, kind: input, shape index: {}]
  %s5 = inlined_call_operand.vmem [shape: f32[1,32], index: 5, kind: input, shape index: {}]
  %s6 = inlined_call_operand.vmem [shape: f32[1,32], index: 6, kind: input, shape index: {}]
  %s7 = inlined_call_operand.<no memory space> [shape: f32[1,1], index: 7, kind: input, shape index: {}]
  %s8 = inlined_call_operand.vmem [shape: f32[2,3,32], index: 8, kind: output, shape index: {0}]
  %s9 = inlined_call_operand.vmem [shape: f32[2,3,8], index: 9, kind: output, shape index: {1}]
  %10 = xla_tuple %s8, %s9
  %s11 = sld [smem:[#allocation0]]
  $region73: #{hcfh_forward.19} parent=0
    _
  %s13 = ssub.s32 1, %s11
  %s14 = scalar_select 0, %s13, %s11
  %v15 = vstv %s7
  %16 = vst [vmem:[#allocation2] sm:$0x1] %v15
  loop: start=0, step=1, limit=4
  $region2: #{hcfh_forward.19} parent=0 // loop_pre_header
    _
  $region3: #{hcfh_forward.19} parent=0 // loop_header
    %s18 = sphi 0, %s22
    %p19 = scmp.ge.s32.totalorder %s18, 4
    %s28 = sphi 0, %s30
    %s31 = sphi 0, %s28
    %s32 = sphi 0, %s31
    %s48 = sphi 0, %s32
    %s54 = sphi 0, %s56
    %s57 = sphi 0, %s54
    %s58 = sphi 0, %s57
    %s74 = sphi 0, %s58
    %s80 = sphi 0, %s82
    %s83 = sphi 0, %s80
    %s84 = sphi 0, %s83
    %s100 = sphi 0, %s84
    %s106 = sphi 0, %s108
    %s109 = sphi 0, %s106
    %s110 = sphi 0, %s109
    %s126 = sphi 0, %s110
    %s130 = sphi 0, %s130
    %s132 = sphi 0, %s130
    %s133 = sphi 0, %s132
    %s147 = sphi 0, %s133
    %s151 = sphi 0, %s151
    %s153 = sphi 0, %s151
    %s154 = sphi 0, %s153
    %s168 = sphi 0, %s154
    %s172 = sphi 0, %s172
    %s174 = sphi 0, %s172
    %s175 = sphi 0, %s174
    %s189 = sphi 0, %s175
    %s193 = sphi 0, %s193
    %s195 = sphi 0, %s193
    %s196 = sphi 0, %s195
    %s210 = sphi 0, %s196
    %s216 = sphi 0, %s218
    %s219 = sphi 0, %s216
    %s220 = sphi 0, %s219
    %s236 = sphi 0, %s220
    %s242 = sphi 0, %s244
    %s245 = sphi 0, %s242
    %s246 = sphi 0, %s245
    %s262 = sphi 0, %s246
  $region4: #{hcfh_forward.19} parent=0 // loop_header_branch
    %21 = sbr.rel (%p19) target = $region8
  $region5: #{hcfh_forward.19} parent=0 // loop_body
    %s23 = ssub.s32 %s18, 1
    %s24 = ssub.s32 %s18, 2
    %s25 = sadd.s32 %s18, 1
    %s26 = ssub.s32 %s18, %s25
    %p27 = scmp.eq.s32.totalorder %s26, 0
    %s29 = sadd.s32 %s28, 1
    %s30 = scalar_select %p27, %s28, %s29
    %p33 = pneg %p27
    %p34 = scmp.eq.s32.totalorder %s18, 1
    %p35 = por %p33, %p34
    %p36 = scmp.ne.s32.totalorder %s28, %s31
    %p37 = scmp.eq.s32.totalorder %s18, 0
    %p38 = por %p36, %p37
    %p39 = scmp.ne.s32.totalorder %s28, %s31
    %p40 = scmp.eq.s32.totalorder %s23, 1
    %p41 = por %p39, %p40
    %p42 = scmp.ne.s32.totalorder %s31, %s32
    %p43 = scmp.eq.s32.totalorder %s23, 0
    %p44 = por %p42, %p43
    %p45 = scmp.ne.s32.totalorder %s31, %s32
    %p46 = scmp.eq.s32.totalorder %s24, 1
    %p47 = por %p45, %p46
    %p49 = scmp.ne.s32.totalorder %s32, %s48
    %p50 = scmp.eq.s32.totalorder %s24, 0
    %p51 = por %p49, %p50
    %s52 = ssub.s32 %s18, %s25
    %p53 = scmp.eq.s32.totalorder %s52, 0
    %s55 = sadd.s32 %s54, 1
    %s56 = scalar_select %p53, %s54, %s55
    %p59 = pneg %p53
    %p60 = scmp.eq.s32.totalorder %s18, 1
    %p61 = por %p59, %p60
    %p62 = scmp.ne.s32.totalorder %s54, %s57
    %p63 = scmp.eq.s32.totalorder %s18, 0
    %p64 = por %p62, %p63
    %p65 = scmp.ne.s32.totalorder %s54, %s57
    %p66 = scmp.eq.s32.totalorder %s23, 1
    %p67 = por %p65, %p66
    %p68 = scmp.ne.s32.totalorder %s57, %s58
    %p69 = scmp.eq.s32.totalorder %s23, 0
    %p70 = por %p68, %p69
    %p71 = scmp.ne.s32.totalorder %s57, %s58
    %p72 = scmp.eq.s32.totalorder %s24, 1
    %p73 = por %p71, %p72
    %p75 = scmp.ne.s32.totalorder %s58, %s74
    %p76 = scmp.eq.s32.totalorder %s24, 0
    %p77 = por %p75, %p76
    %s78 = ssub.s32 %s18, %s25
    %p79 = scmp.eq.s32.totalorder %s78, 0
    %s81 = sadd.s32 %s80, 1
    %s82 = scalar_select %p79, %s80, %s81
    %p85 = pneg %p79
    %p86 = scmp.eq.s32.totalorder %s18, 1
    %p87 = por %p85, %p86
    %p88 = scmp.ne.s32.totalorder %s80, %s83
    %p89 = scmp.eq.s32.totalorder %s18, 0
    %p90 = por %p88, %p89
    %p91 = scmp.ne.s32.totalorder %s80, %s83
    %p92 = scmp.eq.s32.totalorder %s23, 1
    %p93 = por %p91, %p92
    %p94 = scmp.ne.s32.totalorder %s83, %s84
    %p95 = scmp.eq.s32.totalorder %s23, 0
    %p96 = por %p94, %p95
    %p97 = scmp.ne.s32.totalorder %s83, %s84
    %p98 = scmp.eq.s32.totalorder %s24, 1
    %p99 = por %p97, %p98
    %p101 = scmp.ne.s32.totalorder %s84, %s100
    %p102 = scmp.eq.s32.totalorder %s24, 0
    %p103 = por %p101, %p102
    %s104 = ssub.s32 %s18, %s25
    %p105 = scmp.eq.s32.totalorder %s104, 0
    %s107 = sadd.s32 %s106, 1
    %s108 = scalar_select %p105, %s106, %s107
    %p111 = pneg %p105
    %p112 = scmp.eq.s32.totalorder %s18, 1
    %p113 = por %p111, %p112
    %p114 = scmp.ne.s32.totalorder %s106, %s109
    %p115 = scmp.eq.s32.totalorder %s18, 0
    %p116 = por %p114, %p115
    %p117 = scmp.ne.s32.totalorder %s106, %s109
    %p118 = scmp.eq.s32.totalorder %s23, 1
    %p119 = por %p117, %p118
    %p120 = scmp.ne.s32.totalorder %s109, %s110
    %p121 = scmp.eq.s32.totalorder %s23, 0
    %p122 = por %p120, %p121
    %p123 = scmp.ne.s32.totalorder %s109, %s110
    %p124 = scmp.eq.s32.totalorder %s24, 1
    %p125 = por %p123, %p124
    %p127 = scmp.ne.s32.totalorder %s110, %s126
    %p128 = scmp.eq.s32.totalorder %s24, 0
    %p129 = por %p127, %p128
    %s131 = sadd.s32 %s130, 1
    %p134 = scmp.eq.s32.totalorder %s18, 1
    %p135 = scmp.ne.s32.totalorder %s130, %s132
    %p136 = scmp.eq.s32.totalorder %s18, 0
    %p137 = por %p135, %p136
    %p138 = scmp.ne.s32.totalorder %s130, %s132
    %p139 = scmp.eq.s32.totalorder %s23, 1
    %p140 = por %p138, %p139
    %p141 = scmp.ne.s32.totalorder %s132, %s133
    %p142 = scmp.eq.s32.totalorder %s23, 0
    %p143 = por %p141, %p142
    %p144 = scmp.ne.s32.totalorder %s132, %s133
    %p145 = scmp.eq.s32.totalorder %s24, 1
    %p146 = por %p144, %p145
    %p148 = scmp.ne.s32.totalorder %s133, %s147
    %p149 = scmp.eq.s32.totalorder %s24, 0
    %p150 = por %p148, %p149
    %s152 = sadd.s32 %s151, 1
    %p155 = scmp.eq.s32.totalorder %s18, 1
    %p156 = scmp.ne.s32.totalorder %s151, %s153
    %p157 = scmp.eq.s32.totalorder %s18, 0
    %p158 = por %p156, %p157
    %p159 = scmp.ne.s32.totalorder %s151, %s153
    %p160 = scmp.eq.s32.totalorder %s23, 1
    %p161 = por %p159, %p160
    %p162 = scmp.ne.s32.totalorder %s153, %s154
    %p163 = scmp.eq.s32.totalorder %s23, 0
    %p164 = por %p162, %p163
    %p165 = scmp.ne.s32.totalorder %s153, %s154
    %p166 = scmp.eq.s32.totalorder %s24, 1
    %p167 = por %p165, %p166
    %p169 = scmp.ne.s32.totalorder %s154, %s168
    %p170 = scmp.eq.s32.totalorder %s24, 0
    %p171 = por %p169, %p170
    %s173 = sadd.s32 %s172, 1
    %p176 = scmp.eq.s32.totalorder %s18, 1
    %p177 = scmp.ne.s32.totalorder %s172, %s174
    %p178 = scmp.eq.s32.totalorder %s18, 0
    %p179 = por %p177, %p178
    %p180 = scmp.ne.s32.totalorder %s172, %s174
    %p181 = scmp.eq.s32.totalorder %s23, 1
    %p182 = por %p180, %p181
    %p183 = scmp.ne.s32.totalorder %s174, %s175
    %p184 = scmp.eq.s32.totalorder %s23, 0
    %p185 = por %p183, %p184
    %p186 = scmp.ne.s32.totalorder %s174, %s175
    %p187 = scmp.eq.s32.totalorder %s24, 1
    %p188 = por %p186, %p187
    %p190 = scmp.ne.s32.totalorder %s175, %s189
    %p191 = scmp.eq.s32.totalorder %s24, 0
    %p192 = por %p190, %p191
    %s194 = sadd.s32 %s193, 1
    %p197 = scmp.eq.s32.totalorder %s18, 1
    %p198 = scmp.ne.s32.totalorder %s193, %s195
    %p199 = scmp.eq.s32.totalorder %s18, 0
    %p200 = por %p198, %p199
    %p201 = scmp.ne.s32.totalorder %s193, %s195
    %p202 = scmp.eq.s32.totalorder %s23, 1
    %p203 = por %p201, %p202
    %p204 = scmp.ne.s32.totalorder %s195, %s196
    %p205 = scmp.eq.s32.totalorder %s23, 0
    %p206 = por %p204, %p205
    %p207 = scmp.ne.s32.totalorder %s195, %s196
    %p208 = scmp.eq.s32.totalorder %s24, 1
    %p209 = por %p207, %p208
    %p211 = scmp.ne.s32.totalorder %s196, %s210
    %p212 = scmp.eq.s32.totalorder %s24, 0
    %p213 = por %p211, %p212
    %s214 = ssub.s32 %s18, %s25
    %p215 = scmp.eq.s32.totalorder %s214, 0
    %s217 = sadd.s32 %s216, 1
    %s218 = scalar_select %p215, %s216, %s217
    %p221 = pneg %p215
    %p222 = scmp.eq.s32.totalorder %s18, 1
    %p223 = por %p221, %p222
    %p224 = scmp.ne.s32.totalorder %s216, %s219
    %p225 = scmp.eq.s32.totalorder %s18, 0
    %p226 = por %p224, %p225
    %p227 = scmp.ne.s32.totalorder %s216, %s219
    %p228 = scmp.eq.s32.totalorder %s23, 1
    %p229 = por %p227, %p228
    %p230 = scmp.ne.s32.totalorder %s219, %s220
    %p231 = scmp.eq.s32.totalorder %s23, 0
    %p232 = por %p230, %p231
    %p233 = scmp.ne.s32.totalorder %s219, %s220
    %p234 = scmp.eq.s32.totalorder %s24, 1
    %p235 = por %p233, %p234
    %p237 = scmp.ne.s32.totalorder %s220, %s236
    %p238 = scmp.eq.s32.totalorder %s24, 0
    %p239 = por %p237, %p238
    %s240 = ssub.s32 %s18, %s25
    %p241 = scmp.eq.s32.totalorder %s240, 0
    %s243 = sadd.s32 %s242, 1
    %s244 = scalar_select %p241, %s242, %s243
    %p247 = pneg %p241
    %p248 = scmp.eq.s32.totalorder %s18, 1
    %p249 = por %p247, %p248
    %p250 = scmp.ne.s32.totalorder %s242, %s245
    %p251 = scmp.eq.s32.totalorder %s18, 0
    %p252 = por %p250, %p251
    %p253 = scmp.ne.s32.totalorder %s242, %s245
    %p254 = scmp.eq.s32.totalorder %s23, 1
    %p255 = por %p253, %p254
    %p256 = scmp.ne.s32.totalorder %s245, %s246
    %p257 = scmp.eq.s32.totalorder %s23, 0
    %p258 = por %p256, %p257
    %p259 = scmp.ne.s32.totalorder %s245, %s246
    %p260 = scmp.eq.s32.totalorder %s24, 1
    %p261 = por %p259, %p260
    %p263 = scmp.ne.s32.totalorder %s246, %s262
    %p264 = scmp.eq.s32.totalorder %s24, 0
    %p265 = por %p263, %p264
    %p266 = scmp.le.s32.totalorder 1, %s18
    %p267 = scmp.lt.s32.totalorder %s18, 3
    %p268 = pnand %p266, %p267
    %p269 = pneg %p268
    // Predicated region
    $region9: #{hcfh_forward.19} parent=5 // pred_check
      _
    $region10: #{hcfh_forward.19} parent=5 // pred_check_branch
      %271 = sbr.rel (%p268) target = $region12
    $region11: #{hcfh_forward.19} parent=5 // pred_region
      %s272 = ssub.s32 %s18, 1
      // Predicated region
      $region13: #{hcfh_forward.19} parent=11 // pred_check
        %p273 = pneg %p143
      $region14: #{hcfh_forward.19} parent=11 // pred_check_branch
        %275 = sbr.rel (%p273) target = $region16
      $region15: #{hcfh_forward.19} parent=11 // pred_region
        _
      $region16: #{hcfh_forward.19} parent=11 // pred_fallthru
        _
      // Predicated region
      $region17: #{hcfh_forward.19} parent=11 // pred_check
        %p276 = pneg %p164
      $region18: #{hcfh_forward.19} parent=11 // pred_check_branch
        %278 = sbr.rel (%p276) target = $region20
      $region19: #{hcfh_forward.19} parent=11 // pred_region
        _
      $region20: #{hcfh_forward.19} parent=11 // pred_fallthru
        _
      // Predicated region
      $region21: #{hcfh_forward.19} parent=11 // pred_check
        %p279 = pneg %p185
      $region22: #{hcfh_forward.19} parent=11 // pred_check_branch
        %281 = sbr.rel (%p279) target = $region24
      $region23: #{hcfh_forward.19} parent=11 // pred_region
        _
      $region24: #{hcfh_forward.19} parent=11 // pred_fallthru
        _
      // Predicated region
      $region25: #{hcfh_forward.19} parent=11 // pred_check
        %p282 = pneg %p206
      $region26: #{hcfh_forward.19} parent=11 // pred_check_branch
        %284 = sbr.rel (%p282) target = $region28
      $region27: #{hcfh_forward.19} parent=11 // pred_region
        _
      $region28: #{hcfh_forward.19} parent=11 // pred_fallthru
        _
    $region12: #{hcfh_forward.19} parent=5 // pred_fallthru
      _
    %p285 = scmp.lt.s32.totalorder %s18, 2
    // Predicated region
    $region29: #{hcfh_forward.19} parent=5 // pred_check
      %p286 = pneg %p285
    $region30: #{hcfh_forward.19} parent=5 // pred_check_branch
      %288 = sbr.rel (%p286) target = $region32
    $region31: #{hcfh_forward.19} parent=5 // pred_region
      // Predicated region
      $region33: #{hcfh_forward.19} parent=31 // pred_check
        %p289 = pneg %p38
      $region34: #{hcfh_forward.19} parent=31 // pred_check_branch
        %291 = sbr.rel (%p289) target = $region36
      $region35: #{hcfh_forward.19} parent=31 // pred_region
        %p292 = scmp.lt.s32.totalorder %s18, 1
        %s293 = scalar_select %p292, %s18, 1
        %s294 = smul.addr %s293, 4
        %s295 = scalar_lea.vmem %s0, %s294
      $region36: #{hcfh_forward.19} parent=31 // pred_fallthru
        _
      // Predicated region
      $region37: #{hcfh_forward.19} parent=31 // pred_check
        %p296 = pneg %p64
      $region38: #{hcfh_forward.19} parent=31 // pred_check_branch
        %298 = sbr.rel (%p296) target = $region40
      $region39: #{hcfh_forward.19} parent=31 // pred_region
        %p299 = scmp.lt.s32.totalorder %s18, 1
        %s300 = scalar_select %p299, %s18, 1
        %s301 = smul.addr %s300, 8
        %s302 = scalar_lea.vmem %s1, %s301
      $region40: #{hcfh_forward.19} parent=31 // pred_fallthru
        _
      // Predicated region
      $region41: #{hcfh_forward.19} parent=31 // pred_check
        %p303 = pneg %p90
      $region42: #{hcfh_forward.19} parent=31 // pred_check_branch
        %305 = sbr.rel (%p303) target = $region44
      $region43: #{hcfh_forward.19} parent=31 // pred_region
        %p306 = scmp.lt.s32.totalorder %s18, 1
        %s307 = scalar_select %p306, %s18, 1
        %s308 = smul.addr %s307, 8
        %s309 = scalar_lea.vmem %s2, %s308
      $region44: #{hcfh_forward.19} parent=31 // pred_fallthru
        _
      // Predicated region
      $region45: #{hcfh_forward.19} parent=31 // pred_check
        %p310 = pneg %p116
      $region46: #{hcfh_forward.19} parent=31 // pred_check_branch
        %312 = sbr.rel (%p310) target = $region48
      $region47: #{hcfh_forward.19} parent=31 // pred_region
        %p313 = scmp.lt.s32.totalorder %s18, 1
        %s314 = scalar_select %p313, %s18, 1
        %s315 = scalar_lea.vmem %s3, %s314
      $region48: #{hcfh_forward.19} parent=31 // pred_fallthru
        _
    $region32: #{hcfh_forward.19} parent=5 // pred_fallthru
      _
    %p316 = scmp.le.s32.totalorder 1, %s18
    %p317 = scmp.lt.s32.totalorder %s18, 3
    %p318 = pnand %p316, %p317
    %p319 = pneg %p318
    // Predicated region
    $region49: #{hcfh_forward.19} parent=5 // pred_check
      _
    $region50: #{hcfh_forward.19} parent=5 // pred_check_branch
      %321 = sbr.rel (%p318) target = $region52
    $region51: #{hcfh_forward.19} parent=5 // pred_region
      %s322 = ssub.s32 %s18, 1
      %p323 = scmp.lt.s32.totalorder %s23, 1
      %s324 = scalar_select %p323, %s23, 1
      %s325 = smul.addr %s324, 4
      %s326 = scalar_lea.vmem %s0, %s325
      %p327 = pneg %p44
      %p328 = pneg %p41
      %p329 = scmp.lt.s32.totalorder %s23, 1
      %s330 = scalar_select %p329, %s23, 1
      %s331 = smul.addr %s330, 8
      %s332 = scalar_lea.vmem %s1, %s331
      %p333 = pneg %p70
      %p334 = pneg %p67
      %p335 = scmp.lt.s32.totalorder %s23, 1
      %s336 = scalar_select %p335, %s23, 1
      %s337 = smul.addr %s336, 8
      %s338 = scalar_lea.vmem %s2, %s337
      %p339 = pneg %p96
      %p340 = pneg %p93
      %p341 = scmp.lt.s32.totalorder %s23, 1
      %s342 = scalar_select %p341, %s23, 1
      %s343 = scalar_lea.vmem %s3, %s342
      %p344 = pneg %p122
      %p345 = pneg %p119
      %p346 = pneg %p143
      %p347 = pneg %p140
      %p348 = pneg %p164
      %p349 = pneg %p161
      %p350 = pneg %p185
      %p351 = pneg %p182
      %p352 = pneg %p206
      %p353 = pneg %p203
      %p354 = pneg %p232
      %p355 = pneg %p229
      %p356 = scmp.lt.s32.totalorder %s23, 1
      %s357 = scalar_select %p356, %s23, 1
      %s358 = smul.addr %s357, 4
      %s359 = scalar_lea.vmem %s8, %s358
      %p360 = pneg %p258
      %p361 = pneg %p255
      %p362 = scmp.lt.s32.totalorder %s23, 1
      %s363 = scalar_select %p362, %s23, 1
      %s364 = smul.addr %s363, 4
      %s365 = scalar_lea.vmem %s9, %s364
      %p366 = scmp.lt.s32.totalorder %s23, 1
      %s367 = scalar_select %p366, %s23, 1
      %s368 = smul.addr %s367, 4
      %s369 = scalar_lea.vmem %s0, %s368
      %p370 = scmp.lt.s32.totalorder %s23, 1
      %s371 = scalar_select %p370, %s23, 1
      %s372 = smul.addr %s371, 8
      %s373 = scalar_lea.vmem %s1, %s372
      %p374 = scmp.lt.s32.totalorder %s23, 1
      %s375 = scalar_select %p374, %s23, 1
      %s376 = smul.addr %s375, 8
      %s377 = scalar_lea.vmem %s2, %s376
      %p378 = scmp.lt.s32.totalorder %s23, 1
      %s379 = scalar_select %p378, %s23, 1
      %s380 = scalar_lea.vmem %s3, %s379
      %p381 = scmp.lt.s32.totalorder %s23, 1
      %s382 = scalar_select %p381, %s23, 1
      %s383 = smul.addr %s382, 4
      %s384 = scalar_lea.vmem %s8, %s383
      %p385 = scmp.lt.s32.totalorder %s23, 1
      %s386 = scalar_select %p385, %s23, 1
      %s387 = smul.addr %s386, 4
      %s388 = scalar_lea.vmem %s9, %s387
      %v389 = vld [vmem:[%s369] sm:$0x7]
      %v390 = vld [vmem:[%s4] sm:$0xff]
      %v391 = vld [vmem:[%s4 + $0x8] sm:$0xff]
      %v392 = vld [vmem:[%s4 + $0x10] sm:$0xff]
      %v393 = vld [vmem:[%s4 + $0x18] sm:$0xff]
      %v394 = vld [vmem:[%s5] sm:$0x1]
      %v396 = vlaneseq
      %v397 = vshrl.u32 %v396, 7
      %v398 = vsub.s32 0, %v397
      %v399 = vrot.slane %v394, %v398
      %vm401 = vcmask 261120
      %v403 = vsel %vm401, %v389, 0
      %405 = vmatprep.subr.mxu0 0.0
      %406 = vmatpush1.msra.mxu0 %v390
      %407 = vmatprep.subr.mxu0 0.0
      %408 = vmatpush1.msra.mxu0 %v391
      %409 = vmatprep.subr.mxu0 0.0
      %410 = vmatpush1.msra.mxu0 %v392
      %411 = vmatprep.subr.mxu0 0.0
      %412 = vmatpush1.msra.mxu0 %v393
      %413 = vmatprep.subr.mxu0 0.0
      %414 = vmatpush1.msra.mxu0 0.0
      %415 = vmatprep.subr.mxu0 0.0
      %416 = vmatpush1.msra.mxu0 0.0
      %417 = vmatprep.subr.mxu0 0.0
      %418 = vmatpush1.msra.mxu0 0.0
      %419 = vmatprep.subr.mxu0 0.0
      %420 = vmatpush1.msra.mxu0 0.0
      %421 = vmatprep.subr.mxu0 0.0
      %422 = vmatpush1.msra.mxu0 0.0
      %423 = vmatprep.subr.mxu0 0.0
      %424 = vmatpush1.msra.mxu0 0.0
      %425 = vmatprep.subr.mxu0 0.0
      %426 = vmatpush1.msra.mxu0 0.0
      %427 = vmatprep.subr.mxu0 0.0
      %428 = vmatpush1.msra.mxu0 0.0
      %429 = vmatprep.subr.mxu0 0.0
      %430 = vmatpush1.msra.mxu0 0.0
      %431 = vmatprep.subr.mxu0 0.0
      %432 = vmatpush1.msra.mxu0 0.0
      %433 = vmatprep.subr.mxu0 0.0
      %434 = vmatpush1.msra.mxu0 0.0
      %435 = vmatprep.subr.mxu0 0.0
      %436 = vmatpush1.msra.mxu0 0.0
      %437 = vmatprep.subr.mxu0 0.0
      %438 = vmatpush1.msra.mxu0 0.0
      %439 = vmatprep.subr.mxu0 0.0
      %440 = vmatpush1.msra.mxu0 0.0
      %441 = vmatprep.subr.mxu0 0.0
      %442 = vmatpush1.msra.mxu0 0.0
      %443 = vmatprep.subr.mxu0 0.0
      %444 = vmatpush1.msra.mxu0 0.0
      %445 = vmatprep.subr.mxu0 0.0
      %446 = vmatpush1.msra.mxu0 0.0
      %447 = vmatprep.subr.mxu0 0.0
      %448 = vmatpush1.msra.mxu0 0.0
      %449 = vmatprep.subr.mxu0 0.0
      %450 = vmatpush1.msra.mxu0 0.0
      %451 = vmatprep.subr.mxu0 0.0
      %452 = vmatpush1.msra.mxu0 0.0
      %453 = vmatprep.subr.mxu0 0.0
      %454 = vmatpush1.msra.mxu0 0.0
      %455 = vmatprep.subr.mxu0 0.0
      %456 = vmatpush1.msra.mxu0 0.0
      %457 = vmatprep.subr.mxu0 0.0
      %458 = vmatpush1.msra.mxu0 0.0
      %459 = vmatprep.subr.mxu0 0.0
      %460 = vmatpush1.msra.mxu0 0.0
      %461 = vmatprep.subr.mxu0 0.0
      %462 = vmatpush1.msra.mxu0 0.0
      %463 = vmatprep.subr.mxu0 0.0
      %464 = vmatpush1.msra.mxu0 0.0
      %465 = vmatprep.subr.mxu0 0.0
      %466 = vmatpush1.msra.mxu0 0.0
      %467 = vmatprep.subr.mxu0 0.0
      %468 = vmatpush1.msra.mxu0 0.0
      %469 = vmatprep.mubr.f32.mxu0 0.0
      %470 = vmatmul.mubr.f32.gmra.mrb[0].mxu0 %v403
      %v471 = vpop.f32.mrb[0].mxu0
      %v472 = vadd.f32 %v399, %v471
      %v473 = vpop.f32.mrb[0].mxu0
      %474 = vdwg.mxu0
      %v475 = vld [vmem:[%s373] sm:$0xff]
      %v478 = vunpack.c.l.s4 1966171168
      %v479 = vunpack.c.0.s8 %v478
      %v480 = vlaneseq
      %v481 = vshrl.u32 %v480, 7
      %v482 = vsub.s32 %v479, %v481
      %v483 = vrot.slane %v472, %v482
      %v484 = vcombine.high %v483, %v483
      %v486 = vunpack.c.l.s4 1966171168
      %v487 = vunpack.c.0.s8 %v486
      %v488 = vlaneseq
      %v489 = vshrl.u32 %v488, 7
      %v490 = vsub.s32 %v487, %v489
      %v491 = vrot.slane %v483, %v490
      %v493 = vunpack.c.l.s4 1966171168
      %v494 = vunpack.c.0.s8 %v493
      %v495 = vlaneseq
      %v496 = vshrl.u32 %v495, 7
      %v497 = vsub.s32 %v494, %v496
      %v498 = vrot.slane %v484, %v497
      %v499 = vcombine.high %v491, %v491
      %v500 = vlaneseq
      %v501 = vshrl.u32 %v500, 7
      %v502 = vsub.s32 0, %v501
      %v503 = vrot.slane %v491, %v502
      %v504 = vlaneseq
      %v505 = vshrl.u32 %v504, 7
      %v506 = vsub.s32 0, %v505
      %v507 = vrot.slane %v498, %v506
      %v508 = vlaneseq
      %v509 = vshrl.u32 %v508, 7
      %v510 = vsub.s32 0, %v509
      %v511 = vrot.slane %v499, %v510
      %v515 = vadd.f32 %v475, %v503
      %v516 = vadd.f32 %v475, %v507
      %v517 = vadd.f32 %v475, %v511
      %v518 = vtanh.pop %v515
      %v519 = vtanh.pop %v516
      %v520 = vtanh.pop %v517
      %v521 = vld [vmem:[%s6] sm:$0x1]
      %v523 = vlaneseq
      %v524 = vshrl.u32 %v523, 7
      %v525 = vsub.s32 0, %v524
      %v526 = vrot.slane %v521, %v525
      %v528 = vmul.f32 %v518, %v526
      %v529 = vmul.f32 %v519, %v526
      %v530 = vmul.f32 %v520, %v526
      %v531 = vsel %vm401, %v528, 0.0
      %532 = vadd.xlane.f32.xlu0 %v531
      %v533 = vpop.xlane.xlu0 %532
      %v534 = vsel %vm401, %v529, 0.0
      %535 = vadd.xlane.f32.xlu0 %v534
      %v536 = vpop.xlane.xlu0 %535
      %v537 = vsel %vm401, %v530, 0.0
      %538 = vadd.xlane.f32.xlu0 %v537
      %v539 = vpop.xlane.xlu0 %538
      %v540 = vld [vmem:[#allocation2] sm:$0x1]
      %v542 = vlaneseq
      %v543 = vshrl.u32 %v542, 7
      %v544 = vsub.s32 0, %v543
      %v545 = vrot.slane %v540, %v544
      %546 = vset.pattern.permute.xlu0 0
      %547 = vperm.xlu0 %546, %v545
      %v548 = vpop.permute.xlu0 %547
      %v550 = vadd.f32 %v533, %v548
      %v551 = vadd.f32 %v536, %v548
      %v552 = vadd.f32 %v539, %v548
      %v556 = vlaneseq
      %v557 = vand.u32 %v556, 127
      %v558 = vlaneseq
      %v559 = vshrl.u32 %v558, 7
      %v560 = vsub.s32 %v557, %v559
      %v561 = vrot.slane %v550, %v560
      %v562 = vlaneseq
      %v563 = vshrl.u32 %v562, 7
      %v564 = vsub.s32 %v557, %v563
      %v565 = vrot.slane %v551, %v564
      %v566 = vlaneseq
      %v567 = vshrl.u32 %v566, 7
      %v568 = vsub.s32 %v557, %v567
      %v569 = vrot.slane %v552, %v568
      %vm570 = vcmask 1041409
      %v571 = vsel %vm570, %v565, %v561
      %vm572 = vcmask 1042434
      %v573 = vsel %vm572, %v569, %v571
      %vm575 = vcmask 59392
      %v576 = vsel %vm575, %v573, -inf
      %577 = vmax.xlane.f32.xlu0 %v576
      %v578 = vpop.xlane.xlu0 %577
      %v580 = vlaneseq
      %v581 = vshrl.u32 %v580, 7
      %v582 = vsub.s32 0, %v581
      %v583 = vrot.slane %v578, %v582
      %v584 = vlaneseq
      %v585 = vshrl.u32 %v584, 7
      %v586 = vsub.s32 1, %v585
      %v587 = vrot.slane %v578, %v586
      %v588 = vlaneseq
      %v589 = vshrl.u32 %v588, 7
      %v590 = vsub.s32 2, %v589
      %v591 = vrot.slane %v578, %v590
      %v595 = vsub.f32 %v550, %v583
      %v596 = vsub.f32 %v551, %v587
      %v597 = vsub.f32 %v552, %v591
      %v598 = vmul.f32 %v595, 1.442695
      %v599 = vpow.pop %v598
      %v600 = vmul.f32 %v596, 1.442695
      %v601 = vpow.pop %v600
      %v602 = vmul.f32 %v597, 1.442695
      %v603 = vpow.pop %v602
      %607 = vset.pattern.permute.xlu0 0
      %608 = vperm.xlu0 %607, %v599
      %v609 = vpop.permute.xlu0 %608
      %610 = vset.pattern.permute.xlu0 0
      %611 = vperm.xlu0 %610, %v601
      %v612 = vpop.permute.xlu0 %611
      %613 = vset.pattern.permute.xlu0 0
      %614 = vperm.xlu0 %613, %v603
      %v615 = vpop.permute.xlu0 %614
      %v616 = vlaneseq
      %v617 = vshrl.u32 %v616, 7
      %v618 = vsub.s32 %v557, %v617
      %v619 = vrot.slane %v609, %v618
      %v620 = vlaneseq
      %v621 = vshrl.u32 %v620, 7
      %v622 = vsub.s32 %v557, %v621
      %v623 = vrot.slane %v612, %v622
      %v624 = vlaneseq
      %v625 = vshrl.u32 %v624, 7
      %v626 = vsub.s32 %v557, %v625
      %v627 = vrot.slane %v615, %v626
      %v628 = vsel %vm570, %v623, %v619
      %v629 = vsel %vm572, %v627, %v628
      %v631 = vsel %vm575, %v629, 0.0
      %632 = vadd.xlane.f32.xlu0 %v631
      %v633 = vpop.xlane.xlu0 %632
      %v634 = vld [vmem:[%s380] sm:$0x1]
      %v636 = vlaneseq
      %v637 = vshrl.u32 %v636, 7
      %v638 = vsub.s32 0, %v637
      %v639 = vrot.slane %v634, %v638
      %641 = vbcast.lane.b32.xlu0 %v639, 256
      %v642 = vpop.permute.xlu0 %641
      %v644 = vmul.f32 %v599, %v642
      %v645 = vmul.f32 %v601, %v642
      %v646 = vmul.f32 %v603, %v642
      %650 = vset.pattern.permute.xlu0 0
      %651 = vperm.xlu0 %650, %v644
      %v652 = vpop.permute.xlu0 %651
      %653 = vset.pattern.permute.xlu0 0
      %654 = vperm.xlu0 %653, %v645
      %v655 = vpop.permute.xlu0 %654
      %656 = vset.pattern.permute.xlu0 0
      %657 = vperm.xlu0 %656, %v646
      %v658 = vpop.permute.xlu0 %657
      %v659 = vlaneseq
      %v660 = vshrl.u32 %v659, 7
      %v661 = vsub.s32 %v557, %v660
      %v662 = vrot.slane %v652, %v661
      %v663 = vlaneseq
      %v664 = vshrl.u32 %v663, 7
      %v665 = vsub.s32 %v557, %v664
      %v666 = vrot.slane %v655, %v665
      %v667 = vlaneseq
      %v668 = vshrl.u32 %v667, 7
      %v669 = vsub.s32 %v557, %v668
      %v670 = vrot.slane %v658, %v669
      %v671 = vsel %vm570, %v666, %v662
      %v672 = vsel %vm572, %v670, %v671
      %v674 = vsel %vm575, %v672, 0.0
      %675 = vadd.xlane.f32.xlu0 %v674
      %v676 = vpop.xlane.xlu0 %675
      %v677 = vmul.f32 %v633, 1e-10
      %v678 = vadd.f32 %v676, %v677
      %v679 = vrcp.pop %v678
      %v681 = vlaneseq
      %v682 = vshrl.u32 %v681, 7
      %v683 = vsub.s32 0, %v682
      %v684 = vrot.slane %v679, %v683
      %v685 = vlaneseq
      %v686 = vshrl.u32 %v685, 7
      %v687 = vsub.s32 1, %v686
      %v688 = vrot.slane %v679, %v687
      %v689 = vlaneseq
      %v690 = vshrl.u32 %v689, 7
      %v691 = vsub.s32 2, %v690
      %v692 = vrot.slane %v679, %v691
      %v696 = vmul.f32 %v644, %v684
      %v697 = vmul.f32 %v645, %v688
      %v698 = vmul.f32 %v646, %v692
      %v699 = vld [vmem:[%s377] sm:$0xff]
      %703 = vset.pattern.permute.xlu0 0
      %704 = vperm.xlu0 %703, %v696
      %v705 = vpop.permute.xlu0 %704
      %706 = vset.pattern.permute.xlu0 0
      %707 = vperm.xlu0 %706, %v697
      %v708 = vpop.permute.xlu0 %707
      %709 = vset.pattern.permute.xlu0 0
      %710 = vperm.xlu0 %709, %v698
      %v711 = vpop.permute.xlu0 %710
      %v712 = vlaneseq
      %v713 = vshrl.u32 %v712, 7
      %v714 = vsub.s32 %v557, %v713
      %v715 = vrot.slane %v705, %v714
      %v716 = vlaneseq
      %v717 = vshrl.u32 %v716, 7
      %v718 = vsub.s32 %v557, %v717
      %v719 = vrot.slane %v708, %v718
      %v720 = vlaneseq
      %v721 = vshrl.u32 %v720, 7
      %v722 = vsub.s32 %v557, %v721
      %v723 = vrot.slane %v711, %v722
      %v724 = vsel %vm570, %v719, %v715
      %v725 = vsel %vm572, %v723, %v724
      %vm726 = vcmask 64512
      %v727 = vsel %vm726, %v725, 0
      %729 = vmatprep.subr.mxu0 0.0
      %730 = vmatpush1.msra.mxu0 %v699
      %731 = vmatprep.subr.mxu0 0.0
      %732 = vmatpush1.msra.mxu0 0.0
      %733 = vmatprep.subr.mxu0 0.0
      %734 = vmatpush1.msra.mxu0 0.0
      %735 = vmatprep.subr.mxu0 0.0
      %736 = vmatpush1.msra.mxu0 0.0
      %737 = vmatprep.subr.mxu0 0.0
      %738 = vmatpush1.msra.mxu0 0.0
      %739 = vmatprep.subr.mxu0 0.0
      %740 = vmatpush1.msra.mxu0 0.0
      %741 = vmatprep.subr.mxu0 0.0
      %742 = vmatpush1.msra.mxu0 0.0
      %743 = vmatprep.subr.mxu0 0.0
      %744 = vmatpush1.msra.mxu0 0.0
      %745 = vmatprep.subr.mxu0 0.0
      %746 = vmatpush1.msra.mxu0 0.0
      %747 = vmatprep.subr.mxu0 0.0
      %748 = vmatpush1.msra.mxu0 0.0
      %749 = vmatprep.subr.mxu0 0.0
      %750 = vmatpush1.msra.mxu0 0.0
      %751 = vmatprep.subr.mxu0 0.0
      %752 = vmatpush1.msra.mxu0 0.0
      %753 = vmatprep.subr.mxu0 0.0
      %754 = vmatpush1.msra.mxu0 0.0
      %755 = vmatprep.subr.mxu0 0.0
      %756 = vmatpush1.msra.mxu0 0.0
      %757 = vmatprep.subr.mxu0 0.0
      %758 = vmatpush1.msra.mxu0 0.0
      %759 = vmatprep.subr.mxu0 0.0
      %760 = vmatpush1.msra.mxu0 0.0
      %761 = vmatprep.subr.mxu0 0.0
      %762 = vmatpush1.msra.mxu0 0.0
      %763 = vmatprep.subr.mxu0 0.0
      %764 = vmatpush1.msra.mxu0 0.0
      %765 = vmatprep.subr.mxu0 0.0
      %766 = vmatpush1.msra.mxu0 0.0
      %767 = vmatprep.subr.mxu0 0.0
      %768 = vmatpush1.msra.mxu0 0.0
      %769 = vmatprep.subr.mxu0 0.0
      %770 = vmatpush1.msra.mxu0 0.0
      %771 = vmatprep.subr.mxu0 0.0
      %772 = vmatpush1.msra.mxu0 0.0
      %773 = vmatprep.subr.mxu0 0.0
      %774 = vmatpush1.msra.mxu0 0.0
      %775 = vmatprep.subr.mxu0 0.0
      %776 = vmatpush1.msra.mxu0 0.0
      %777 = vmatprep.subr.mxu0 0.0
      %778 = vmatpush1.msra.mxu0 0.0
      %779 = vmatprep.subr.mxu0 0.0
      %780 = vmatpush1.msra.mxu0 0.0
      %781 = vmatprep.subr.mxu0 0.0
      %782 = vmatpush1.msra.mxu0 0.0
      %783 = vmatprep.subr.mxu0 0.0
      %784 = vmatpush1.msra.mxu0 0.0
      %785 = vmatprep.subr.mxu0 0.0
      %786 = vmatpush1.msra.mxu0 0.0
      %787 = vmatprep.subr.mxu0 0.0
      %788 = vmatpush1.msra.mxu0 0.0
      %789 = vmatprep.subr.mxu0 0.0
      %790 = vmatpush1.msra.mxu0 0.0
      %791 = vmatprep.subr.mxu0 0.0
      %792 = vmatpush1.msra.mxu0 0.0
      %793 = vmatprep.mubr.f32.mxu0 0.0
      %794 = vmatmul.mubr.f32.gmra.mrb[0].mxu0 %v727
      %v795 = vpop.f32.mrb[0].mxu0
      %v796 = vadd.f32 0.0, %v795
      %v797 = vpop.f32.mrb[0].mxu0
      %798 = vdwg.mxu0
      %vm799 = vcmask 256000
      %800 = vst.msk [vmem:[%s384] sm:$0x7] %vm799, %v796
      %802 = vst.msk [vmem:[%s388] sm:$0x7] %vm575, %v725
      %p803 = scmp.lt.s32.totalorder %s23, 1
      %s804 = scalar_select %p803, %s23, 1
      %s805 = smul.addr %s804, 4
      %s806 = scalar_lea.vmem %s8, %s805
      %p807 = scmp.lt.s32.totalorder %s23, 1
      %s808 = scalar_select %p807, %s23, 1
      %s809 = smul.addr %s808, 4
      %s810 = scalar_lea.vmem %s9, %s809
      // Predicated region
      $region53: #{hcfh_forward.19} parent=51 // pred_check
        %p811 = pneg %p229
      $region54: #{hcfh_forward.19} parent=51 // pred_check_branch
        %813 = sbr.rel (%p811) target = $region56
      $region55: #{hcfh_forward.19} parent=51 // pred_region
        _
      $region56: #{hcfh_forward.19} parent=51 // pred_fallthru
        _
      // Predicated region
      $region57: #{hcfh_forward.19} parent=51 // pred_check
        %p814 = pneg %p255
      $region58: #{hcfh_forward.19} parent=51 // pred_check_branch
        %816 = sbr.rel (%p814) target = $region60
      $region59: #{hcfh_forward.19} parent=51 // pred_region
        _
      $region60: #{hcfh_forward.19} parent=51 // pred_fallthru
        _
    $region52: #{hcfh_forward.19} parent=5 // pred_fallthru
      _
    %p817 = scmp.le.s32.totalorder 2, %s18
    // Predicated region
    $region61: #{hcfh_forward.19} parent=5 // pred_check
      %p818 = pneg %p817
    $region62: #{hcfh_forward.19} parent=5 // pred_check_branch
      %820 = sbr.rel (%p818) target = $region64
    $region63: #{hcfh_forward.19} parent=5 // pred_region
      %s821 = ssub.s32 %s18, 2
      // Predicated region
      $region65: #{hcfh_forward.19} parent=63 // pred_check
        %p822 = pneg %p235
      $region66: #{hcfh_forward.19} parent=63 // pred_check_branch
        %824 = sbr.rel (%p822) target = $region68
      $region67: #{hcfh_forward.19} parent=63 // pred_region
        %p825 = scmp.lt.s32.totalorder %s24, 1
        %s826 = scalar_select %p825, %s24, 1
        %s827 = smul.addr %s826, 4
        %s828 = scalar_lea.vmem %s8, %s827
      $region68: #{hcfh_forward.19} parent=63 // pred_fallthru
        _
      // Predicated region
      $region69: #{hcfh_forward.19} parent=63 // pred_check
        %p829 = pneg %p261
      $region70: #{hcfh_forward.19} parent=63 // pred_check_branch
        %831 = sbr.rel (%p829) target = $region72
      $region71: #{hcfh_forward.19} parent=63 // pred_region
        %p832 = scmp.lt.s32.totalorder %s24, 1
        %s833 = scalar_select %p832, %s24, 1
        %s834 = smul.addr %s833, 4
        %s835 = scalar_lea.vmem %s9, %s834
      $region72: #{hcfh_forward.19} parent=63 // pred_fallthru
        _
    $region64: #{hcfh_forward.19} parent=5 // pred_fallthru
      _
  $region6: #{hcfh_forward.19} parent=0 // loop_footer
    %s22 = sadd.s32 1, %s18
  $region7: #{hcfh_forward.19} parent=0 // loop_footer_branch
    %17 = sbr.rel target = $region3
  $region8: #{hcfh_forward.19} parent=0 // loop_exit
    _

// kernel: hcfh_forward.21
$region0: #{hcfh_forward.21}
  #allocation0 [shape = 'u32[]', space=smem, size = 0x4, offset = 0x4, fixed_abs, tag = 'smem constant byte address 0x4 - core index']
  #allocation1 [shape = 'u32[144,128]{1,0:T(1,128)}', space=vmem, size = 0x12000, scoped, tag = 'internal scratch']
  #allocation2 [shape = 'f32[1,1]{1,0:T(1,128)S(1)}', space=vmem, size = 0x200, scoped, tag = 'scoped memory for hcfh_forward.21']
  %s0 = inlined_call_operand.vmem [shape: f32[2,3,64], index: 0, kind: input, shape index: {}]
  %s1 = inlined_call_operand.vmem [shape: f32[2,8,32], index: 1, kind: input, shape index: {}]
  %s2 = inlined_call_operand.vmem [shape: f32[2,8,32], index: 2, kind: input, shape index: {}]
  %s3 = inlined_call_operand.vmem [shape: f32[2,1,8], index: 3, kind: input, shape index: {}]
  %s4 = inlined_call_operand.vmem [shape: f32[64,32], index: 4, kind: input, shape index: {}]
  %s5 = inlined_call_operand.vmem [shape: f32[1,32], index: 5, kind: input, shape index: {}]
  %s6 = inlined_call_operand.vmem [shape: f32[1,32], index: 6, kind: input, shape index: {}]
  %s7 = inlined_call_operand.<no memory space> [shape: f32[1,1], index: 7, kind: input, shape index: {}]
  %s8 = inlined_call_operand.hbm [shape: f32[2,3,32], index: 8, kind: output, shape index: {0}]
  %s9 = inlined_call_operand.vmem [shape: f32[2,3,8], index: 9, kind: output, shape index: {1}]
  %10 = xla_tuple %s8, %s9
  %s11 = sld [smem:[#allocation0]]
  $region73: #{hcfh_forward.21} parent=0
    _
  %s13 = ssub.s32 1, %s11
  %s14 = scalar_select 0, %s13, %s11
  %v15 = vstv %s7
  %16 = vst [vmem:[#allocation2] sm:$0x1] %v15
  $region1: #{hcfh_forward.21} parent=0
    #allocation3 [shape = 'u8[4096]{0}', space=vmem, size = 0x1000, scoped, tag = 'output window, operand 0']
    #allocation4 [shape = 's32[2]{0}', space=sflag, size = 0x8, scoped, tag = 'scoped memory for hcfh_forward.21']
    %17 = vsyncpa [#allocation4], 0
    %s18 = scalar_lea.sflag [#allocation4], 1
    %19 = vsyncpa %s18, 0
    loop: start=0, step=1, limit=4
    $region2: #{hcfh_forward.21} parent=1 // loop_pre_header
      _
    $region3: #{hcfh_forward.21} parent=1 // loop_header
      %s21 = sphi 0, %s25
      %p22 = scmp.ge.s32.totalorder %s21, 4
      %s31 = sphi 0, %s33
      %s34 = sphi 0, %s31
      %s35 = sphi 0, %s34
      %s51 = sphi 0, %s35
      %s57 = sphi 0, %s59
      %s60 = sphi 0, %s57
      %s61 = sphi 0, %s60
      %s77 = sphi 0, %s61
      %s83 = sphi 0, %s85
      %s86 = sphi 0, %s83
      %s87 = sphi 0, %s86
      %s103 = sphi 0, %s87
      %s109 = sphi 0, %s111
      %s112 = sphi 0, %s109
      %s113 = sphi 0, %s112
      %s129 = sphi 0, %s113
      %s133 = sphi 0, %s133
      %s135 = sphi 0, %s133
      %s136 = sphi 0, %s135
      %s150 = sphi 0, %s136
      %s154 = sphi 0, %s154
      %s156 = sphi 0, %s154
      %s157 = sphi 0, %s156
      %s171 = sphi 0, %s157
      %s175 = sphi 0, %s175
      %s177 = sphi 0, %s175
      %s178 = sphi 0, %s177
      %s192 = sphi 0, %s178
      %s196 = sphi 0, %s196
      %s198 = sphi 0, %s196
      %s199 = sphi 0, %s198
      %s213 = sphi 0, %s199
      %s219 = sphi 0, %s221
      %s222 = sphi 0, %s219
      %s223 = sphi 0, %s222
      %s239 = sphi 0, %s223
      %s245 = sphi 0, %s247
      %s248 = sphi 0, %s245
      %s249 = sphi 0, %s248
      %s265 = sphi 0, %s249
    $region4: #{hcfh_forward.21} parent=1 // loop_header_branch
      %24 = sbr.rel (%p22) target = $region8
    $region5: #{hcfh_forward.21} parent=1 // loop_body
      %s26 = ssub.s32 %s21, 1
      %s27 = ssub.s32 %s21, 2
      %s28 = sadd.s32 %s21, 1
      %s29 = ssub.s32 %s21, %s28
      %p30 = scmp.eq.s32.totalorder %s29, 0
      %s32 = sadd.s32 %s31, 1
      %s33 = scalar_select %p30, %s31, %s32
      %p36 = pneg %p30
      %p37 = scmp.eq.s32.totalorder %s21, 1
      %p38 = por %p36, %p37
      %p39 = scmp.ne.s32.totalorder %s31, %s34
      %p40 = scmp.eq.s32.totalorder %s21, 0
      %p41 = por %p39, %p40
      %p42 = scmp.ne.s32.totalorder %s31, %s34
      %p43 = scmp.eq.s32.totalorder %s26, 1
      %p44 = por %p42, %p43
      %p45 = scmp.ne.s32.totalorder %s34, %s35
      %p46 = scmp.eq.s32.totalorder %s26, 0
      %p47 = por %p45, %p46
      %p48 = scmp.ne.s32.totalorder %s34, %s35
      %p49 = scmp.eq.s32.totalorder %s27, 1
      %p50 = por %p48, %p49
      %p52 = scmp.ne.s32.totalorder %s35, %s51
      %p53 = scmp.eq.s32.totalorder %s27, 0
      %p54 = por %p52, %p53
      %s55 = ssub.s32 %s21, %s28
      %p56 = scmp.eq.s32.totalorder %s55, 0
      %s58 = sadd.s32 %s57, 1
      %s59 = scalar_select %p56, %s57, %s58
      %p62 = pneg %p56
      %p63 = scmp.eq.s32.totalorder %s21, 1
      %p64 = por %p62, %p63
      %p65 = scmp.ne.s32.totalorder %s57, %s60
      %p66 = scmp.eq.s32.totalorder %s21, 0
      %p67 = por %p65, %p66
      %p68 = scmp.ne.s32.totalorder %s57, %s60
      %p69 = scmp.eq.s32.totalorder %s26, 1
      %p70 = por %p68, %p69
      %p71 = scmp.ne.s32.totalorder %s60, %s61
      %p72 = scmp.eq.s32.totalorder %s26, 0
      %p73 = por %p71, %p72
      %p74 = scmp.ne.s32.totalorder %s60, %s61
      %p75 = scmp.eq.s32.totalorder %s27, 1
      %p76 = por %p74, %p75
      %p78 = scmp.ne.s32.totalorder %s61, %s77
      %p79 = scmp.eq.s32.totalorder %s27, 0
      %p80 = por %p78, %p79
      %s81 = ssub.s32 %s21, %s28
      %p82 = scmp.eq.s32.totalorder %s81, 0
      %s84 = sadd.s32 %s83, 1
      %s85 = scalar_select %p82, %s83, %s84
      %p88 = pneg %p82
      %p89 = scmp.eq.s32.totalorder %s21, 1
      %p90 = por %p88, %p89
      %p91 = scmp.ne.s32.totalorder %s83, %s86
      %p92 = scmp.eq.s32.totalorder %s21, 0
      %p93 = por %p91, %p92
      %p94 = scmp.ne.s32.totalorder %s83, %s86
      %p95 = scmp.eq.s32.totalorder %s26, 1
      %p96 = por %p94, %p95
      %p97 = scmp.ne.s32.totalorder %s86, %s87
      %p98 = scmp.eq.s32.totalorder %s26, 0
      %p99 = por %p97, %p98
      %p100 = scmp.ne.s32.totalorder %s86, %s87
      %p101 = scmp.eq.s32.totalorder %s27, 1
      %p102 = por %p100, %p101
      %p104 = scmp.ne.s32.totalorder %s87, %s103
      %p105 = scmp.eq.s32.totalorder %s27, 0
      %p106 = por %p104, %p105
      %s107 = ssub.s32 %s21, %s28
      %p108 = scmp.eq.s32.totalorder %s107, 0
      %s110 = sadd.s32 %s109, 1
      %s111 = scalar_select %p108, %s109, %s110
      %p114 = pneg %p108
      %p115 = scmp.eq.s32.totalorder %s21, 1
      %p116 = por %p114, %p115
      %p117 = scmp.ne.s32.totalorder %s109, %s112
      %p118 = scmp.eq.s32.totalorder %s21, 0
      %p119 = por %p117, %p118
      %p120 = scmp.ne.s32.totalorder %s109, %s112
      %p121 = scmp.eq.s32.totalorder %s26, 1
      %p122 = por %p120, %p121
      %p123 = scmp.ne.s32.totalorder %s112, %s113
      %p124 = scmp.eq.s32.totalorder %s26, 0
      %p125 = por %p123, %p124
      %p126 = scmp.ne.s32.totalorder %s112, %s113
      %p127 = scmp.eq.s32.totalorder %s27, 1
      %p128 = por %p126, %p127
      %p130 = scmp.ne.s32.totalorder %s113, %s129
      %p131 = scmp.eq.s32.totalorder %s27, 0
      %p132 = por %p130, %p131
      %s134 = sadd.s32 %s133, 1
      %p137 = scmp.eq.s32.totalorder %s21, 1
      %p138 = scmp.ne.s32.totalorder %s133, %s135
      %p139 = scmp.eq.s32.totalorder %s21, 0
      %p140 = por %p138, %p139
      %p141 = scmp.ne.s32.totalorder %s133, %s135
      %p142 = scmp.eq.s32.totalorder %s26, 1
      %p143 = por %p141, %p142
      %p144 = scmp.ne.s32.totalorder %s135, %s136
      %p145 = scmp.eq.s32.totalorder %s26, 0
      %p146 = por %p144, %p145
      %p147 = scmp.ne.s32.totalorder %s135, %s136
      %p148 = scmp.eq.s32.totalorder %s27, 1
      %p149 = por %p147, %p148
      %p151 = scmp.ne.s32.totalorder %s136, %s150
      %p152 = scmp.eq.s32.totalorder %s27, 0
      %p153 = por %p151, %p152
      %s155 = sadd.s32 %s154, 1
      %p158 = scmp.eq.s32.totalorder %s21, 1
      %p159 = scmp.ne.s32.totalorder %s154, %s156
      %p160 = scmp.eq.s32.totalorder %s21, 0
      %p161 = por %p159, %p160
      %p162 = scmp.ne.s32.totalorder %s154, %s156
      %p163 = scmp.eq.s32.totalorder %s26, 1
      %p164 = por %p162, %p163
      %p165 = scmp.ne.s32.totalorder %s156, %s157
      %p166 = scmp.eq.s32.totalorder %s26, 0
      %p167 = por %p165, %p166
      %p168 = scmp.ne.s32.totalorder %s156, %s157
      %p169 = scmp.eq.s32.totalorder %s27, 1
      %p170 = por %p168, %p169
      %p172 = scmp.ne.s32.totalorder %s157, %s171
      %p173 = scmp.eq.s32.totalorder %s27, 0
      %p174 = por %p172, %p173
      %s176 = sadd.s32 %s175, 1
      %p179 = scmp.eq.s32.totalorder %s21, 1
      %p180 = scmp.ne.s32.totalorder %s175, %s177
      %p181 = scmp.eq.s32.totalorder %s21, 0
      %p182 = por %p180, %p181
      %p183 = scmp.ne.s32.totalorder %s175, %s177
      %p184 = scmp.eq.s32.totalorder %s26, 1
      %p185 = por %p183, %p184
      %p186 = scmp.ne.s32.totalorder %s177, %s178
      %p187 = scmp.eq.s32.totalorder %s26, 0
      %p188 = por %p186, %p187
      %p189 = scmp.ne.s32.totalorder %s177, %s178
      %p190 = scmp.eq.s32.totalorder %s27, 1
      %p191 = por %p189, %p190
      %p193 = scmp.ne.s32.totalorder %s178, %s192
      %p194 = scmp.eq.s32.totalorder %s27, 0
      %p195 = por %p193, %p194
      %s197 = sadd.s32 %s196, 1
      %p200 = scmp.eq.s32.totalorder %s21, 1
      %p201 = scmp.ne.s32.totalorder %s196, %s198
      %p202 = scmp.eq.s32.totalorder %s21, 0
      %p203 = por %p201, %p202
      %p204 = scmp.ne.s32.totalorder %s196, %s198
      %p205 = scmp.eq.s32.totalorder %s26, 1
      %p206 = por %p204, %p205
      %p207 = scmp.ne.s32.totalorder %s198, %s199
      %p208 = scmp.eq.s32.totalorder %s26, 0
      %p209 = por %p207, %p208
      %p210 = scmp.ne.s32.totalorder %s198, %s199
      %p211 = scmp.eq.s32.totalorder %s27, 1
      %p212 = por %p210, %p211
      %p214 = scmp.ne.s32.totalorder %s199, %s213
      %p215 = scmp.eq.s32.totalorder %s27, 0
      %p216 = por %p214, %p215
      %s217 = ssub.s32 %s21, %s28
      %p218 = scmp.eq.s32.totalorder %s217, 0
      %s220 = sadd.s32 %s219, 1
      %s221 = scalar_select %p218, %s219, %s220
      %p224 = pneg %p218
      %p225 = scmp.eq.s32.totalorder %s21, 1
      %p226 = por %p224, %p225
      %p227 = scmp.ne.s32.totalorder %s219, %s222
      %p228 = scmp.eq.s32.totalorder %s21, 0
      %p229 = por %p227, %p228
      %p230 = scmp.ne.s32.totalorder %s219, %s222
      %p231 = scmp.eq.s32.totalorder %s26, 1
      %p232 = por %p230, %p231
      %p233 = scmp.ne.s32.totalorder %s222, %s223
      %p234 = scmp.eq.s32.totalorder %s26, 0
      %p235 = por %p233, %p234
      %p236 = scmp.ne.s32.totalorder %s222, %s223
      %p237 = scmp.eq.s32.totalorder %s27, 1
      %p238 = por %p236, %p237
      %p240 = scmp.ne.s32.totalorder %s223, %s239
      %p241 = scmp.eq.s32.totalorder %s27, 0
      %p242 = por %p240, %p241
      %s243 = ssub.s32 %s21, %s28
      %p244 = scmp.eq.s32.totalorder %s243, 0
      %s246 = sadd.s32 %s245, 1
      %s247 = scalar_select %p244, %s245, %s246
      %p250 = pneg %p244
      %p251 = scmp.eq.s32.totalorder %s21, 1
      %p252 = por %p250, %p251
      %p253 = scmp.ne.s32.totalorder %s245, %s248
      %p254 = scmp.eq.s32.totalorder %s21, 0
      %p255 = por %p253, %p254
      %p256 = scmp.ne.s32.totalorder %s245, %s248
      %p257 = scmp.eq.s32.totalorder %s26, 1
      %p258 = por %p256, %p257
      %p259 = scmp.ne.s32.totalorder %s248, %s249
      %p260 = scmp.eq.s32.totalorder %s26, 0
      %p261 = por %p259, %p260
      %p262 = scmp.ne.s32.totalorder %s248, %s249
      %p263 = scmp.eq.s32.totalorder %s27, 1
      %p264 = por %p262, %p263
      %p266 = scmp.ne.s32.totalorder %s249, %s265
      %p267 = scmp.eq.s32.totalorder %s27, 0
      %p268 = por %p266, %p267
      %p269 = scmp.le.s32.totalorder 1, %s21
      %p270 = scmp.lt.s32.totalorder %s21, 3
      %p271 = pnand %p269, %p270
      %p272 = pneg %p271
      // Predicated region
      $region9: #{hcfh_forward.21} parent=5 // pred_check
        _
      $region10: #{hcfh_forward.21} parent=5 // pred_check_branch
        %274 = sbr.rel (%p271) target = $region12
      $region11: #{hcfh_forward.21} parent=5 // pred_region
        %s275 = ssub.s32 %s21, 1
        // Predicated region
        $region13: #{hcfh_forward.21} parent=11 // pred_check
          %p276 = pneg %p146
        $region14: #{hcfh_forward.21} parent=11 // pred_check_branch
          %278 = sbr.rel (%p276) target = $region16
        $region15: #{hcfh_forward.21} parent=11 // pred_region
          _
        $region16: #{hcfh_forward.21} parent=11 // pred_fallthru
          _
        // Predicated region
        $region17: #{hcfh_forward.21} parent=11 // pred_check
          %p279 = pneg %p167
        $region18: #{hcfh_forward.21} parent=11 // pred_check_branch
          %281 = sbr.rel (%p279) target = $region20
        $region19: #{hcfh_forward.21} parent=11 // pred_region
          _
        $region20: #{hcfh_forward.21} parent=11 // pred_fallthru
          _
        // Predicated region
        $region21: #{hcfh_forward.21} parent=11 // pred_check
          %p282 = pneg %p188
        $region22: #{hcfh_forward.21} parent=11 // pred_check_branch
          %284 = sbr.rel (%p282) target = $region24
        $region23: #{hcfh_forward.21} parent=11 // pred_region
          _
        $region24: #{hcfh_forward.21} parent=11 // pred_fallthru
          _
        // Predicated region
        $region25: #{hcfh_forward.21} parent=11 // pred_check
          %p285 = pneg %p209
        $region26: #{hcfh_forward.21} parent=11 // pred_check_branch
          %287 = sbr.rel (%p285) target = $region28
        $region27: #{hcfh_forward.21} parent=11 // pred_region
          _
        $region28: #{hcfh_forward.21} parent=11 // pred_fallthru
          _
      $region12: #{hcfh_forward.21} parent=5 // pred_fallthru
        _
      %p288 = scmp.lt.s32.totalorder %s21, 2
      // Predicated region
      $region29: #{hcfh_forward.21} parent=5 // pred_check
        %p289 = pneg %p288
      $region30: #{hcfh_forward.21} parent=5 // pred_check_branch
        %291 = sbr.rel (%p289) target = $region32
      $region31: #{hcfh_forward.21} parent=5 // pred_region
        // Predicated region
        $region33: #{hcfh_forward.21} parent=31 // pred_check
          %p292 = pneg %p41
        $region34: #{hcfh_forward.21} parent=31 // pred_check_branch
          %294 = sbr.rel (%p292) target = $region36
        $region35: #{hcfh_forward.21} parent=31 // pred_region
          %p295 = scmp.lt.s32.totalorder %s21, 1
          %s296 = scalar_select %p295, %s21, 1
          %s297 = smul.addr %s296, 4
          %s298 = scalar_lea.vmem %s0, %s297
        $region36: #{hcfh_forward.21} parent=31 // pred_fallthru
          _
        // Predicated region
        $region37: #{hcfh_forward.21} parent=31 // pred_check
          %p299 = pneg %p67
        $region38: #{hcfh_forward.21} parent=31 // pred_check_branch
          %301 = sbr.rel (%p299) target = $region40
        $region39: #{hcfh_forward.21} parent=31 // pred_region
          %p302 = scmp.lt.s32.totalorder %s21, 1
          %s303 = scalar_select %p302, %s21, 1
          %s304 = smul.addr %s303, 8
          %s305 = scalar_lea.vmem %s1, %s304
        $region40: #{hcfh_forward.21} parent=31 // pred_fallthru
          _
        // Predicated region
        $region41: #{hcfh_forward.21} parent=31 // pred_check
          %p306 = pneg %p93
        $region42: #{hcfh_forward.21} parent=31 // pred_check_branch
          %308 = sbr.rel (%p306) target = $region44
        $region43: #{hcfh_forward.21} parent=31 // pred_region
          %p309 = scmp.lt.s32.totalorder %s21, 1
          %s310 = scalar_select %p309, %s21, 1
          %s311 = smul.addr %s310, 8
          %s312 = scalar_lea.vmem %s2, %s311
        $region44: #{hcfh_forward.21} parent=31 // pred_fallthru
          _
        // Predicated region
        $region45: #{hcfh_forward.21} parent=31 // pred_check
          %p313 = pneg %p119
        $region46: #{hcfh_forward.21} parent=31 // pred_check_branch
          %315 = sbr.rel (%p313) target = $region48
        $region47: #{hcfh_forward.21} parent=31 // pred_region
          %p316 = scmp.lt.s32.totalorder %s21, 1
          %s317 = scalar_select %p316, %s21, 1
          %s318 = scalar_lea.vmem %s3, %s317
        $region48: #{hcfh_forward.21} parent=31 // pred_fallthru
          _
      $region32: #{hcfh_forward.21} parent=5 // pred_fallthru
        _
      %p319 = scmp.le.s32.totalorder 1, %s21
      %p320 = scmp.lt.s32.totalorder %s21, 3
      %p321 = pnand %p319, %p320
      %p322 = pneg %p321
      // Predicated region
      $region49: #{hcfh_forward.21} parent=5 // pred_check
        _
      $region50: #{hcfh_forward.21} parent=5 // pred_check_branch
        %324 = sbr.rel (%p321) target = $region52
      $region51: #{hcfh_forward.21} parent=5 // pred_region
        %s325 = ssub.s32 %s21, 1
        %p326 = scmp.lt.s32.totalorder %s26, 1
        %s327 = scalar_select %p326, %s26, 1
        %s328 = smul.addr %s327, 4
        %s329 = scalar_lea.vmem %s0, %s328
        %p330 = pneg %p47
        %p331 = pneg %p44
        %p332 = scmp.lt.s32.totalorder %s26, 1
        %s333 = scalar_select %p332, %s26, 1
        %s334 = smul.addr %s333, 8
        %s335 = scalar_lea.vmem %s1, %s334
        %p336 = pneg %p73
        %p337 = pneg %p70
        %p338 = scmp.lt.s32.totalorder %s26, 1
        %s339 = scalar_select %p338, %s26, 1
        %s340 = smul.addr %s339, 8
        %s341 = scalar_lea.vmem %s2, %s340
        %p342 = pneg %p99
        %p343 = pneg %p96
        %p344 = scmp.lt.s32.totalorder %s26, 1
        %s345 = scalar_select %p344, %s26, 1
        %s346 = scalar_lea.vmem %s3, %s345
        %p347 = pneg %p125
        %p348 = pneg %p122
        %p349 = pneg %p146
        %p350 = pneg %p143
        %p351 = pneg %p167
        %p352 = pneg %p164
        %p353 = pneg %p188
        %p354 = pneg %p185
        %p355 = pneg %p209
        %p356 = pneg %p206
        %p357 = pneg %p235
        %p358 = pneg %p232
        %s359 = sand.u32 %s222, 1
        %s360 = scalar_lea.sflag [#allocation4], %s359
        %s361 = sand.u32 %s222, 1
        %s362 = smul.addr %s361, 4
        %s363 = scalar_lea.vmem [#allocation3], %s362
        %p364 = pneg %p261
        %p365 = pneg %p258
        %p366 = scmp.lt.s32.totalorder %s26, 1
        %s367 = scalar_select %p366, %s26, 1
        %s368 = smul.addr %s367, 4
        %s369 = scalar_lea.vmem %s9, %s368
        %p370 = scmp.lt.s32.totalorder %s26, 1
        %s371 = scalar_select %p370, %s26, 1
        %s372 = smul.addr %s371, 4
        %s373 = scalar_lea.vmem %s0, %s372
        %p374 = scmp.lt.s32.totalorder %s26, 1
        %s375 = scalar_select %p374, %s26, 1
        %s376 = smul.addr %s375, 8
        %s377 = scalar_lea.vmem %s1, %s376
        %p378 = scmp.lt.s32.totalorder %s26, 1
        %s379 = scalar_select %p378, %s26, 1
        %s380 = smul.addr %s379, 8
        %s381 = scalar_lea.vmem %s2, %s380
        %p382 = scmp.lt.s32.totalorder %s26, 1
        %s383 = scalar_select %p382, %s26, 1
        %s384 = scalar_lea.vmem %s3, %s383
        %p385 = scmp.lt.s32.totalorder %s26, 1
        %s386 = scalar_select %p385, %s26, 1
        %s387 = smul.addr %s386, 4
        %s388 = scalar_lea.vmem %s9, %s387
        %v389 = vld [vmem:[%s373] sm:$0x7]
        %v390 = vld [vmem:[%s4] sm:$0xff]
        %v391 = vld [vmem:[%s4 + $0x8] sm:$0xff]
        %v392 = vld [vmem:[%s4 + $0x10] sm:$0xff]
        %v393 = vld [vmem:[%s4 + $0x18] sm:$0xff]
        %v394 = vld [vmem:[%s4 + $0x20] sm:$0xff]
        %v395 = vld [vmem:[%s4 + $0x28] sm:$0xff]
        %v396 = vld [vmem:[%s4 + $0x30] sm:$0xff]
        %v397 = vld [vmem:[%s4 + $0x38] sm:$0xff]
        %v398 = vld [vmem:[%s5] sm:$0x1]
        %v400 = vlaneseq
        %v401 = vshrl.u32 %v400, 7
        %v402 = vsub.s32 0, %v401
        %v403 = vrot.slane %v398, %v402
        %vm405 = vcmask 523264
        %v407 = vsel %vm405, %v389, 0
        %409 = vmatprep.subr.mxu0 0.0
        %410 = vmatpush1.msra.mxu0 %v390
        %411 = vmatprep.subr.mxu0 0.0
        %412 = vmatpush1.msra.mxu0 %v391
        %413 = vmatprep.subr.mxu0 0.0
        %414 = vmatpush1.msra.mxu0 %v392
        %415 = vmatprep.subr.mxu0 0.0
        %416 = vmatpush1.msra.mxu0 %v393
        %417 = vmatprep.subr.mxu0 0.0
        %418 = vmatpush1.msra.mxu0 %v394
        %419 = vmatprep.subr.mxu0 0.0
        %420 = vmatpush1.msra.mxu0 %v395
        %421 = vmatprep.subr.mxu0 0.0
        %422 = vmatpush1.msra.mxu0 %v396
        %423 = vmatprep.subr.mxu0 0.0
        %424 = vmatpush1.msra.mxu0 %v397
        %425 = vmatprep.subr.mxu0 0.0
        %426 = vmatpush1.msra.mxu0 0.0
        %427 = vmatprep.subr.mxu0 0.0
        %428 = vmatpush1.msra.mxu0 0.0
        %429 = vmatprep.subr.mxu0 0.0
        %430 = vmatpush1.msra.mxu0 0.0
        %431 = vmatprep.subr.mxu0 0.0
        %432 = vmatpush1.msra.mxu0 0.0
        %433 = vmatprep.subr.mxu0 0.0
        %434 = vmatpush1.msra.mxu0 0.0
        %435 = vmatprep.subr.mxu0 0.0
        %436 = vmatpush1.msra.mxu0 0.0
        %437 = vmatprep.subr.mxu0 0.0
        %438 = vmatpush1.msra.mxu0 0.0
        %439 = vmatprep.subr.mxu0 0.0
        %440 = vmatpush1.msra.mxu0 0.0
        %441 = vmatprep.subr.mxu0 0.0
        %442 = vmatpush1.msra.mxu0 0.0
        %443 = vmatprep.subr.mxu0 0.0
        %444 = vmatpush1.msra.mxu0 0.0
        %445 = vmatprep.subr.mxu0 0.0
        %446 = vmatpush1.msra.mxu0 0.0
        %447 = vmatprep.subr.mxu0 0.0
        %448 = vmatpush1.msra.mxu0 0.0
        %449 = vmatprep.subr.mxu0 0.0
        %450 = vmatpush1.msra.mxu0 0.0
        %451 = vmatprep.subr.mxu0 0.0
        %452 = vmatpush1.msra.mxu0 0.0
        %453 = vmatprep.subr.mxu0 0.0
        %454 = vmatpush1.msra.mxu0 0.0
        %455 = vmatprep.subr.mxu0 0.0
        %456 = vmatpush1.msra.mxu0 0.0
        %457 = vmatprep.subr.mxu0 0.0
        %458 = vmatpush1.msra.mxu0 0.0
        %459 = vmatprep.subr.mxu0 0.0
        %460 = vmatpush1.msra.mxu0 0.0
        %461 = vmatprep.subr.mxu0 0.0
        %462 = vmatpush1.msra.mxu0 0.0
        %463 = vmatprep.subr.mxu0 0.0
        %464 = vmatpush1.msra.mxu0 0.0
        %465 = vmatprep.subr.mxu0 0.0
        %466 = vmatpush1.msra.mxu0 0.0
        %467 = vmatprep.subr.mxu0 0.0
        %468 = vmatpush1.msra.mxu0 0.0
        %469 = vmatprep.subr.mxu0 0.0
        %470 = vmatpush1.msra.mxu0 0.0
        %471 = vmatprep.subr.mxu0 0.0
        %472 = vmatpush1.msra.mxu0 0.0
        %473 = vmatprep.mubr.f32.mxu0 0.0
        %474 = vmatmul.mubr.f32.gmra.mrb[0].mxu0 %v407
        %v475 = vpop.f32.mrb[0].mxu0
        %v476 = vadd.f32 %v403, %v475
        %v477 = vpop.f32.mrb[0].mxu0
        %478 = vdwg.mxu0
        %v479 = vld [vmem:[%s377] sm:$0xff]
        %v482 = vunpack.c.l.s4 1966171168
        %v483 = vunpack.c.0.s8 %v482
        %v484 = vlaneseq
        %v485 = vshrl.u32 %v484, 7
        %v486 = vsub.s32 %v483, %v485
        %v487 = vrot.slane %v476, %v486
        %v488 = vcombine.high %v487, %v487
        %v490 = vunpack.c.l.s4 1966171168
        %v491 = vunpack.c.0.s8 %v490
        %v492 = vlaneseq
        %v493 = vshrl.u32 %v492, 7
        %v494 = vsub.s32 %v491, %v493
        %v495 = vrot.slane %v487, %v494
        %v497 = vunpack.c.l.s4 1966171168
        %v498 = vunpack.c.0.s8 %v497
        %v499 = vlaneseq
        %v500 = vshrl.u32 %v499, 7
        %v501 = vsub.s32 %v498, %v500
        %v502 = vrot.slane %v488, %v501
        %v503 = vcombine.high %v495, %v495
        %v504 = vlaneseq
        %v505 = vshrl.u32 %v504, 7
        %v506 = vsub.s32 0, %v505
        %v507 = vrot.slane %v495, %v506
        %v508 = vlaneseq
        %v509 = vshrl.u32 %v508, 7
        %v510 = vsub.s32 0, %v509
        %v511 = vrot.slane %v502, %v510
        %v512 = vlaneseq
        %v513 = vshrl.u32 %v512, 7
        %v514 = vsub.s32 0, %v513
        %v515 = vrot.slane %v503, %v514
        %v519 = vadd.f32 %v479, %v507
        %v520 = vadd.f32 %v479, %v511
        %v521 = vadd.f32 %v479, %v515
        %v522 = vtanh.pop %v519
        %v523 = vtanh.pop %v520
        %v524 = vtanh.pop %v521
        %v525 = vld [vmem:[%s6] sm:$0x1]
        %v527 = vlaneseq
        %v528 = vshrl.u32 %v527, 7
        %v529 = vsub.s32 0, %v528
        %v530 = vrot.slane %v525, %v529
        %v532 = vmul.f32 %v522, %v530
        %v533 = vmul.f32 %v523, %v530
        %v534 = vmul.f32 %v524, %v530
        %vm535 = vcmask 261120
        %v536 = vsel %vm535, %v532, 0.0
        %537 = vadd.xlane.f32.xlu0 %v536
        %v538 = vpop.xlane.xlu0 %537
        %v539 = vsel %vm535, %v533, 0.0
        %540 = vadd.xlane.f32.xlu0 %v539
        %v541 = vpop.xlane.xlu0 %540
        %v542 = vsel %vm535, %v534, 0.0
        %543 = vadd.xlane.f32.xlu0 %v542
        %v544 = vpop.xlane.xlu0 %543
        %v545 = vld [vmem:[#allocation2] sm:$0x1]
        %v547 = vlaneseq
        %v548 = vshrl.u32 %v547, 7
        %v549 = vsub.s32 0, %v548
        %v550 = vrot.slane %v545, %v549
        %551 = vset.pattern.permute.xlu0 0
        %552 = vperm.xlu0 %551, %v550
        %v553 = vpop.permute.xlu0 %552
        %v555 = vadd.f32 %v538, %v553
        %v556 = vadd.f32 %v541, %v553
        %v557 = vadd.f32 %v544, %v553
        %v561 = vlaneseq
        %v562 = vand.u32 %v561, 127
        %v563 = vlaneseq
        %v564 = vshrl.u32 %v563, 7
        %v565 = vsub.s32 %v562, %v564
        %v566 = vrot.slane %v555, %v565
        %v567 = vlaneseq
        %v568 = vshrl.u32 %v567, 7
        %v569 = vsub.s32 %v562, %v568
        %v570 = vrot.slane %v556, %v569
        %v571 = vlaneseq
        %v572 = vshrl.u32 %v571, 7
        %v573 = vsub.s32 %v562, %v572
        %v574 = vrot.slane %v557, %v573
        %vm575 = vcmask 1041409
        %v576 = vsel %vm575, %v570, %v566
        %vm577 = vcmask 1042434
        %v578 = vsel %vm577, %v574, %v576
        %vm580 = vcmask 59392
        %v581 = vsel %vm580, %v578, -inf
        %582 = vmax.xlane.f32.xlu0 %v581
        %v583 = vpop.xlane.xlu0 %582
        %v585 = vlaneseq
        %v586 = vshrl.u32 %v585, 7
        %v587 = vsub.s32 0, %v586
        %v588 = vrot.slane %v583, %v587
        %v589 = vlaneseq
        %v590 = vshrl.u32 %v589, 7
        %v591 = vsub.s32 1, %v590
        %v592 = vrot.slane %v583, %v591
        %v593 = vlaneseq
        %v594 = vshrl.u32 %v593, 7
        %v595 = vsub.s32 2, %v594
        %v596 = vrot.slane %v583, %v595
        %v600 = vsub.f32 %v555, %v588
        %v601 = vsub.f32 %v556, %v592
        %v602 = vsub.f32 %v557, %v596
        %v603 = vmul.f32 %v600, 1.442695
        %v604 = vpow.pop %v603
        %v605 = vmul.f32 %v601, 1.442695
        %v606 = vpow.pop %v605
        %v607 = vmul.f32 %v602, 1.442695
        %v608 = vpow.pop %v607
        %612 = vset.pattern.permute.xlu0 0
        %613 = vperm.xlu0 %612, %v604
        %v614 = vpop.permute.xlu0 %613
        %615 = vset.pattern.permute.xlu0 0
        %616 = vperm.xlu0 %615, %v606
        %v617 = vpop.permute.xlu0 %616
        %618 = vset.pattern.permute.xlu0 0
        %619 = vperm.xlu0 %618, %v608
        %v620 = vpop.permute.xlu0 %619
        %v621 = vlaneseq
        %v622 = vshrl.u32 %v621, 7
        %v623 = vsub.s32 %v562, %v622
        %v624 = vrot.slane %v614, %v623
        %v625 = vlaneseq
        %v626 = vshrl.u32 %v625, 7
        %v627 = vsub.s32 %v562, %v626
        %v628 = vrot.slane %v617, %v627
        %v629 = vlaneseq
        %v630 = vshrl.u32 %v629, 7
        %v631 = vsub.s32 %v562, %v630
        %v632 = vrot.slane %v620, %v631
        %v633 = vsel %vm575, %v628, %v624
        %v634 = vsel %vm577, %v632, %v633
        %v636 = vsel %vm580, %v634, 0.0
        %637 = vadd.xlane.f32.xlu0 %v636
        %v638 = vpop.xlane.xlu0 %637
        %v639 = vld [vmem:[%s384] sm:$0x1]
        %v641 = vlaneseq
        %v642 = vshrl.u32 %v641, 7
        %v643 = vsub.s32 0, %v642
        %v644 = vrot.slane %v639, %v643
        %646 = vbcast.lane.b32.xlu0 %v644, 256
        %v647 = vpop.permute.xlu0 %646
        %v649 = vmul.f32 %v604, %v647
        %v650 = vmul.f32 %v606, %v647
        %v651 = vmul.f32 %v608, %v647
        %655 = vset.pattern.permute.xlu0 0
        %656 = vperm.xlu0 %655, %v649
        %v657 = vpop.permute.xlu0 %656
        %658 = vset.pattern.permute.xlu0 0
        %659 = vperm.xlu0 %658, %v650
        %v660 = vpop.permute.xlu0 %659
        %661 = vset.pattern.permute.xlu0 0
        %662 = vperm.xlu0 %661, %v651
        %v663 = vpop.permute.xlu0 %662
        %v664 = vlaneseq
        %v665 = vshrl.u32 %v664, 7
        %v666 = vsub.s32 %v562, %v665
        %v667 = vrot.slane %v657, %v666
        %v668 = vlaneseq
        %v669 = vshrl.u32 %v668, 7
        %v670 = vsub.s32 %v562, %v669
        %v671 = vrot.slane %v660, %v670
        %v672 = vlaneseq
        %v673 = vshrl.u32 %v672, 7
        %v674 = vsub.s32 %v562, %v673
        %v675 = vrot.slane %v663, %v674
        %v676 = vsel %vm575, %v671, %v667
        %v677 = vsel %vm577, %v675, %v676
        %v679 = vsel %vm580, %v677, 0.0
        %680 = vadd.xlane.f32.xlu0 %v679
        %v681 = vpop.xlane.xlu0 %680
        %v682 = vmul.f32 %v638, 1e-10
        %v683 = vadd.f32 %v681, %v682
        %v684 = vrcp.pop %v683
        %v686 = vlaneseq
        %v687 = vshrl.u32 %v686, 7
        %v688 = vsub.s32 0, %v687
        %v689 = vrot.slane %v684, %v688
        %v690 = vlaneseq
        %v691 = vshrl.u32 %v690, 7
        %v692 = vsub.s32 1, %v691
        %v693 = vrot.slane %v684, %v692
        %v694 = vlaneseq
        %v695 = vshrl.u32 %v694, 7
        %v696 = vsub.s32 2, %v695
        %v697 = vrot.slane %v684, %v696
        %v701 = vmul.f32 %v649, %v689
        %v702 = vmul.f32 %v650, %v693
        %v703 = vmul.f32 %v651, %v697
        %v704 = vld [vmem:[%s381] sm:$0xff]
        %708 = vset.pattern.permute.xlu0 0
        %709 = vperm.xlu0 %708, %v701
        %v710 = vpop.permute.xlu0 %709
        %711 = vset.pattern.permute.xlu0 0
        %712 = vperm.xlu0 %711, %v702
        %v713 = vpop.permute.xlu0 %712
        %714 = vset.pattern.permute.xlu0 0
        %715 = vperm.xlu0 %714, %v703
        %v716 = vpop.permute.xlu0 %715
        %v717 = vlaneseq
        %v718 = vshrl.u32 %v717, 7
        %v719 = vsub.s32 %v562, %v718
        %v720 = vrot.slane %v710, %v719
        %v721 = vlaneseq
        %v722 = vshrl.u32 %v721, 7
        %v723 = vsub.s32 %v562, %v722
        %v724 = vrot.slane %v713, %v723
        %v725 = vlaneseq
        %v726 = vshrl.u32 %v725, 7
        %v727 = vsub.s32 %v562, %v726
        %v728 = vrot.slane %v716, %v727
        %v729 = vsel %vm575, %v724, %v720
        %v730 = vsel %vm577, %v728, %v729
        %vm731 = vcmask 64512
        %v732 = vsel %vm731, %v730, 0
        %734 = vmatprep.subr.mxu0 0.0
        %735 = vmatpush1.msra.mxu0 %v704
        %736 = vmatprep.subr.mxu0 0.0
        %737 = vmatpush1.msra.mxu0 0.0
        %738 = vmatprep.subr.mxu0 0.0
        %739 = vmatpush1.msra.mxu0 0.0
        %740 = vmatprep.subr.mxu0 0.0
        %741 = vmatpush1.msra.mxu0 0.0
        %742 = vmatprep.subr.mxu0 0.0
        %743 = vmatpush1.msra.mxu0 0.0
        %744 = vmatprep.subr.mxu0 0.0
        %745 = vmatpush1.msra.mxu0 0.0
        %746 = vmatprep.subr.mxu0 0.0
        %747 = vmatpush1.msra.mxu0 0.0
        %748 = vmatprep.subr.mxu0 0.0
        %749 = vmatpush1.msra.mxu0 0.0
        %750 = vmatprep.subr.mxu0 0.0
        %751 = vmatpush1.msra.mxu0 0.0
        %752 = vmatprep.subr.mxu0 0.0
        %753 = vmatpush1.msra.mxu0 0.0
        %754 = vmatprep.subr.mxu0 0.0
        %755 = vmatpush1.msra.mxu0 0.0
        %756 = vmatprep.subr.mxu0 0.0
        %757 = vmatpush1.msra.mxu0 0.0
        %758 = vmatprep.subr.mxu0 0.0
        %759 = vmatpush1.msra.mxu0 0.0
        %760 = vmatprep.subr.mxu0 0.0
        %761 = vmatpush1.msra.mxu0 0.0
        %762 = vmatprep.subr.mxu0 0.0
        %763 = vmatpush1.msra.mxu0 0.0
        %764 = vmatprep.subr.mxu0 0.0
        %765 = vmatpush1.msra.mxu0 0.0
        %766 = vmatprep.subr.mxu0 0.0
        %767 = vmatpush1.msra.mxu0 0.0
        %768 = vmatprep.subr.mxu0 0.0
        %769 = vmatpush1.msra.mxu0 0.0
        %770 = vmatprep.subr.mxu0 0.0
        %771 = vmatpush1.msra.mxu0 0.0
        %772 = vmatprep.subr.mxu0 0.0
        %773 = vmatpush1.msra.mxu0 0.0
        %774 = vmatprep.subr.mxu0 0.0
        %775 = vmatpush1.msra.mxu0 0.0
        %776 = vmatprep.subr.mxu0 0.0
        %777 = vmatpush1.msra.mxu0 0.0
        %778 = vmatprep.subr.mxu0 0.0
        %779 = vmatpush1.msra.mxu0 0.0
        %780 = vmatprep.subr.mxu0 0.0
        %781 = vmatpush1.msra.mxu0 0.0
        %782 = vmatprep.subr.mxu0 0.0
        %783 = vmatpush1.msra.mxu0 0.0
        %784 = vmatprep.subr.mxu0 0.0
        %785 = vmatpush1.msra.mxu0 0.0
        %786 = vmatprep.subr.mxu0 0.0
        %787 = vmatpush1.msra.mxu0 0.0
        %788 = vmatprep.subr.mxu0 0.0
        %789 = vmatpush1.msra.mxu0 0.0
        %790 = vmatprep.subr.mxu0 0.0
        %791 = vmatpush1.msra.mxu0 0.0
        %792 = vmatprep.subr.mxu0 0.0
        %793 = vmatpush1.msra.mxu0 0.0
        %794 = vmatprep.subr.mxu0 0.0
        %795 = vmatpush1.msra.mxu0 0.0
        %796 = vmatprep.subr.mxu0 0.0
        %797 = vmatpush1.msra.mxu0 0.0
        %798 = vmatprep.mubr.f32.mxu0 0.0
        %799 = vmatmul.mubr.f32.gmra.mrb[0].mxu0 %v732
        %v800 = vpop.f32.mrb[0].mxu0
        %v801 = vadd.f32 0.0, %v800
        %v802 = vpop.f32.mrb[0].mxu0
        %803 = vdwg.mxu0
        %vm804 = vcmask 256000
        %805 = vst.msk [vmem:[%s363] sm:$0x7] %vm804, %v801
        %807 = vst.msk [vmem:[%s388] sm:$0x7] %vm580, %v730
        %s808 = sand.u32 %s222, 1
        %s809 = scalar_lea.sflag [#allocation4], %s808
        %s810 = sand.u32 %s222, 1
        %s811 = smul.addr %s810, 4
        %s812 = scalar_lea.vmem [#allocation3], %s811
        %p813 = scmp.lt.s32.totalorder %s26, 1
        %s814 = scalar_select %p813, %s26, 1
        %s815 = smul.addr %s814, 4
        %s816 = scalar_lea.vmem %s9, %s815
        // Predicated region
        $region53: #{hcfh_forward.21} parent=51 // pred_check
          %p817 = pneg %p232
        $region54: #{hcfh_forward.21} parent=51 // pred_check_branch
          %819 = sbr.rel (%p817) target = $region56
        $region55: #{hcfh_forward.21} parent=51 // pred_region
          %s821 = ssub.s32 64, 64
          %822 = vsyncadd %s809, %s821
          %s823 = smul.addr %s26, 64
          %s824 = scalar_lea.hbm %s8, %s823
          %s826 = sshll.u32 %s812, 4
          %s827 = int_to_ptr.vmem [resolvable:$true] %s826
          %829 = dma.vmem_to_hbm [thread:$0]  %s827, 64, %s824, %s809
        $region56: #{hcfh_forward.21} parent=51 // pred_fallthru
          _
        // Predicated region
        $region57: #{hcfh_forward.21} parent=51 // pred_check
          %p830 = pneg %p258
        $region58: #{hcfh_forward.21} parent=51 // pred_check_branch
          %832 = sbr.rel (%p830) target = $region60
        $region59: #{hcfh_forward.21} parent=51 // pred_region
          _
        $region60: #{hcfh_forward.21} parent=51 // pred_fallthru
          _
      $region52: #{hcfh_forward.21} parent=5 // pred_fallthru
        _
      %p833 = scmp.le.s32.totalorder 2, %s21
      // Predicated region
      $region61: #{hcfh_forward.21} parent=5 // pred_check
        %p834 = pneg %p833
      $region62: #{hcfh_forward.21} parent=5 // pred_check_branch
        %836 = sbr.rel (%p834) target = $region64
      $region63: #{hcfh_forward.21} parent=5 // pred_region
        %s837 = ssub.s32 %s21, 2
        // Predicated region
        $region65: #{hcfh_forward.21} parent=63 // pred_check
          %p838 = pneg %p238
        $region66: #{hcfh_forward.21} parent=63 // pred_check_branch
          %840 = sbr.rel (%p838) target = $region68
        $region67: #{hcfh_forward.21} parent=63 // pred_region
          %s841 = sand.u32 %s223, 1
          %s842 = scalar_lea.sflag [#allocation4], %s841
          %s843 = sand.u32 %s223, 1
          %s844 = smul.addr %s843, 4
          %s845 = scalar_lea.vmem [#allocation3], %s844
          %846 = dma.done %s842, 64
        $region68: #{hcfh_forward.21} parent=63 // pred_fallthru
          _
        // Predicated region
        $region69: #{hcfh_forward.21} parent=63 // pred_check
          %p847 = pneg %p264
        $region70: #{hcfh_forward.21} parent=63 // pred_check_branch
          %849 = sbr.rel (%p847) target = $region72
        $region71: #{hcfh_forward.21} parent=63 // pred_region
          %p850 = scmp.lt.s32.totalorder %s27, 1
          %s851 = scalar_select %p850, %s27, 1
          %s852 = smul.addr %s851, 4
          %s853 = scalar_lea.vmem %s9, %s852
        $region72: #{hcfh_forward.21} parent=63 // pred_fallthru
          _
      $region64: #{hcfh_forward.21} parent=5 // pred_fallthru
        _
    $region6: #{hcfh_forward.21} parent=1 // loop_footer
      %s25 = sadd.s32 1, %s21
    $region7: #{hcfh_forward.21} parent=1 // loop_footer_branch
      %20 = sbr.rel target = $region3
    $region8: #{hcfh_forward.21} parent=1 // loop_exit
      _
    %854 = vsyncpa [#allocation4], 1
    %s855 = scalar_lea.sflag [#allocation4], 1
    %856 = vsyncpa %s855, 1

</llo_original>
